<compile_context>
chip_gen: v7x
topology: tpu7x:2x2x1
jax: 0.10.0
libtpu: 0.0.40
codegen_flags: <defaults>
</compile_context>

<pallas_src>
import functools

import jax
import jax.numpy as jnp
from jax.experimental import pallas as pl
from jax.experimental.pallas import tpu as pltpu


# Lane-axis tile for the conv matmuls (flattened B*oh*ow dimension).
_TM = 256


def _tile_cols(m):
    """Pick a lane tile (multiple of 128) and the padded column count."""
    m_r = ((m + 127) // 128) * 128
    tm = min(_TM, m_r)
    mp = ((m + tm - 1) // tm) * tm
    return tm, mp


def _pad_cols(x, mp):
    m = x.shape[-1]
    if mp == m:
        return x
    return jnp.pad(x, ((0, 0), (0, mp - m)))


# ----------------------------------------------------------------------------
# Pallas kernels
# ----------------------------------------------------------------------------
def _conv_mm_kernel(w_ref, x_ref, b_ref, o_ref):
    # w: (OC, K) bf16, x: (K, tm) bf16, b: (OC, 1) f32 -> o: (OC, tm) f32
    o_ref[...] = (
        jnp.dot(w_ref[...], x_ref[...], preferred_element_type=jnp.float32)
        + b_ref[...]
    )


def _conv_mm_fused_kernel(w_ref, x_ref, b_ref, aw_ref, ca_ref, o_ref):
    # conv_h matmul + fused epilogue: (dot + bias) * attn_w * out_ca (all f32).
    y = (jnp.dot(w_ref[...], x_ref[...], preferred_element_type=jnp.float32)
         + b_ref[...])
    o_ref[...] = y * aw_ref[...] * ca_ref[...]


def _ca_kernel(x_ref, w1_ref, b1_ref, w2_ref, b2_ref, o_ref):
    # x: (C, HW).  Fused global-avg-pool -> 1x1 MLP -> sigmoid -> x * attn.
    # (The tiny (C,1)-column MLP is negligible at these channel counts; the
    #  structural win is emitting the result in channels-row layout.)
    x = x_ref[...]
    avg = jnp.mean(x, axis=-1, keepdims=True)                      # (C, 1)
    h = jnp.maximum(
        jnp.dot(w1_ref[...], avg, preferred_element_type=jnp.float32)
        + b1_ref[...], 0.0)                                        # (Cr, 1)
    a = jax.nn.sigmoid(
        jnp.dot(w2_ref[...], h, preferred_element_type=jnp.float32)
        + b2_ref[...])                                             # (C, 1)
    o_ref[...] = x * a


# ----------------------------------------------------------------------------
# Pallas wrappers
# ----------------------------------------------------------------------------
def conv_mm(w2d, bias, patches_t):
    """(OC, Mp) = w2d(OC, K) @ patches_t(K, M) + bias, lane-dense output.

    bf16 MXU operands, f32 accumulate.  Returns the column-padded result.
    """
    oc, k = w2d.shape
    m = patches_t.shape[1]
    tm, mp = _tile_cols(m)
    patches_t = _pad_cols(patches_t, mp)
    bcol = (jnp.zeros((oc, 1), jnp.float32) if bias is None
            else bias.reshape(oc, 1).astype(jnp.float32))
    # Note: K stays untiled here (K <= C*9); for production channel counts add
    # a K grid axis + f32 accumulator scratch and raise vmem_limit_bytes.
    return pl.pallas_call(
        _conv_mm_kernel,
        out_shape=jax.ShapeDtypeStruct((oc, mp), jnp.float32),
        grid_spec=pltpu.PrefetchScalarGridSpec(
            num_scalar_prefetch=0,
            grid=(mp // tm,),
            in_specs=[
                pl.BlockSpec((oc, k), lambda i: (0, 0)),
                pl.BlockSpec((k, tm), lambda i: (0, i)),
                pl.BlockSpec((oc, 1), lambda i: (0, 0)),
            ],
            out_specs=pl.BlockSpec((oc, tm), lambda i: (0, i)),
        ),
        compiler_params=pltpu.CompilerParams(dimension_semantics=("parallel",)),
    )(w2d.astype(jnp.bfloat16), patches_t.astype(jnp.bfloat16), bcol)


def conv_mm_fused(w2d, bias, patches_t, attn_w_p, out_ca_t):
    """conv_h matmul fused with the final attn_h * attn_w * out_ca product."""
    oc, k = w2d.shape
    m = patches_t.shape[1]
    tm, mp = _tile_cols(m)
    patches_t = _pad_cols(patches_t, mp)
    attn_w_p = _pad_cols(attn_w_p, mp)
    out_ca_p = _pad_cols(out_ca_t, mp)
    bcol = bias.reshape(oc, 1).astype(jnp.float32)
    return pl.pallas_call(
        _conv_mm_fused_kernel,
        out_shape=jax.ShapeDtypeStruct((oc, mp), jnp.float32),
        grid_spec=pltpu.PrefetchScalarGridSpec(
            num_scalar_prefetch=0,
            grid=(mp // tm,),
            in_specs=[
                pl.BlockSpec((oc, k), lambda i: (0, 0)),
                pl.BlockSpec((k, tm), lambda i: (0, i)),
                pl.BlockSpec((oc, 1), lambda i: (0, 0)),
                pl.BlockSpec((oc, tm), lambda i: (0, i)),
                pl.BlockSpec((oc, tm), lambda i: (0, i)),
            ],
            out_specs=pl.BlockSpec((oc, tm), lambda i: (0, i)),
        ),
        compiler_params=pltpu.CompilerParams(dimension_semantics=("parallel",)),
    )(w2d.astype(jnp.bfloat16), patches_t.astype(jnp.bfloat16), bcol,
      attn_w_p, out_ca_p)


def channel_attention_mul_t(x, w1, b1, w2, b2):
    """sigmoid(MLP(avgpool(x))) * x, emitted in (C, B*H*W) channels-row layout."""
    B, C, H, W = x.shape
    HW = H * W
    Cr = w1.shape[0]
    x2 = x.reshape(B * C, HW)
    return pl.pallas_call(
        _ca_kernel,
        out_shape=jax.ShapeDtypeStruct((C, B * HW), jnp.float32),
        grid_spec=pltpu.PrefetchScalarGridSpec(
            num_scalar_prefetch=0,
            grid=(B,),
            in_specs=[
                pl.BlockSpec((C, HW), lambda b: (b, 0)),
                pl.BlockSpec((Cr, C), lambda b: (0, 0)),
                pl.BlockSpec((Cr, 1), lambda b: (0, 0)),
                pl.BlockSpec((C, Cr), lambda b: (0, 0)),
                pl.BlockSpec((C, 1), lambda b: (0, 0)),
            ],
            out_specs=pl.BlockSpec((C, HW), lambda b: (0, b)),
        ),
        compiler_params=pltpu.CompilerParams(dimension_semantics=("parallel",)),
    )(x2, w1, b1.reshape(Cr, 1), w2, b2.reshape(C, 1))


# ----------------------------------------------------------------------------
# XLA glue: transposed im2col and deformable bilinear sampling
# ----------------------------------------------------------------------------
def _im2col_t(x_cbhw, kh, kw, ph, pw):
    """im2col (stride 1) on a (C, B, H, W) channels-row tensor.

    Returns transposed patches (C*kh*kw, B*oh*ow); K ordering matches the
    PyTorch (OC, IC*kh*kw) weight flattening.
    """
    # TODO(synk): patch extraction is still materialized by XLA pad/stack;
    # folding the shifted slices into the conv pallas_call would remove the
    # HBM round-trip.
    C, B, H, W = x_cbhw.shape
    xp = jnp.pad(x_cbhw, ((0, 0), (0, 0), (ph, ph), (pw, pw)))
    oh = H + 2 * ph - kh + 1
    ow = W + 2 * pw - kw + 1
    cols = [xp[:, :, dh:dh + oh, dw:dw + ow]
            for dh in range(kh) for dw in range(kw)]
    patches = jnp.stack(cols, axis=1)                  # (C, kh*kw, B, oh, ow)
    return patches.reshape(C * kh * kw, B * oh * ow), oh, ow


def _deform_patches(out_ca_cb, offset_bhwn, ks=3):
    """Bilinear deformable sampling -> transposed patches for the stride-ks conv.

    out_ca_cb  : (C, B, H, W) channel-attended activation
    offset_bhwn: (B, H, W, 2N) predicted offsets, N = ks*ks
    returns    : (C*N, B*H*W) patches (K order (c, n) matches (OC, IC*ks*ks)).
    """
    C, B, H, W = out_ca_cb.shape
    N = ks * ks
    Hp, Wp = H + 2, W + 2                              # zero_padding(1)

    # p_n (kernel offsets) and p_0 (base grid, 1-indexed into padded image)
    r = jnp.arange(-(ks - 1) // 2, (ks - 1) // 2 + 1, dtype=jnp.float32)
    pnx, pny = jnp.meshgrid(r, r, indexing="ij")
    p_n = jnp.concatenate([pnx.reshape(-1), pny.reshape(-1)], 0)
    p_n = p_n.reshape(1, 1, 1, 2 * N)
    p0x = jnp.broadcast_to(
        jnp.arange(1, H + 1, dtype=jnp.float32).reshape(1, H, 1, 1), (1, H, W, N))
    p0y = jnp.broadcast_to(
        jnp.arange(1, W + 1, dtype=jnp.float32).reshape(1, 1, W, 1), (1, H, W, N))
    p_0 = jnp.concatenate([p0x, p0y], axis=-1)

    p = p_0 + p_n + offset_bhwn                        # (B, H, W, 2N)

    q_lt = jnp.floor(p)
    q_rb = q_lt + 1.0

    def clamp_xy(q):
        return jnp.concatenate(
            [jnp.clip(q[..., :N], 0, Hp - 1), jnp.clip(q[..., N:], 0, Wp - 1)],
            axis=-1)

    q_lt = clamp_xy(q_lt).astype(jnp.int32)
    q_rb = clamp_xy(q_rb).astype(jnp.int32)
    q_lb = jnp.concatenate([q_lt[..., :N], q_rb[..., N:]], axis=-1)
    q_rt = jnp.concatenate([q_rb[..., :N], q_lt[..., N:]], axis=-1)
    p = clamp_xy(p)

    f32 = lambda q: q.astype(jnp.float32)
    px, py = p[..., :N], p[..., N:]
    g_lt = (1 + (f32(q_lt[..., :N]) - px)) * (1 + (f32(q_lt[..., N:]) - py))
    g_rb = (1 - (f32(q_rb[..., :N]) - px)) * (1 - (f32(q_rb[..., N:]) - py))
    g_lb = (1 + (f32(q_lb[..., :N]) - px)) * (1 - (f32(q_lb[..., N:]) - py))
    g_rt = (1 - (f32(q_rt[..., :N]) - px)) * (1 + (f32(q_rt[..., N:]) - py))

    # Single merged gather on a channels-last padded view: each gathered
    # element is a lane-contiguous C-row instead of 4x per-channel gathers.
    # TODO(synk): the data-dependent gather stays in XLA; a Pallas version
    # needs a manual DMA gather with scalar-prefetched indices.
    xp_cl = jnp.pad(jnp.transpose(out_ca_cb, (1, 2, 3, 0)),
                    ((0, 0), (1, 1), (1, 1), (0, 0))).reshape(B, Hp * Wp, C)
    idx = jnp.stack(
        [q[..., :N] * Wp + q[..., N:] for q in (q_lt, q_rb, q_lb, q_rt)],
        axis=3)                                        # (B, H, W, 4, N)
    gathered = jnp.take_along_axis(
        xp_cl, idx.reshape(B, H * W * 4 * N, 1), axis=1)
    gathered = gathered.reshape(B, H * W, 4, N, C)
    g = jnp.stack([g_lt, g_rb, g_lb, g_rt], axis=3).reshape(B, H * W, 4, N, 1)
    x_off = jnp.sum(g * gathered, axis=2)              # (B, H*W, N, C)

    # (B, HW, N, C) -> (C, N, B, HW) -> (C*N, B*HW); equivalent to the
    # reference _reshape_x_offset followed by the stride-ks im2col.
    return jnp.transpose(x_off, (3, 2, 0, 1)).reshape(C * N, B * H * W)


# ----------------------------------------------------------------------------
# CBAM forward
# ----------------------------------------------------------------------------
def cbam_forward(x, params):
    B, C, H, W = x.shape
    M = B * H * W
    ks = 3
    n_off = 2 * ks * ks

    # 1) out_ca = channel_attention(x) * x, channels-row layout (C, B*H*W)
    out_ca_t = channel_attention_mul_t(
        x, params["ca_w1"], params["ca_b1"], params["ca_w2"], params["ca_b2"])
    out_ca_cb = out_ca_t.reshape(C, B, H, W)

    # 2) offset = p_conv(out_ca)  (3x3, pad 1) — lane-dense Pallas matmul
    patches_p, _, _ = _im2col_t(out_ca_cb, 3, 3, 1, 1)
    off_t = conv_mm(params["p_w"].reshape(n_off, C * 9), params["p_b"],
                    patches_p)[:, :M]
    offset = jnp.transpose(off_t.reshape(n_off, B, H, W), (1, 2, 3, 0))

    # 3) deformable bilinear sampling (merged channels-last gather, XLA glue)
    patches_dc = _deform_patches(out_ca_cb, offset, ks)

    # 4) deform conv (kernel=3, stride=3, no bias)
    d_t = conv_mm(params["dc_w"].reshape(C, C * 9), None, patches_dc)[:, :M]
    d_cb = d_t.reshape(C, B, H, W)

    # 5) attn_w = conv_w(d)  (5,1) pad (2,0) — kept column-padded (C, Mp)
    patches_w, _, _ = _im2col_t(d_cb, 5, 1, 2, 0)
    attn_w_t = conv_mm(params["cw_w"].reshape(C, C * 5), params["cw_b"],
                       patches_w)

    # 6) attn_h = conv_h(d)  (1,5) pad (0,2), fused with * attn_w * out_ca
    patches_h, _, _ = _im2col_t(d_cb, 1, 5, 0, 2)
    out_t = conv_mm_fused(params["ch_w"].reshape(C, C * 5), params["ch_b"],
                          patches_h, attn_w_t, out_ca_t)

    # back to NCHW at the module boundary
    return jnp.transpose(out_t[:, :M].reshape(C, B, H, W), (1, 0, 2, 3))


# ----------------------------------------------------------------------------
# main
# ----------------------------------------------------------------------------
def _uniform(key, shape, scale=0.1):
    return jax.random.uniform(key, shape, jnp.float32, minval=-scale, maxval=scale)


if __name__ == "__main__":
    B, C, H, W = 2, 32, 16, 16          # ratio=16 -> hidden channels Cr = 2
    Cr = C // 16
    ks = 3

    key = jax.random.PRNGKey(0)
    keys = jax.random.split(key, 12)
    x = jax.random.normal(keys[0], (B, C, H, W), jnp.float32)

    params = dict(
        # ChannelAttentionModule: Conv2d(C, Cr, 1) -> ReLU -> Conv2d(Cr, C, 1)
        ca_w1=_uniform(keys[1], (Cr, C)),
        ca_b1=_uniform(keys[2], (Cr,)),
        ca_w2=_uniform(keys[3], (C, Cr)),
        ca_b2=_uniform(keys[4], (C,)),
        # DeformConv2d: p_conv weight is constant-0 per the module __init__
        p_w=jnp.zeros((2 * ks * ks, C, 3, 3), jnp.float32),
        p_b=_uniform(keys[5], (2 * ks * ks,), 0.5),
        dc_w=_uniform(keys[6], (C, C, ks, ks)),            # conv(..., bias=None)
        # SpatialAttentionModule convs
        ch_w=_uniform(keys[7], (C, C, 1, 5)),
        ch_b=_uniform(keys[8], (C,)),
        cw_w=_uniform(keys[9], (C, C, 5, 1)),
        cw_b=_uniform(keys[10], (C,)),
    )

    fwd = jax.jit(functools.partial(cbam_forward, params=params))
    out = fwd(x)
    jax.block_until_ready(out)
    assert out.shape == (B, C, H, W) and out.dtype == jnp.float32
    print("KERNEL_OK")
</pallas_src>

<mosaic_0001>
module attributes {stable_mosaic.version = 11 : i64} {
  func.func @_ca_kernel(%arg0: i32, %arg1: memref<32x256xf32, #tpu.memory_space<vmem>>, %arg2: memref<2x32xf32, #tpu.memory_space<vmem>>, %arg3: memref<2x1xf32, #tpu.memory_space<vmem>>, %arg4: memref<32x2xf32, #tpu.memory_space<vmem>>, %arg5: memref<32x1xf32, #tpu.memory_space<vmem>>, %arg6: memref<32x256xf32, #tpu.memory_space<vmem>>) attributes {dimension_semantics = [#tpu.dimension_semantics<parallel>], iteration_bounds = array<i64: 2>, scalar_prefetch = 0 : i64, scratch_operands = 0 : i64, tpu.core_type = #tpu.core_type<tc>, window_params = [{transform_indices = @transform_0, window_bounds = array<i64: 32, 256>}, {pipeline_mode = #tpu.pipeline_mode<synchronous>, transform_indices = @transform_1, window_bounds = array<i64: 2, 32>}, {pipeline_mode = #tpu.pipeline_mode<synchronous>, transform_indices = @transform_2, window_bounds = array<i64: 2, 1>}, {pipeline_mode = #tpu.pipeline_mode<synchronous>, transform_indices = @transform_3, window_bounds = array<i64: 32, 2>}, {pipeline_mode = #tpu.pipeline_mode<synchronous>, transform_indices = @transform_4, window_bounds = array<i64: 32, 1>}, {transform_indices = @transform_5, window_bounds = array<i64: 32, 256>}]} {
    %c0 = arith.constant 0 : index
    %c0_0 = arith.constant 0 : index
    %0 = vector.load %arg1[%c0, %c0_0] : memref<32x256xf32, #tpu.memory_space<vmem>>, vector<32x256xf32>
    %cst = arith.constant dense<0.000000e+00> : vector<32xf32>
    %1 = vector.multi_reduction <add>, %0, %cst [1] : vector<32x256xf32> to vector<32xf32>
    %2 = vector.shape_cast %1 : vector<32xf32> to vector<32x1xf32>
    %cst_1 = arith.constant 2.560000e+02 : f32
    %3 = vector.broadcast %cst_1 : f32 to vector<32x1xf32>
    %4 = arith.divf %2, %3 : vector<32x1xf32>
    %c0_2 = arith.constant 0 : index
    %c0_3 = arith.constant 0 : index
    %5 = vector.load %arg2[%c0_2, %c0_3] : memref<2x32xf32, #tpu.memory_space<vmem>>, vector<2x32xf32>
    %cst_4 = arith.constant dense<0.000000e+00> : vector<2x1xf32>
    %6 = tpu.matmul %5, %4, %cst_4 {dimension_numbers = #tpu.dot_dimension_numbers<[1], [0], [0], [1], [0, 0, 1, 1], [], []>} : vector<2x32xf32>, vector<32x1xf32>, vector<2x1xf32> -> vector<2x1xf32>
    %c0_5 = arith.constant 0 : index
    %c0_6 = arith.constant 0 : index
    %7 = vector.load %arg3[%c0_5, %c0_6] : memref<2x1xf32, #tpu.memory_space<vmem>>, vector<2x1xf32>
    %8 = arith.addf %6, %7 : vector<2x1xf32>
    %cst_7 = arith.constant 0.000000e+00 : f32
    %9 = vector.broadcast %cst_7 : f32 to vector<2x1xf32>
    %10 = arith.maximumf %8, %9 : vector<2x1xf32>
    %c0_8 = arith.constant 0 : index
    %c0_9 = arith.constant 0 : index
    %11 = vector.load %arg4[%c0_8, %c0_9] : memref<32x2xf32, #tpu.memory_space<vmem>>, vector<32x2xf32>
    %cst_10 = arith.constant dense<0.000000e+00> : vector<32x1xf32>
    %12 = tpu.matmul %11, %10, %cst_10 {dimension_numbers = #tpu.dot_dimension_numbers<[1], [0], [0], [1], [0, 0, 1, 1], [], []>} : vector<32x2xf32>, vector<2x1xf32>, vector<32x1xf32> -> vector<32x1xf32>
    %c0_11 = arith.constant 0 : index
    %c0_12 = arith.constant 0 : index
    %13 = vector.load %arg5[%c0_11, %c0_12] : memref<32x1xf32, #tpu.memory_space<vmem>>, vector<32x1xf32>
    %14 = arith.addf %12, %13 : vector<32x1xf32>
    %15 = arith.negf %14 : vector<32x1xf32>
    %16 = math.exp %15 : vector<32x1xf32>
    %cst_13 = arith.constant 1.000000e+00 : f32
    %17 = vector.broadcast %cst_13 : f32 to vector<32x1xf32>
    %18 = arith.addf %17, %16 : vector<32x1xf32>
    %19 = arith.divf %17, %18 : vector<32x1xf32>
    %20 = vector.broadcast %19 : vector<32x1xf32> to vector<32x256xf32>
    %21 = arith.mulf %0, %20 : vector<32x256xf32>
    %c0_14 = arith.constant 0 : index
    %c0_15 = arith.constant 0 : index
    %22 = vector.load %arg6[%c0_14, %c0_15] : memref<32x256xf32, #tpu.memory_space<vmem>>, vector<32x256xf32>
    tpu.vector_store %arg6[%c0_14, %c0_15], %21 {strides = array<i32>} : memref<32x256xf32, #tpu.memory_space<vmem>>, vector<32x256xf32>,
    return
  }
  func.func @transform_0(%arg0: i32) -> (i32, i32) {
    %c0_i32 = arith.constant 0 : i32
    %c0_i32_0 = arith.constant 0 : i32
    return %arg0, %c0_i32 : i32, i32
  }
  func.func @transform_1(%arg0: i32) -> (i32, i32) {
    %c0_i32 = arith.constant 0 : i32
    %c0_i32_0 = arith.constant 0 : i32
    %c0_i32_1 = arith.constant 0 : i32
    return %c0_i32, %c0_i32_0 : i32, i32
  }
  func.func @transform_2(%arg0: i32) -> (i32, i32) {
    %c0_i32 = arith.constant 0 : i32
    %c0_i32_0 = arith.constant 0 : i32
    %c0_i32_1 = arith.constant 0 : i32
    return %c0_i32, %c0_i32_0 : i32, i32
  }
  func.func @transform_3(%arg0: i32) -> (i32, i32) {
    %c0_i32 = arith.constant 0 : i32
    %c0_i32_0 = arith.constant 0 : i32
    %c0_i32_1 = arith.constant 0 : i32
    return %c0_i32, %c0_i32_0 : i32, i32
  }
  func.func @transform_4(%arg0: i32) -> (i32, i32) {
    %c0_i32 = arith.constant 0 : i32
    %c0_i32_0 = arith.constant 0 : i32
    %c0_i32_1 = arith.constant 0 : i32
    return %c0_i32, %c0_i32_0 : i32, i32
  }
  func.func @transform_5(%arg0: i32) -> (i32, i32) {
    %c0_i32 = arith.constant 0 : i32
    %c0_i32_0 = arith.constant 0 : i32
    return %c0_i32, %arg0 : i32, i32
  }
}

module attributes {stable_mosaic.version = 11 : i64} {
  func.func @_conv_mm_kernel(%arg0: i32, %arg1: memref<18x288xbf16, #tpu.memory_space<vmem>>, %arg2: memref<288x256xbf16, #tpu.memory_space<vmem>>, %arg3: memref<18x1xf32, #tpu.memory_space<vmem>>, %arg4: memref<18x256xf32, #tpu.memory_space<vmem>>) attributes {dimension_semantics = [#tpu.dimension_semantics<parallel>], iteration_bounds = array<i64: 2>, scalar_prefetch = 0 : i64, scratch_operands = 0 : i64, tpu.core_type = #tpu.core_type<tc>, window_params = [{pipeline_mode = #tpu.pipeline_mode<synchronous>, transform_indices = @transform_0, window_bounds = array<i64: 18, 288>}, {transform_indices = @transform_1, window_bounds = array<i64: 288, 256>}, {pipeline_mode = #tpu.pipeline_mode<synchronous>, transform_indices = @transform_2, window_bounds = array<i64: 18, 1>}, {transform_indices = @transform_3, window_bounds = array<i64: 18, 256>}]} {
    %c0 = arith.constant 0 : index
    %c0_0 = arith.constant 0 : index
    %0 = vector.load %arg1[%c0, %c0_0] : memref<18x288xbf16, #tpu.memory_space<vmem>>, vector<18x288xbf16>
    %c0_1 = arith.constant 0 : index
    %c0_2 = arith.constant 0 : index
    %1 = vector.load %arg2[%c0_1, %c0_2] : memref<288x256xbf16, #tpu.memory_space<vmem>>, vector<288x256xbf16>
    %cst = arith.constant dense<0.000000e+00> : vector<18x256xf32>
    %2 = tpu.matmul %0, %1, %cst {dimension_numbers = #tpu.dot_dimension_numbers<[1], [0], [0], [1], [0, 0, 1, 1], [], []>} : vector<18x288xbf16>, vector<288x256xbf16>, vector<18x256xf32> -> vector<18x256xf32>
    %c0_3 = arith.constant 0 : index
    %c0_4 = arith.constant 0 : index
    %3 = vector.load %arg3[%c0_3, %c0_4] : memref<18x1xf32, #tpu.memory_space<vmem>>, vector<18x1xf32>
    %4 = vector.broadcast %3 : vector<18x1xf32> to vector<18x256xf32>
    %5 = arith.addf %2, %4 : vector<18x256xf32>
    %c0_5 = arith.constant 0 : index
    %c0_6 = arith.constant 0 : index
    %6 = vector.load %arg4[%c0_5, %c0_6] : memref<18x256xf32, #tpu.memory_space<vmem>>, vector<18x256xf32>
    tpu.vector_store %arg4[%c0_5, %c0_6], %5 {strides = array<i32>} : memref<18x256xf32, #tpu.memory_space<vmem>>, vector<18x256xf32>,
    return
  }
  func.func @transform_0(%arg0: i32) -> (i32, i32) {
    %c0_i32 = arith.constant 0 : i32
    %c0_i32_0 = arith.constant 0 : i32
    %c0_i32_1 = arith.constant 0 : i32
    return %c0_i32, %c0_i32_0 : i32, i32
  }
  func.func @transform_1(%arg0: i32) -> (i32, i32) {
    %c0_i32 = arith.constant 0 : i32
    %c0_i32_0 = arith.constant 0 : i32
    return %c0_i32, %arg0 : i32, i32
  }
  func.func @transform_2(%arg0: i32) -> (i32, i32) {
    %c0_i32 = arith.constant 0 : i32
    %c0_i32_0 = arith.constant 0 : i32
    %c0_i32_1 = arith.constant 0 : i32
    return %c0_i32, %c0_i32_0 : i32, i32
  }
  func.func @transform_3(%arg0: i32) -> (i32, i32) {
    %c0_i32 = arith.constant 0 : i32
    %c0_i32_0 = arith.constant 0 : i32
    return %c0_i32, %arg0 : i32, i32
  }
}

module attributes {stable_mosaic.version = 11 : i64} {
  func.func @_conv_mm_kernel(%arg0: i32, %arg1: memref<32x288xbf16, #tpu.memory_space<vmem>>, %arg2: memref<288x256xbf16, #tpu.memory_space<vmem>>, %arg3: memref<32x1xf32, #tpu.memory_space<vmem>>, %arg4: memref<32x256xf32, #tpu.memory_space<vmem>>) attributes {dimension_semantics = [#tpu.dimension_semantics<parallel>], iteration_bounds = array<i64: 2>, scalar_prefetch = 0 : i64, scratch_operands = 0 : i64, tpu.core_type = #tpu.core_type<tc>, window_params = [{pipeline_mode = #tpu.pipeline_mode<synchronous>, transform_indices = @transform_0, window_bounds = array<i64: 32, 288>}, {transform_indices = @transform_1, window_bounds = array<i64: 288, 256>}, {pipeline_mode = #tpu.pipeline_mode<synchronous>, transform_indices = @transform_2, window_bounds = array<i64: 32, 1>}, {transform_indices = @transform_3, window_bounds = array<i64: 32, 256>}]} {
    %c0 = arith.constant 0 : index
    %c0_0 = arith.constant 0 : index
    %0 = vector.load %arg1[%c0, %c0_0] : memref<32x288xbf16, #tpu.memory_space<vmem>>, vector<32x288xbf16>
    %c0_1 = arith.constant 0 : index
    %c0_2 = arith.constant 0 : index
    %1 = vector.load %arg2[%c0_1, %c0_2] : memref<288x256xbf16, #tpu.memory_space<vmem>>, vector<288x256xbf16>
    %cst = arith.constant dense<0.000000e+00> : vector<32x256xf32>
    %2 = tpu.matmul %0, %1, %cst {dimension_numbers = #tpu.dot_dimension_numbers<[1], [0], [0], [1], [0, 0, 1, 1], [], []>} : vector<32x288xbf16>, vector<288x256xbf16>, vector<32x256xf32> -> vector<32x256xf32>
    %c0_3 = arith.constant 0 : index
    %c0_4 = arith.constant 0 : index
    %3 = vector.load %arg3[%c0_3, %c0_4] : memref<32x1xf32, #tpu.memory_space<vmem>>, vector<32x1xf32>
    %4 = vector.broadcast %3 : vector<32x1xf32> to vector<32x256xf32>
    %5 = arith.addf %2, %4 : vector<32x256xf32>
    %c0_5 = arith.constant 0 : index
    %c0_6 = arith.constant 0 : index
    %6 = vector.load %arg4[%c0_5, %c0_6] : memref<32x256xf32, #tpu.memory_space<vmem>>, vector<32x256xf32>
    tpu.vector_store %arg4[%c0_5, %c0_6], %5 {strides = array<i32>} : memref<32x256xf32, #tpu.memory_space<vmem>>, vector<32x256xf32>,
    return
  }
  func.func @transform_0(%arg0: i32) -> (i32, i32) {
    %c0_i32 = arith.constant 0 : i32
    %c0_i32_0 = arith.constant 0 : i32
    %c0_i32_1 = arith.constant 0 : i32
    return %c0_i32, %c0_i32_0 : i32, i32
  }
  func.func @transform_1(%arg0: i32) -> (i32, i32) {
    %c0_i32 = arith.constant 0 : i32
    %c0_i32_0 = arith.constant 0 : i32
    return %c0_i32, %arg0 : i32, i32
  }
  func.func @transform_2(%arg0: i32) -> (i32, i32) {
    %c0_i32 = arith.constant 0 : i32
    %c0_i32_0 = arith.constant 0 : i32
    %c0_i32_1 = arith.constant 0 : i32
    return %c0_i32, %c0_i32_0 : i32, i32
  }
  func.func @transform_3(%arg0: i32) -> (i32, i32) {
    %c0_i32 = arith.constant 0 : i32
    %c0_i32_0 = arith.constant 0 : i32
    return %c0_i32, %arg0 : i32, i32
  }
}

module attributes {stable_mosaic.version = 11 : i64} {
  func.func @_conv_mm_kernel(%arg0: i32, %arg1: memref<32x160xbf16, #tpu.memory_space<vmem>>, %arg2: memref<160x256xbf16, #tpu.memory_space<vmem>>, %arg3: memref<32x1xf32, #tpu.memory_space<vmem>>, %arg4: memref<32x256xf32, #tpu.memory_space<vmem>>) attributes {dimension_semantics = [#tpu.dimension_semantics<parallel>], iteration_bounds = array<i64: 2>, scalar_prefetch = 0 : i64, scratch_operands = 0 : i64, tpu.core_type = #tpu.core_type<tc>, window_params = [{pipeline_mode = #tpu.pipeline_mode<synchronous>, transform_indices = @transform_0, window_bounds = array<i64: 32, 160>}, {transform_indices = @transform_1, window_bounds = array<i64: 160, 256>}, {pipeline_mode = #tpu.pipeline_mode<synchronous>, transform_indices = @transform_2, window_bounds = array<i64: 32, 1>}, {transform_indices = @transform_3, window_bounds = array<i64: 32, 256>}]} {
    %c0 = arith.constant 0 : index
    %c0_0 = arith.constant 0 : index
    %0 = vector.load %arg1[%c0, %c0_0] : memref<32x160xbf16, #tpu.memory_space<vmem>>, vector<32x160xbf16>
    %c0_1 = arith.constant 0 : index
    %c0_2 = arith.constant 0 : index
    %1 = vector.load %arg2[%c0_1, %c0_2] : memref<160x256xbf16, #tpu.memory_space<vmem>>, vector<160x256xbf16>
    %cst = arith.constant dense<0.000000e+00> : vector<32x256xf32>
    %2 = tpu.matmul %0, %1, %cst {dimension_numbers = #tpu.dot_dimension_numbers<[1], [0], [0], [1], [0, 0, 1, 1], [], []>} : vector<32x160xbf16>, vector<160x256xbf16>, vector<32x256xf32> -> vector<32x256xf32>
    %c0_3 = arith.constant 0 : index
    %c0_4 = arith.constant 0 : index
    %3 = vector.load %arg3[%c0_3, %c0_4] : memref<32x1xf32, #tpu.memory_space<vmem>>, vector<32x1xf32>
    %4 = vector.broadcast %3 : vector<32x1xf32> to vector<32x256xf32>
    %5 = arith.addf %2, %4 : vector<32x256xf32>
    %c0_5 = arith.constant 0 : index
    %c0_6 = arith.constant 0 : index
    %6 = vector.load %arg4[%c0_5, %c0_6] : memref<32x256xf32, #tpu.memory_space<vmem>>, vector<32x256xf32>
    tpu.vector_store %arg4[%c0_5, %c0_6], %5 {strides = array<i32>} : memref<32x256xf32, #tpu.memory_space<vmem>>, vector<32x256xf32>,
    return
  }
  func.func @transform_0(%arg0: i32) -> (i32, i32) {
    %c0_i32 = arith.constant 0 : i32
    %c0_i32_0 = arith.constant 0 : i32
    %c0_i32_1 = arith.constant 0 : i32
    return %c0_i32, %c0_i32_0 : i32, i32
  }
  func.func @transform_1(%arg0: i32) -> (i32, i32) {
    %c0_i32 = arith.constant 0 : i32
    %c0_i32_0 = arith.constant 0 : i32
    return %c0_i32, %arg0 : i32, i32
  }
  func.func @transform_2(%arg0: i32) -> (i32, i32) {
    %c0_i32 = arith.constant 0 : i32
    %c0_i32_0 = arith.constant 0 : i32
    %c0_i32_1 = arith.constant 0 : i32
    return %c0_i32, %c0_i32_0 : i32, i32
  }
  func.func @transform_3(%arg0: i32) -> (i32, i32) {
    %c0_i32 = arith.constant 0 : i32
    %c0_i32_0 = arith.constant 0 : i32
    return %c0_i32, %arg0 : i32, i32
  }
}

module attributes {stable_mosaic.version = 11 : i64} {
  func.func @_conv_mm_fused_kernel(%arg0: i32, %arg1: memref<32x160xbf16, #tpu.memory_space<vmem>>, %arg2: memref<160x256xbf16, #tpu.memory_space<vmem>>, %arg3: memref<32x1xf32, #tpu.memory_space<vmem>>, %arg4: memref<32x256xf32, #tpu.memory_space<vmem>>, %arg5: memref<32x256xf32, #tpu.memory_space<vmem>>, %arg6: memref<32x256xf32, #tpu.memory_space<vmem>>) attributes {dimension_semantics = [#tpu.dimension_semantics<parallel>], iteration_bounds = array<i64: 2>, scalar_prefetch = 0 : i64, scratch_operands = 0 : i64, tpu.core_type = #tpu.core_type<tc>, window_params = [{pipeline_mode = #tpu.pipeline_mode<synchronous>, transform_indices = @transform_0, window_bounds = array<i64: 32, 160>}, {transform_indices = @transform_1, window_bounds = array<i64: 160, 256>}, {pipeline_mode = #tpu.pipeline_mode<synchronous>, transform_indices = @transform_2, window_bounds = array<i64: 32, 1>}, {transform_indices = @transform_3, window_bounds = array<i64: 32, 256>}, {transform_indices = @transform_4, window_bounds = array<i64: 32, 256>}, {transform_indices = @transform_5, window_bounds = array<i64: 32, 256>}]} {
    %c0 = arith.constant 0 : index
    %c0_0 = arith.constant 0 : index
    %0 = vector.load %arg1[%c0, %c0_0] : memref<32x160xbf16, #tpu.memory_space<vmem>>, vector<32x160xbf16>
    %c0_1 = arith.constant 0 : index
    %c0_2 = arith.constant 0 : index
    %1 = vector.load %arg2[%c0_1, %c0_2] : memref<160x256xbf16, #tpu.memory_space<vmem>>, vector<160x256xbf16>
    %cst = arith.constant dense<0.000000e+00> : vector<32x256xf32>
    %2 = tpu.matmul %0, %1, %cst {dimension_numbers = #tpu.dot_dimension_numbers<[1], [0], [0], [1], [0, 0, 1, 1], [], []>} : vector<32x160xbf16>, vector<160x256xbf16>, vector<32x256xf32> -> vector<32x256xf32>
    %c0_3 = arith.constant 0 : index
    %c0_4 = arith.constant 0 : index
    %3 = vector.load %arg3[%c0_3, %c0_4] : memref<32x1xf32, #tpu.memory_space<vmem>>, vector<32x1xf32>
    %4 = vector.broadcast %3 : vector<32x1xf32> to vector<32x256xf32>
    %5 = arith.addf %2, %4 : vector<32x256xf32>
    %c0_5 = arith.constant 0 : index
    %c0_6 = arith.constant 0 : index
    %6 = vector.load %arg4[%c0_5, %c0_6] : memref<32x256xf32, #tpu.memory_space<vmem>>, vector<32x256xf32>
    %7 = arith.mulf %5, %6 : vector<32x256xf32>
    %c0_7 = arith.constant 0 : index
    %c0_8 = arith.constant 0 : index
    %8 = vector.load %arg5[%c0_7, %c0_8] : memref<32x256xf32, #tpu.memory_space<vmem>>, vector<32x256xf32>
    %9 = arith.mulf %7, %8 : vector<32x256xf32>
    %c0_9 = arith.constant 0 : index
    %c0_10 = arith.constant 0 : index
    %10 = vector.load %arg6[%c0_9, %c0_10] : memref<32x256xf32, #tpu.memory_space<vmem>>, vector<32x256xf32>
    tpu.vector_store %arg6[%c0_9, %c0_10], %9 {strides = array<i32>} : memref<32x256xf32, #tpu.memory_space<vmem>>, vector<32x256xf32>,
    return
  }
  func.func @transform_0(%arg0: i32) -> (i32, i32) {
    %c0_i32 = arith.constant 0 : i32
    %c0_i32_0 = arith.constant 0 : i32
    %c0_i32_1 = arith.constant 0 : i32
    return %c0_i32, %c0_i32_0 : i32, i32
  }
  func.func @transform_1(%arg0: i32) -> (i32, i32) {
    %c0_i32 = arith.constant 0 : i32
    %c0_i32_0 = arith.constant 0 : i32
    return %c0_i32, %arg0 : i32, i32
  }
  func.func @transform_2(%arg0: i32) -> (i32, i32) {
    %c0_i32 = arith.constant 0 : i32
    %c0_i32_0 = arith.constant 0 : i32
    %c0_i32_1 = arith.constant 0 : i32
    return %c0_i32, %c0_i32_0 : i32, i32
  }
  func.func @transform_3(%arg0: i32) -> (i32, i32) {
    %c0_i32 = arith.constant 0 : i32
    %c0_i32_0 = arith.constant 0 : i32
    return %c0_i32, %arg0 : i32, i32
  }
  func.func @transform_4(%arg0: i32) -> (i32, i32) {
    %c0_i32 = arith.constant 0 : i32
    %c0_i32_0 = arith.constant 0 : i32
    return %c0_i32, %arg0 : i32, i32
  }
  func.func @transform_5(%arg0: i32) -> (i32, i32) {
    %c0_i32 = arith.constant 0 : i32
    %c0_i32_0 = arith.constant 0 : i32
    return %c0_i32, %arg0 : i32, i32
  }
}

</mosaic_0001>

<llo_original>
// kernel: cbam_forward.5
$region0: #{cbam_forward.5}
  #allocation0 [shape = 'u32[]', space=smem, size = 0x4, offset = 0x4, fixed_abs, tag = 'smem constant byte address 0x4 - core index']
  #allocation1 [shape = 'u32[144,128]{1,0:T(1,128)}', space=vmem, size = 0x12000, scoped, tag = 'internal scratch']
  %s0 = inlined_call_operand.vmem [shape: f32[64,256], index: 0, kind: input, shape index: {}]
  %s1 = inlined_call_operand.hbm [shape: f32[2,32], index: 1, kind: input, shape index: {}]
  %s2 = inlined_call_operand.hbm [shape: f32[2,1], index: 2, kind: input, shape index: {}]
  %s3 = inlined_call_operand.hbm [shape: f32[32,2], index: 3, kind: input, shape index: {}]
  %s4 = inlined_call_operand.hbm [shape: f32[32,1], index: 4, kind: input, shape index: {}]
  %s5 = inlined_call_operand.vmem [shape: f32[32,512], index: 5, kind: output, shape index: {}]
  %s6 = sld [smem:[#allocation0]]
  $region88: #{cbam_forward.5} parent=0
    _
  %s8 = ssub.s32 1, %s6
  %s9 = scalar_select 0, %s8, %s6
  $region1: #{cbam_forward.5} parent=0
    #allocation2 [shape = 'u8[1024]{0}', space=vmem, size = 0x400, scoped, tag = 'input window, operand 1, single buffered']
    #allocation3 [shape = 's32[2]{0}', space=sflag, size = 0x8, scoped, tag = 'scoped memory for cbam_forward.5']
    #allocation4 [shape = 'u8[1024]{0}', space=vmem, size = 0x400, scoped, tag = 'input window, operand 2, single buffered']
    #allocation5 [shape = 's32[1]{0}', space=sflag, size = 0x4, scoped, tag = 'scoped memory for cbam_forward.5']
    #allocation6 [shape = 'u8[16384]{0}', space=vmem, size = 0x4000, scoped, tag = 'input window, operand 3, single buffered']
    #allocation7 [shape = 'u8[16384]{0}', space=vmem, size = 0x4000, scoped, tag = 'input window, operand 4, single buffered']
    #allocation8 [shape = 's32[1]{0}', space=sflag, size = 0x4, scoped, tag = 'scoped memory for cbam_forward.5']
    #allocation9 [shape = 'u8[65536]{0}', space=vmem, size = 0x10000, scoped, tag = 'output window, operand 0']
    %10 = vsyncpa [#allocation3], 0
    %11 = vsyncpa [#allocation5], 0
    %12 = vsyncpa [#allocation8], 0
    loop: start=0, step=1, limit=4
    $region2: #{cbam_forward.5} parent=1 // loop_pre_header
      _
    $region3: #{cbam_forward.5} parent=1 // loop_header
      %s14 = sphi 0, %s18
      %p15 = scmp.ge.s32.totalorder %s14, 4
      %s24 = sphi 0, %s26
      %s27 = sphi 0, %s24
      %s28 = sphi 0, %s27
      %s44 = sphi 0, %s28
      %s48 = sphi 0, %s48
      %s50 = sphi 0, %s48
      %s51 = sphi 0, %s50
      %s65 = sphi 0, %s51
      %s69 = sphi 0, %s69
      %s71 = sphi 0, %s69
      %s72 = sphi 0, %s71
      %s86 = sphi 0, %s72
      %s90 = sphi 0, %s90
      %s92 = sphi 0, %s90
      %s93 = sphi 0, %s92
      %s107 = sphi 0, %s93
      %s111 = sphi 0, %s111
      %s113 = sphi 0, %s111
      %s114 = sphi 0, %s113
      %s128 = sphi 0, %s114
      %s134 = sphi 0, %s136
      %s137 = sphi 0, %s134
      %s138 = sphi 0, %s137
      %s154 = sphi 0, %s138
    $region4: #{cbam_forward.5} parent=1 // loop_header_branch
      %17 = sbr.rel (%p15) target = $region8
    $region5: #{cbam_forward.5} parent=1 // loop_body
      %s19 = ssub.s32 %s14, 1
      %s20 = ssub.s32 %s14, 2
      %s21 = sadd.s32 %s14, 1
      %s22 = ssub.s32 %s14, %s21
      %p23 = scmp.eq.s32.totalorder %s22, 0
      %s25 = sadd.s32 %s24, 1
      %s26 = scalar_select %p23, %s24, %s25
      %p29 = pneg %p23
      %p30 = scmp.eq.s32.totalorder %s14, 1
      %p31 = por %p29, %p30
      %p32 = scmp.ne.s32.totalorder %s24, %s27
      %p33 = scmp.eq.s32.totalorder %s14, 0
      %p34 = por %p32, %p33
      %p35 = scmp.ne.s32.totalorder %s24, %s27
      %p36 = scmp.eq.s32.totalorder %s19, 1
      %p37 = por %p35, %p36
      %p38 = scmp.ne.s32.totalorder %s27, %s28
      %p39 = scmp.eq.s32.totalorder %s19, 0
      %p40 = por %p38, %p39
      %p41 = scmp.ne.s32.totalorder %s27, %s28
      %p42 = scmp.eq.s32.totalorder %s20, 1
      %p43 = por %p41, %p42
      %p45 = scmp.ne.s32.totalorder %s28, %s44
      %p46 = scmp.eq.s32.totalorder %s20, 0
      %p47 = por %p45, %p46
      %s49 = sadd.s32 %s48, 1
      %p52 = scmp.eq.s32.totalorder %s14, 1
      %p53 = scmp.ne.s32.totalorder %s48, %s50
      %p54 = scmp.eq.s32.totalorder %s14, 0
      %p55 = por %p53, %p54
      %p56 = scmp.ne.s32.totalorder %s48, %s50
      %p57 = scmp.eq.s32.totalorder %s19, 1
      %p58 = por %p56, %p57
      %p59 = scmp.ne.s32.totalorder %s50, %s51
      %p60 = scmp.eq.s32.totalorder %s19, 0
      %p61 = por %p59, %p60
      %p62 = scmp.ne.s32.totalorder %s50, %s51
      %p63 = scmp.eq.s32.totalorder %s20, 1
      %p64 = por %p62, %p63
      %p66 = scmp.ne.s32.totalorder %s51, %s65
      %p67 = scmp.eq.s32.totalorder %s20, 0
      %p68 = por %p66, %p67
      %s70 = sadd.s32 %s69, 1
      %p73 = scmp.eq.s32.totalorder %s14, 1
      %p74 = scmp.ne.s32.totalorder %s69, %s71
      %p75 = scmp.eq.s32.totalorder %s14, 0
      %p76 = por %p74, %p75
      %p77 = scmp.ne.s32.totalorder %s69, %s71
      %p78 = scmp.eq.s32.totalorder %s19, 1
      %p79 = por %p77, %p78
      %p80 = scmp.ne.s32.totalorder %s71, %s72
      %p81 = scmp.eq.s32.totalorder %s19, 0
      %p82 = por %p80, %p81
      %p83 = scmp.ne.s32.totalorder %s71, %s72
      %p84 = scmp.eq.s32.totalorder %s20, 1
      %p85 = por %p83, %p84
      %p87 = scmp.ne.s32.totalorder %s72, %s86
      %p88 = scmp.eq.s32.totalorder %s20, 0
      %p89 = por %p87, %p88
      %s91 = sadd.s32 %s90, 1
      %p94 = scmp.eq.s32.totalorder %s14, 1
      %p95 = scmp.ne.s32.totalorder %s90, %s92
      %p96 = scmp.eq.s32.totalorder %s14, 0
      %p97 = por %p95, %p96
      %p98 = scmp.ne.s32.totalorder %s90, %s92
      %p99 = scmp.eq.s32.totalorder %s19, 1
      %p100 = por %p98, %p99
      %p101 = scmp.ne.s32.totalorder %s92, %s93
      %p102 = scmp.eq.s32.totalorder %s19, 0
      %p103 = por %p101, %p102
      %p104 = scmp.ne.s32.totalorder %s92, %s93
      %p105 = scmp.eq.s32.totalorder %s20, 1
      %p106 = por %p104, %p105
      %p108 = scmp.ne.s32.totalorder %s93, %s107
      %p109 = scmp.eq.s32.totalorder %s20, 0
      %p110 = por %p108, %p109
      %s112 = sadd.s32 %s111, 1
      %p115 = scmp.eq.s32.totalorder %s14, 1
      %p116 = scmp.ne.s32.totalorder %s111, %s113
      %p117 = scmp.eq.s32.totalorder %s14, 0
      %p118 = por %p116, %p117
      %p119 = scmp.ne.s32.totalorder %s111, %s113
      %p120 = scmp.eq.s32.totalorder %s19, 1
      %p121 = por %p119, %p120
      %p122 = scmp.ne.s32.totalorder %s113, %s114
      %p123 = scmp.eq.s32.totalorder %s19, 0
      %p124 = por %p122, %p123
      %p125 = scmp.ne.s32.totalorder %s113, %s114
      %p126 = scmp.eq.s32.totalorder %s20, 1
      %p127 = por %p125, %p126
      %p129 = scmp.ne.s32.totalorder %s114, %s128
      %p130 = scmp.eq.s32.totalorder %s20, 0
      %p131 = por %p129, %p130
      %s132 = ssub.s32 %s14, %s21
      %p133 = scmp.eq.s32.totalorder %s132, 0
      %s135 = sadd.s32 %s134, 1
      %s136 = scalar_select %p133, %s134, %s135
      %p139 = pneg %p133
      %p140 = scmp.eq.s32.totalorder %s14, 1
      %p141 = por %p139, %p140
      %p142 = scmp.ne.s32.totalorder %s134, %s137
      %p143 = scmp.eq.s32.totalorder %s14, 0
      %p144 = por %p142, %p143
      %p145 = scmp.ne.s32.totalorder %s134, %s137
      %p146 = scmp.eq.s32.totalorder %s19, 1
      %p147 = por %p145, %p146
      %p148 = scmp.ne.s32.totalorder %s137, %s138
      %p149 = scmp.eq.s32.totalorder %s19, 0
      %p150 = por %p148, %p149
      %p151 = scmp.ne.s32.totalorder %s137, %s138
      %p152 = scmp.eq.s32.totalorder %s20, 1
      %p153 = por %p151, %p152
      %p155 = scmp.ne.s32.totalorder %s138, %s154
      %p156 = scmp.eq.s32.totalorder %s20, 0
      %p157 = por %p155, %p156
      %p158 = scmp.le.s32.totalorder 1, %s14
      %p159 = scmp.lt.s32.totalorder %s14, 3
      %p160 = pnand %p158, %p159
      %p161 = pneg %p160
      // Predicated region
      $region9: #{cbam_forward.5} parent=5 // pred_check
        _
      $region10: #{cbam_forward.5} parent=5 // pred_check_branch
        %163 = sbr.rel (%p160) target = $region12
      $region11: #{cbam_forward.5} parent=5 // pred_region
        %s164 = ssub.s32 %s14, 1
        // Predicated region
        $region13: #{cbam_forward.5} parent=11 // pred_check
          %p165 = pneg %p61
        $region14: #{cbam_forward.5} parent=11 // pred_check_branch
          %167 = sbr.rel (%p165) target = $region16
        $region15: #{cbam_forward.5} parent=11 // pred_region
          %s169 = ssub.s32 32, 32
          %170 = vsyncadd [#allocation3], %s169
          %s172 = sshll.u32 [#allocation2], 4
          %s173 = int_to_ptr.vmem [resolvable:$true] %s172
          %175 = dma.hbm_to_vmem [thread:$0]  %s1, 32, %s173, [#allocation3]
        $region16: #{cbam_forward.5} parent=11 // pred_fallthru
          _
        // Predicated region
        $region17: #{cbam_forward.5} parent=11 // pred_check
          %p176 = pneg %p82
        $region18: #{cbam_forward.5} parent=11 // pred_check_branch
          %178 = sbr.rel (%p176) target = $region20
        $region19: #{cbam_forward.5} parent=11 // pred_region
          %s180 = ssub.s32 32, 32
          %181 = vsyncadd [#allocation5], %s180
          %s183 = sshll.u32 [#allocation4], 4
          %s184 = int_to_ptr.vmem [resolvable:$true] %s183
          %186 = dma.hbm_to_vmem [thread:$0]  %s2, 32, %s184, [#allocation5]
        $region20: #{cbam_forward.5} parent=11 // pred_fallthru
          _
        // Predicated region
        $region21: #{cbam_forward.5} parent=11 // pred_check
          %p187 = pneg %p103
        $region22: #{cbam_forward.5} parent=11 // pred_check_branch
          %189 = sbr.rel (%p187) target = $region24
        $region23: #{cbam_forward.5} parent=11 // pred_region
          %s191 = ssub.s32 512, 512
          %192 = vsyncadd [#allocation5], %s191
          %s193 = sshll.u32 [#allocation6], 4
          %s194 = int_to_ptr.vmem [resolvable:$true] %s193
          %199 = dma.hbm_to_vmem [thread:$0]  %s3, 512, %s194, [#allocation5], 128, 128, 8
        $region24: #{cbam_forward.5} parent=11 // pred_fallthru
          _
        // Predicated region
        $region25: #{cbam_forward.5} parent=11 // pred_check
          %p200 = pneg %p124
        $region26: #{cbam_forward.5} parent=11 // pred_check_branch
          %202 = sbr.rel (%p200) target = $region28
        $region27: #{cbam_forward.5} parent=11 // pred_region
          %s204 = ssub.s32 512, 512
          %205 = vsyncadd [#allocation8], %s204
          %s206 = sshll.u32 [#allocation7], 4
          %s207 = int_to_ptr.vmem [resolvable:$true] %s206
          %212 = dma.hbm_to_vmem [thread:$0]  %s4, 512, %s207, [#allocation8], 128, 128, 8
        $region28: #{cbam_forward.5} parent=11 // pred_fallthru
          _
      $region12: #{cbam_forward.5} parent=5 // pred_fallthru
        _
      %p213 = scmp.lt.s32.totalorder %s14, 2
      // Predicated region
      $region29: #{cbam_forward.5} parent=5 // pred_check
        %p214 = pneg %p213
      $region30: #{cbam_forward.5} parent=5 // pred_check_branch
        %216 = sbr.rel (%p214) target = $region32
      $region31: #{cbam_forward.5} parent=5 // pred_region
        // Predicated region
        $region33: #{cbam_forward.5} parent=31 // pred_check
          %p217 = pneg %p34
        $region34: #{cbam_forward.5} parent=31 // pred_check_branch
          %219 = sbr.rel (%p217) target = $region36
        $region35: #{cbam_forward.5} parent=31 // pred_region
          %s220 = smul.u32 4, %s14
          %p221 = scmp.lt.s32.totalorder %s220, 7
          %s222 = scalar_select %p221, %s220, 7
          %s223 = smul.addr %s222, 2
          %s224 = smul.addr %s223, 8
          %s225 = scalar_lea.vmem %s0, %s224
          %s226 = smul.u32 4, %s14
        $region36: #{cbam_forward.5} parent=31 // pred_fallthru
          _
      $region32: #{cbam_forward.5} parent=5 // pred_fallthru
        _
      %p227 = scmp.le.s32.totalorder 1, %s14
      %p228 = scmp.lt.s32.totalorder %s14, 3
      %p229 = pnand %p227, %p228
      %p230 = pneg %p229
      // Predicated region
      $region37: #{cbam_forward.5} parent=5 // pred_check
        _
      $region38: #{cbam_forward.5} parent=5 // pred_check_branch
        %232 = sbr.rel (%p229) target = $region40
      $region39: #{cbam_forward.5} parent=5 // pred_region
        %s233 = ssub.s32 %s14, 1
        // Predicated region
        $region41: #{cbam_forward.5} parent=39 // pred_check
          %p234 = pneg %p61
        $region42: #{cbam_forward.5} parent=39 // pred_check_branch
          %236 = sbr.rel (%p234) target = $region44
        $region43: #{cbam_forward.5} parent=39 // pred_region
          %237 = dma.done [#allocation3], 32
        $region44: #{cbam_forward.5} parent=39 // pred_fallthru
          _
        // Predicated region
        $region45: #{cbam_forward.5} parent=39 // pred_check
          %p238 = pneg %p82
        $region46: #{cbam_forward.5} parent=39 // pred_check_branch
          %240 = sbr.rel (%p238) target = $region48
        $region47: #{cbam_forward.5} parent=39 // pred_region
          %241 = dma.done [#allocation5], 32
        $region48: #{cbam_forward.5} parent=39 // pred_fallthru
          _
        // Predicated region
        $region49: #{cbam_forward.5} parent=39 // pred_check
          %p242 = pneg %p103
        $region50: #{cbam_forward.5} parent=39 // pred_check_branch
          %244 = sbr.rel (%p242) target = $region52
        $region51: #{cbam_forward.5} parent=39 // pred_region
          %245 = dma.done [#allocation5], 512
        $region52: #{cbam_forward.5} parent=39 // pred_fallthru
          _
        // Predicated region
        $region53: #{cbam_forward.5} parent=39 // pred_check
          %p246 = pneg %p124
        $region54: #{cbam_forward.5} parent=39 // pred_check_branch
          %248 = sbr.rel (%p246) target = $region56
        $region55: #{cbam_forward.5} parent=39 // pred_region
          %249 = dma.done [#allocation8], 512
        $region56: #{cbam_forward.5} parent=39 // pred_fallthru
          _
        %s250 = smul.u32 4, %s19
        %p251 = scmp.lt.s32.totalorder %s250, 7
        %s252 = scalar_select %p251, %s250, 7
        %s253 = smul.addr %s252, 2
        %s254 = smul.addr %s253, 8
        %s255 = scalar_lea.vmem %s0, %s254
        %p256 = pneg %p40
        %p257 = pneg %p37
        %p258 = pneg %p61
        %p259 = pneg %p58
        %p260 = pneg %p82
        %p261 = pneg %p79
        %p262 = pneg %p103
        %p263 = pneg %p100
        %p264 = pneg %p124
        %p265 = pneg %p121
        %p266 = pneg %p150
        %p267 = pneg %p147
        %s268 = sand.u32 %s137, 1
        %s269 = sand.u32 %s137, 1
        %s270 = smul.addr %s269, 64
        %s271 = scalar_lea.vmem [#allocation9], %s270
        %s272 = smul.u32 4, %s19
        %p273 = scmp.lt.s32.totalorder %s272, 7
        %s274 = scalar_select %p273, %s272, 7
        %s275 = smul.addr %s274, 2
        %s276 = smul.addr %s275, 8
        %s277 = scalar_lea.vmem %s0, %s276
        %s278 = smul.u32 4, %s19
        %s279 = smul.u32 2, %s19
        %v280 = vld [vmem:[%s277] sm:$0xff]
        %v281 = vld [vmem:[%s277 + $0x8] sm:$0xff]
        %v282 = vld [vmem:[%s277 + $0x10] sm:$0xff]
        %v283 = vld [vmem:[%s277 + $0x18] sm:$0xff]
        %v284 = vld [vmem:[%s277 + $0x20] sm:$0xff]
        %v285 = vld [vmem:[%s277 + $0x28] sm:$0xff]
        %v286 = vld [vmem:[%s277 + $0x30] sm:$0xff]
        %v287 = vld [vmem:[%s277 + $0x38] sm:$0xff]
        %v288 = vadd.f32 %v280, %v281
        %289 = vadd.xlane.f32.xlu0 %v288
        %v290 = vpop.xlane.xlu0 %289
        %v291 = vadd.f32 %v282, %v283
        %292 = vadd.xlane.f32.xlu0 %v291
        %v293 = vpop.xlane.xlu0 %292
        %v294 = vadd.f32 %v284, %v285
        %295 = vadd.xlane.f32.xlu0 %v294
        %v296 = vpop.xlane.xlu0 %295
        %v297 = vadd.f32 %v286, %v287
        %298 = vadd.xlane.f32.xlu0 %v297
        %v299 = vpop.xlane.xlu0 %298
        %v300 = vrcp.pop 256.0
        %v301 = vmul.f32 %v290, %v300
        %v302 = vmul.f32 %v293, %v300
        %v303 = vmul.f32 %v296, %v300
        %v304 = vmul.f32 %v299, %v300
        %v305 = vld [vmem:[#allocation2] sm:$0x3]
        %v306 = vld [vmem:[#allocation4] sm:$0x3]
        %vm307 = vcmask 261120
        %v309 = vsel %vm307, %v305, 0
        %311 = vmatprep.subr.mxu0 0.0
        %312 = vmatpush1.msra.mxu0 %v301
        %313 = vmatprep.subr.mxu0 0.0
        %314 = vmatpush1.msra.mxu0 %v302
        %315 = vmatprep.subr.mxu0 0.0
        %316 = vmatpush1.msra.mxu0 %v303
        %317 = vmatprep.subr.mxu0 0.0
        %318 = vmatpush1.msra.mxu0 %v304
        %319 = vmatprep.subr.mxu0 0.0
        %320 = vmatpush1.msra.mxu0 0.0
        %321 = vmatprep.subr.mxu0 0.0
        %322 = vmatpush1.msra.mxu0 0.0
        %323 = vmatprep.subr.mxu0 0.0
        %324 = vmatpush1.msra.mxu0 0.0
        %325 = vmatprep.subr.mxu0 0.0
        %326 = vmatpush1.msra.mxu0 0.0
        %327 = vmatprep.subr.mxu0 0.0
        %328 = vmatpush1.msra.mxu0 0.0
        %329 = vmatprep.subr.mxu0 0.0
        %330 = vmatpush1.msra.mxu0 0.0
        %331 = vmatprep.subr.mxu0 0.0
        %332 = vmatpush1.msra.mxu0 0.0
        %333 = vmatprep.subr.mxu0 0.0
        %334 = vmatpush1.msra.mxu0 0.0
        %335 = vmatprep.subr.mxu0 0.0
        %336 = vmatpush1.msra.mxu0 0.0
        %337 = vmatprep.subr.mxu0 0.0
        %338 = vmatpush1.msra.mxu0 0.0
        %339 = vmatprep.subr.mxu0 0.0
        %340 = vmatpush1.msra.mxu0 0.0
        %341 = vmatprep.subr.mxu0 0.0
        %342 = vmatpush1.msra.mxu0 0.0
        %343 = vmatprep.subr.mxu0 0.0
        %344 = vmatpush1.msra.mxu0 0.0
        %345 = vmatprep.subr.mxu0 0.0
        %346 = vmatpush1.msra.mxu0 0.0
        %347 = vmatprep.subr.mxu0 0.0
        %348 = vmatpush1.msra.mxu0 0.0
        %349 = vmatprep.subr.mxu0 0.0
        %350 = vmatpush1.msra.mxu0 0.0
        %351 = vmatprep.subr.mxu0 0.0
        %352 = vmatpush1.msra.mxu0 0.0
        %353 = vmatprep.subr.mxu0 0.0
        %354 = vmatpush1.msra.mxu0 0.0
        %355 = vmatprep.subr.mxu0 0.0
        %356 = vmatpush1.msra.mxu0 0.0
        %357 = vmatprep.subr.mxu0 0.0
        %358 = vmatpush1.msra.mxu0 0.0
        %359 = vmatprep.subr.mxu0 0.0
        %360 = vmatpush1.msra.mxu0 0.0
        %361 = vmatprep.subr.mxu0 0.0
        %362 = vmatpush1.msra.mxu0 0.0
        %363 = vmatprep.subr.mxu0 0.0
        %364 = vmatpush1.msra.mxu0 0.0
        %365 = vmatprep.subr.mxu0 0.0
        %366 = vmatpush1.msra.mxu0 0.0
        %367 = vmatprep.subr.mxu0 0.0
        %368 = vmatpush1.msra.mxu0 0.0
        %369 = vmatprep.subr.mxu0 0.0
        %370 = vmatpush1.msra.mxu0 0.0
        %371 = vmatprep.subr.mxu0 0.0
        %372 = vmatpush1.msra.mxu0 0.0
        %373 = vmatprep.subr.mxu0 0.0
        %374 = vmatpush1.msra.mxu0 0.0
        %375 = vmatprep.mubr.f32.mxu0 0.0
        %376 = vmatmul.mubr.f32.gmra.mrb[0].mxu0 %v309
        %v377 = vpop.f32.mrb[0].mxu0
        %v378 = vadd.f32 %v306, %v377
        %v379 = vpop.f32.mrb[0].mxu0
        %380 = vdwg.mxu0
        %v381 = vmax.f32 %v378, 0.0
        %v382 = vld [vmem:[#allocation6] sm:$0xff]
        %v383 = vld [vmem:[#allocation6 + $0x8] sm:$0xff]
        %v384 = vld [vmem:[#allocation6 + $0x10] sm:$0xff]
        %v385 = vld [vmem:[#allocation6 + $0x18] sm:$0xff]
        %v386 = vld [vmem:[#allocation7] sm:$0xff]
        %v387 = vld [vmem:[#allocation7 + $0x8] sm:$0xff]
        %v388 = vld [vmem:[#allocation7 + $0x10] sm:$0xff]
        %v389 = vld [vmem:[#allocation7 + $0x18] sm:$0xff]
        %vm390 = vcmask 15360
        %v392 = vsel %vm390, %v382, 0
        %v395 = vsel %vm390, %v383, 0
        %v398 = vsel %vm390, %v384, 0
        %v401 = vsel %vm390, %v385, 0
        %vm403 = vcmask 1041408
        %v405 = vsel %vm403, %v381, 0
        %407 = vmatprep.subr.mxu0 0.0
        %408 = vmatpush1.msra.mxu0 %v405
        %409 = vmatprep.subr.mxu0 0.0
        %410 = vmatpush1.msra.mxu0 0.0
        %411 = vmatprep.subr.mxu0 0.0
        %412 = vmatpush1.msra.mxu0 0.0
        %413 = vmatprep.subr.mxu0 0.0
        %414 = vmatpush1.msra.mxu0 0.0
        %415 = vmatprep.subr.mxu0 0.0
        %416 = vmatpush1.msra.mxu0 0.0
        %417 = vmatprep.subr.mxu0 0.0
        %418 = vmatpush1.msra.mxu0 0.0
        %419 = vmatprep.subr.mxu0 0.0
        %420 = vmatpush1.msra.mxu0 0.0
        %421 = vmatprep.subr.mxu0 0.0
        %422 = vmatpush1.msra.mxu0 0.0
        %423 = vmatprep.subr.mxu0 0.0
        %424 = vmatpush1.msra.mxu0 0.0
        %425 = vmatprep.subr.mxu0 0.0
        %426 = vmatpush1.msra.mxu0 0.0
        %427 = vmatprep.subr.mxu0 0.0
        %428 = vmatpush1.msra.mxu0 0.0
        %429 = vmatprep.subr.mxu0 0.0
        %430 = vmatpush1.msra.mxu0 0.0
        %431 = vmatprep.subr.mxu0 0.0
        %432 = vmatpush1.msra.mxu0 0.0
        %433 = vmatprep.subr.mxu0 0.0
        %434 = vmatpush1.msra.mxu0 0.0
        %435 = vmatprep.subr.mxu0 0.0
        %436 = vmatpush1.msra.mxu0 0.0
        %437 = vmatprep.subr.mxu0 0.0
        %438 = vmatpush1.msra.mxu0 0.0
        %439 = vmatprep.subr.mxu0 0.0
        %440 = vmatpush1.msra.mxu0 0.0
        %441 = vmatprep.subr.mxu0 0.0
        %442 = vmatpush1.msra.mxu0 0.0
        %443 = vmatprep.subr.mxu0 0.0
        %444 = vmatpush1.msra.mxu0 0.0
        %445 = vmatprep.subr.mxu0 0.0
        %446 = vmatpush1.msra.mxu0 0.0
        %447 = vmatprep.subr.mxu0 0.0
        %448 = vmatpush1.msra.mxu0 0.0
        %449 = vmatprep.subr.mxu0 0.0
        %450 = vmatpush1.msra.mxu0 0.0
        %451 = vmatprep.subr.mxu0 0.0
        %452 = vmatpush1.msra.mxu0 0.0
        %453 = vmatprep.subr.mxu0 0.0
        %454 = vmatpush1.msra.mxu0 0.0
        %455 = vmatprep.subr.mxu0 0.0
        %456 = vmatpush1.msra.mxu0 0.0
        %457 = vmatprep.subr.mxu0 0.0
        %458 = vmatpush1.msra.mxu0 0.0
        %459 = vmatprep.subr.mxu0 0.0
        %460 = vmatpush1.msra.mxu0 0.0
        %461 = vmatprep.subr.mxu0 0.0
        %462 = vmatpush1.msra.mxu0 0.0
        %463 = vmatprep.subr.mxu0 0.0
        %464 = vmatpush1.msra.mxu0 0.0
        %465 = vmatprep.subr.mxu0 0.0
        %466 = vmatpush1.msra.mxu0 0.0
        %467 = vmatprep.subr.mxu0 0.0
        %468 = vmatpush1.msra.mxu0 0.0
        %469 = vmatprep.subr.mxu0 0.0
        %470 = vmatpush1.msra.mxu0 0.0
        %471 = vmatprep.mubr.f32.mxu0 0.0
        %472 = vmatmul.mubr.f32.gmra.mrb[0].mxu0 %v392
        %v473 = vpop.f32.mrb[0].mxu0
        %v474 = vadd.f32 %v386, %v473
        %v475 = vpop.f32.mrb[0].mxu0
        %476 = vmatprep.mubr.f32.mxu0 0.0
        %477 = vmatmul.mubr.f32.gmra.mrb[0].mxu0 %v395
        %v478 = vpop.f32.mrb[0].mxu0
        %v479 = vadd.f32 %v387, %v478
        %v480 = vpop.f32.mrb[0].mxu0
        %481 = vmatprep.mubr.f32.mxu0 0.0
        %482 = vmatmul.mubr.f32.gmra.mrb[0].mxu0 %v398
        %v483 = vpop.f32.mrb[0].mxu0
        %v484 = vadd.f32 %v388, %v483
        %v485 = vpop.f32.mrb[0].mxu0
        %486 = vmatprep.mubr.f32.mxu0 0.0
        %487 = vmatmul.mubr.f32.gmra.mrb[0].mxu0 %v401
        %v488 = vpop.f32.mrb[0].mxu0
        %v489 = vadd.f32 %v389, %v488
        %v490 = vpop.f32.mrb[0].mxu0
        %491 = vdwg.mxu0
        %v492 = vxor.u32 %v474, 2147483648
        %v493 = vxor.u32 %v479, 2147483648
        %v494 = vxor.u32 %v484, 2147483648
        %v495 = vxor.u32 %v489, 2147483648
        %v496 = vmul.f32 %v492, 1.442695
        %v497 = vpow.pop %v496
        %v498 = vmul.f32 %v493, 1.442695
        %v499 = vpow.pop %v498
        %v500 = vmul.f32 %v494, 1.442695
        %v501 = vpow.pop %v500
        %v502 = vmul.f32 %v495, 1.442695
        %v503 = vpow.pop %v502
        %v504 = vadd.f32 %v497, 1.0
        %v505 = vadd.f32 %v499, 1.0
        %v506 = vadd.f32 %v501, 1.0
        %v507 = vadd.f32 %v503, 1.0
        %v508 = vrcp.pop %v504
        %v509 = vmul.f32 1.0, %v508
        %v510 = vrcp.pop %v505
        %v511 = vmul.f32 1.0, %v510
        %v512 = vrcp.pop %v506
        %v513 = vmul.f32 1.0, %v512
        %v514 = vrcp.pop %v507
        %v515 = vmul.f32 1.0, %v514
        %517 = vset.pattern.permute.xlu0 0
        %518 = vperm.xlu0 %517, %v509
        %v519 = vpop.permute.xlu0 %518
        %522 = vset.pattern.permute.xlu0 0
        %523 = vperm.xlu0 %522, %v511
        %v524 = vpop.permute.xlu0 %523
        %527 = vset.pattern.permute.xlu0 0
        %528 = vperm.xlu0 %527, %v513
        %v529 = vpop.permute.xlu0 %528
        %532 = vset.pattern.permute.xlu0 0
        %533 = vperm.xlu0 %532, %v515
        %v534 = vpop.permute.xlu0 %533
        %v536 = vmul.f32 %v280, %v519
        %v537 = vmul.f32 %v281, %v519
        %v538 = vmul.f32 %v282, %v524
        %v539 = vmul.f32 %v283, %v524
        %v540 = vmul.f32 %v284, %v529
        %v541 = vmul.f32 %v285, %v529
        %v542 = vmul.f32 %v286, %v534
        %v543 = vmul.f32 %v287, %v534
        %544 = vst [vmem:[%s271] sm:$0xff] %v536
        %545 = vst [vmem:[%s271 + $0x8] sm:$0xff] %v537
        %546 = vst [vmem:[%s271 + $0x10] sm:$0xff] %v538
        %547 = vst [vmem:[%s271 + $0x18] sm:$0xff] %v539
        %548 = vst [vmem:[%s271 + $0x20] sm:$0xff] %v540
        %549 = vst [vmem:[%s271 + $0x28] sm:$0xff] %v541
        %550 = vst [vmem:[%s271 + $0x30] sm:$0xff] %v542
        %551 = vst [vmem:[%s271 + $0x38] sm:$0xff] %v543
        %s552 = sand.u32 %s137, 1
        %s553 = sand.u32 %s137, 1
        %s554 = smul.addr %s553, 64
        %s555 = scalar_lea.vmem [#allocation9], %s554
        // Predicated region
        $region57: #{cbam_forward.5} parent=39 // pred_check
          %p556 = pneg %p147
        $region58: #{cbam_forward.5} parent=39 // pred_check_branch
          %558 = sbr.rel (%p556) target = $region60
        $region59: #{cbam_forward.5} parent=39 // pred_region
          %s559 = smul.u32 2, %s19
          %s560 = smul.addr %s559, 8
          %s561 = scalar_lea.vmem %s5, %s560
          // Predicated region
          $region61: #{cbam_forward.5} parent=59 // pred_check
            _
          $region62: #{cbam_forward.5} parent=59 // pred_check_branch
            %563 = sbr.rel (0) target = $region64
          $region63: #{cbam_forward.5} parent=59 // pred_region
            // Predicated region
            $region65: #{cbam_forward.5} parent=63 // pred_check
              _
            $region66: #{cbam_forward.5} parent=63 // pred_check_branch
              %565 = sbr.rel (0) target = $region68
            $region67: #{cbam_forward.5} parent=63 // pred_region
              loop: start=0, step=1, limit=1
              $region69: #{cbam_forward.5} parent=67 // loop_pre_header
                _
              $region70: #{cbam_forward.5} parent=67 // loop_header
                %s567 = sphi 0, %s571
                %p568 = scmp.ge.s32.totalorder %s567, 1
                %s572 = sphi %s555, %s555
                %s573 = sphi %s561, %s561
              $region71: #{cbam_forward.5} parent=67 // loop_header_branch
                %570 = sbr.rel (%p568) target = $region75
              $region72: #{cbam_forward.5} parent=67 // loop_body
                %v574 = vld [vmem:[%s572] sm:$0xff]
                %575 = vst [vmem:[%s573] sm:$0xff] %v574
                %v576 = vld [vmem:[%s572 + $0x8] sm:$0xff]
                %577 = vst [vmem:[%s573 + $0x8] sm:$0xff] %v576
                %v578 = vld [vmem:[%s572 + $0x10] sm:$0xff]
                %579 = vst [vmem:[%s573 + $0x20] sm:$0xff] %v578
                %v580 = vld [vmem:[%s572 + $0x18] sm:$0xff]
                %581 = vst [vmem:[%s573 + $0x28] sm:$0xff] %v580
                %v582 = vld [vmem:[%s572 + $0x20] sm:$0xff]
                %583 = vst [vmem:[%s573 + $0x40] sm:$0xff] %v582
                %v584 = vld [vmem:[%s572 + $0x28] sm:$0xff]
                %585 = vst [vmem:[%s573 + $0x48] sm:$0xff] %v584
                %v586 = vld [vmem:[%s572 + $0x30] sm:$0xff]
                %587 = vst [vmem:[%s573 + $0x60] sm:$0xff] %v586
                %v588 = vld [vmem:[%s572 + $0x38] sm:$0xff]
                %589 = vst [vmem:[%s573 + $0x68] sm:$0xff] %v588
              $region73: #{cbam_forward.5} parent=67 // loop_footer
                %s571 = sadd.s32 1, %s567
              $region74: #{cbam_forward.5} parent=67 // loop_footer_branch
                %566 = sbr.rel target = $region70
              $region75: #{cbam_forward.5} parent=67 // loop_exit
                _
            $region68: #{cbam_forward.5} parent=63 // pred_fallthru
              _
            // Predicated region
            $region76: #{cbam_forward.5} parent=63 // pred_check
              _
            $region77: #{cbam_forward.5} parent=63 // pred_check_branch
              %591 = sbr.rel target = $region79
            $region78: #{cbam_forward.5} parent=63 // pred_region
              _
            $region79: #{cbam_forward.5} parent=63 // pred_fallthru
              _
          $region64: #{cbam_forward.5} parent=59 // pred_fallthru
            _
          %592 = vnop
        $region60: #{cbam_forward.5} parent=39 // pred_fallthru
          _
      $region40: #{cbam_forward.5} parent=5 // pred_fallthru
        _
      %p593 = scmp.le.s32.totalorder 2, %s14
      // Predicated region
      $region80: #{cbam_forward.5} parent=5 // pred_check
        %p594 = pneg %p593
      $region81: #{cbam_forward.5} parent=5 // pred_check_branch
        %596 = sbr.rel (%p594) target = $region83
      $region82: #{cbam_forward.5} parent=5 // pred_region
        %s597 = ssub.s32 %s14, 2
        // Predicated region
        $region84: #{cbam_forward.5} parent=82 // pred_check
          %p598 = pneg %p153
        $region85: #{cbam_forward.5} parent=82 // pred_check_branch
          %600 = sbr.rel (%p598) target = $region87
        $region86: #{cbam_forward.5} parent=82 // pred_region
          %s601 = sand.u32 %s138, 1
          %s602 = sand.u32 %s138, 1
          %s603 = smul.addr %s602, 64
          %s604 = scalar_lea.vmem [#allocation9], %s603
        $region87: #{cbam_forward.5} parent=82 // pred_fallthru
          _
      $region83: #{cbam_forward.5} parent=5 // pred_fallthru
        _
    $region6: #{cbam_forward.5} parent=1 // loop_footer
      %s18 = sadd.s32 1, %s14
    $region7: #{cbam_forward.5} parent=1 // loop_footer_branch
      %13 = sbr.rel target = $region3
    $region8: #{cbam_forward.5} parent=1 // loop_exit
      _
    %605 = vsyncpa [#allocation3], 1
    %s606 = scalar_lea.sflag [#allocation3], 1
    %607 = vsyncpa %s606, 1
    %608 = vsyncpa [#allocation5], 1
    %609 = vsyncpa [#allocation8], 1

// kernel: cbam_forward.6
$region0: #{cbam_forward.6}
  #allocation0 [shape = 'u32[]', space=smem, size = 0x4, offset = 0x4, fixed_abs, tag = 'smem constant byte address 0x4 - core index']
  #allocation1 [shape = 'u32[144,128]{1,0:T(1,128)}', space=vmem, size = 0x12000, scoped, tag = 'internal scratch']
  %s0 = inlined_call_operand.vmem [shape: bf16[18,288], index: 0, kind: input, shape index: {}]
  %s1 = inlined_call_operand.vmem [shape: bf16[288,512], index: 1, kind: input, shape index: {}]
  %s2 = inlined_call_operand.vmem [shape: f32[18,1], index: 2, kind: input, shape index: {}]
  %s3 = inlined_call_operand.vmem [shape: f32[18,512], index: 3, kind: output, shape index: {}]
  %s4 = sld [smem:[#allocation0]]
  $region102: #{cbam_forward.6} parent=0
    _
  %s6 = ssub.s32 1, %s4
  %s7 = scalar_select 0, %s6, %s4
  $region1: #{cbam_forward.6} parent=0
    #allocation2 [shape = 'u8[294912]{0}', space=vmem, size = 0x48000, scoped, tag = 'input window, operand 1']
    #allocation3 [shape = 'u8[49152]{0}', space=vmem, size = 0xc000, scoped, tag = 'output window, operand 0']
    loop: start=0, step=1, limit=4
    $region2: #{cbam_forward.6} parent=1 // loop_pre_header
      _
    $region3: #{cbam_forward.6} parent=1 // loop_header
      %s9 = sphi 0, %s13
      %p10 = scmp.ge.s32.totalorder %s9, 4
      %s17 = sphi 0, %s17
      %s19 = sphi 0, %s17
      %s20 = sphi 0, %s19
      %s34 = sphi 0, %s20
      %s40 = sphi 0, %s42
      %s43 = sphi 0, %s40
      %s44 = sphi 0, %s43
      %s60 = sphi 0, %s44
      %s64 = sphi 0, %s64
      %s66 = sphi 0, %s64
      %s67 = sphi 0, %s66
      %s81 = sphi 0, %s67
      %s87 = sphi 0, %s89
      %s90 = sphi 0, %s87
      %s91 = sphi 0, %s90
      %s107 = sphi 0, %s91
    $region4: #{cbam_forward.6} parent=1 // loop_header_branch
      %12 = sbr.rel (%p10) target = $region8
    $region5: #{cbam_forward.6} parent=1 // loop_body
      %s14 = ssub.s32 %s9, 1
      %s15 = ssub.s32 %s9, 2
      %s16 = sadd.s32 %s9, 1
      %s18 = sadd.s32 %s17, 1
      %p21 = scmp.eq.s32.totalorder %s9, 1
      %p22 = scmp.ne.s32.totalorder %s17, %s19
      %p23 = scmp.eq.s32.totalorder %s9, 0
      %p24 = por %p22, %p23
      %p25 = scmp.ne.s32.totalorder %s17, %s19
      %p26 = scmp.eq.s32.totalorder %s14, 1
      %p27 = por %p25, %p26
      %p28 = scmp.ne.s32.totalorder %s19, %s20
      %p29 = scmp.eq.s32.totalorder %s14, 0
      %p30 = por %p28, %p29
      %p31 = scmp.ne.s32.totalorder %s19, %s20
      %p32 = scmp.eq.s32.totalorder %s15, 1
      %p33 = por %p31, %p32
      %p35 = scmp.ne.s32.totalorder %s20, %s34
      %p36 = scmp.eq.s32.totalorder %s15, 0
      %p37 = por %p35, %p36
      %s38 = ssub.s32 %s9, %s16
      %p39 = scmp.eq.s32.totalorder %s38, 0
      %s41 = sadd.s32 %s40, 1
      %s42 = scalar_select %p39, %s40, %s41
      %p45 = pneg %p39
      %p46 = scmp.eq.s32.totalorder %s9, 1
      %p47 = por %p45, %p46
      %p48 = scmp.ne.s32.totalorder %s40, %s43
      %p49 = scmp.eq.s32.totalorder %s9, 0
      %p50 = por %p48, %p49
      %p51 = scmp.ne.s32.totalorder %s40, %s43
      %p52 = scmp.eq.s32.totalorder %s14, 1
      %p53 = por %p51, %p52
      %p54 = scmp.ne.s32.totalorder %s43, %s44
      %p55 = scmp.eq.s32.totalorder %s14, 0
      %p56 = por %p54, %p55
      %p57 = scmp.ne.s32.totalorder %s43, %s44
      %p58 = scmp.eq.s32.totalorder %s15, 1
      %p59 = por %p57, %p58
      %p61 = scmp.ne.s32.totalorder %s44, %s60
      %p62 = scmp.eq.s32.totalorder %s15, 0
      %p63 = por %p61, %p62
      %s65 = sadd.s32 %s64, 1
      %p68 = scmp.eq.s32.totalorder %s9, 1
      %p69 = scmp.ne.s32.totalorder %s64, %s66
      %p70 = scmp.eq.s32.totalorder %s9, 0
      %p71 = por %p69, %p70
      %p72 = scmp.ne.s32.totalorder %s64, %s66
      %p73 = scmp.eq.s32.totalorder %s14, 1
      %p74 = por %p72, %p73
      %p75 = scmp.ne.s32.totalorder %s66, %s67
      %p76 = scmp.eq.s32.totalorder %s14, 0
      %p77 = por %p75, %p76
      %p78 = scmp.ne.s32.totalorder %s66, %s67
      %p79 = scmp.eq.s32.totalorder %s15, 1
      %p80 = por %p78, %p79
      %p82 = scmp.ne.s32.totalorder %s67, %s81
      %p83 = scmp.eq.s32.totalorder %s15, 0
      %p84 = por %p82, %p83
      %s85 = ssub.s32 %s9, %s16
      %p86 = scmp.eq.s32.totalorder %s85, 0
      %s88 = sadd.s32 %s87, 1
      %s89 = scalar_select %p86, %s87, %s88
      %p92 = pneg %p86
      %p93 = scmp.eq.s32.totalorder %s9, 1
      %p94 = por %p92, %p93
      %p95 = scmp.ne.s32.totalorder %s87, %s90
      %p96 = scmp.eq.s32.totalorder %s9, 0
      %p97 = por %p95, %p96
      %p98 = scmp.ne.s32.totalorder %s87, %s90
      %p99 = scmp.eq.s32.totalorder %s14, 1
      %p100 = por %p98, %p99
      %p101 = scmp.ne.s32.totalorder %s90, %s91
      %p102 = scmp.eq.s32.totalorder %s14, 0
      %p103 = por %p101, %p102
      %p104 = scmp.ne.s32.totalorder %s90, %s91
      %p105 = scmp.eq.s32.totalorder %s15, 1
      %p106 = por %p104, %p105
      %p108 = scmp.ne.s32.totalorder %s91, %s107
      %p109 = scmp.eq.s32.totalorder %s15, 0
      %p110 = por %p108, %p109
      %p111 = scmp.le.s32.totalorder 1, %s9
      %p112 = scmp.lt.s32.totalorder %s9, 3
      %p113 = pnand %p111, %p112
      %p114 = pneg %p113
      // Predicated region
      $region9: #{cbam_forward.6} parent=5 // pred_check
        _
      $region10: #{cbam_forward.6} parent=5 // pred_check_branch
        %116 = sbr.rel (%p113) target = $region12
      $region11: #{cbam_forward.6} parent=5 // pred_region
        %s117 = ssub.s32 %s9, 1
        // Predicated region
        $region13: #{cbam_forward.6} parent=11 // pred_check
          %p118 = pneg %p30
        $region14: #{cbam_forward.6} parent=11 // pred_check_branch
          %120 = sbr.rel (%p118) target = $region16
        $region15: #{cbam_forward.6} parent=11 // pred_region
          _
        $region16: #{cbam_forward.6} parent=11 // pred_fallthru
          _
        // Predicated region
        $region17: #{cbam_forward.6} parent=11 // pred_check
          %p121 = pneg %p77
        $region18: #{cbam_forward.6} parent=11 // pred_check_branch
          %123 = sbr.rel (%p121) target = $region20
        $region19: #{cbam_forward.6} parent=11 // pred_region
          _
        $region20: #{cbam_forward.6} parent=11 // pred_fallthru
          _
      $region12: #{cbam_forward.6} parent=5 // pred_fallthru
        _
      %p124 = scmp.lt.s32.totalorder %s9, 2
      // Predicated region
      $region21: #{cbam_forward.6} parent=5 // pred_check
        %p125 = pneg %p124
      $region22: #{cbam_forward.6} parent=5 // pred_check_branch
        %127 = sbr.rel (%p125) target = $region24
      $region23: #{cbam_forward.6} parent=5 // pred_region
        // Predicated region
        $region25: #{cbam_forward.6} parent=23 // pred_check
          %p128 = pneg %p50
        $region26: #{cbam_forward.6} parent=23 // pred_check_branch
          %130 = sbr.rel (%p128) target = $region28
        $region27: #{cbam_forward.6} parent=23 // pred_region
          %s131 = sand.u32 %s40, 1
          %s132 = sand.u32 %s40, 1
          %s133 = smul.addr %s132, 288
          %s134 = scalar_lea.vmem [#allocation2], %s133
          %s135 = smul.u32 2, %s9
          %s136 = smul.addr %s135, 4
          %s137 = scalar_lea.vmem %s1, %s136
          // Predicated region
          $region29: #{cbam_forward.6} parent=27 // pred_check
            _
          $region30: #{cbam_forward.6} parent=27 // pred_check_branch
            %139 = sbr.rel (0) target = $region32
          $region31: #{cbam_forward.6} parent=27 // pred_region
            // Predicated region
            $region33: #{cbam_forward.6} parent=31 // pred_check
              _
            $region34: #{cbam_forward.6} parent=31 // pred_check_branch
              %141 = sbr.rel (0) target = $region36
            $region35: #{cbam_forward.6} parent=31 // pred_region
              // Predicated region
              $region48: #{cbam_forward.6} parent=35 // pred_check
                _
              $region49: #{cbam_forward.6} parent=35 // pred_check_branch
                %226 = sbr.rel (0) target = $region51
              $region50: #{cbam_forward.6} parent=35 // pred_region
                loop: start=0, step=1, limit=1
                $region52: #{cbam_forward.6} parent=50 // loop_pre_header
                  _
                $region53: #{cbam_forward.6} parent=50 // loop_header
                  %s228 = sphi 0, %s232
                  %p229 = scmp.ge.s32.totalorder %s228, 1
                  %s233 = sphi %s137, %s137
                  %s234 = sphi %s134, %s134
                $region54: #{cbam_forward.6} parent=50 // loop_header_branch
                  %231 = sbr.rel (%p229) target = $region58
                $region55: #{cbam_forward.6} parent=50 // loop_body
                  %v235 = vld [vmem:[%s233] sm:$0xff]
                  %236 = vst [vmem:[%s234] sm:$0xff] %v235
                  %v237 = vld [vmem:[%s233 + $0x10] sm:$0xff]
                  %238 = vst [vmem:[%s234 + $0x8] sm:$0xff] %v237
                  %v239 = vld [vmem:[%s233 + $0x20] sm:$0xff]
                  %240 = vst [vmem:[%s234 + $0x10] sm:$0xff] %v239
                  %v241 = vld [vmem:[%s233 + $0x30] sm:$0xff]
                  %242 = vst [vmem:[%s234 + $0x18] sm:$0xff] %v241
                  %v243 = vld [vmem:[%s233 + $0x40] sm:$0xff]
                  %244 = vst [vmem:[%s234 + $0x20] sm:$0xff] %v243
                  %v245 = vld [vmem:[%s233 + $0x50] sm:$0xff]
                  %246 = vst [vmem:[%s234 + $0x28] sm:$0xff] %v245
                  %v247 = vld [vmem:[%s233 + $0x60] sm:$0xff]
                  %248 = vst [vmem:[%s234 + $0x30] sm:$0xff] %v247
                  %v249 = vld [vmem:[%s233 + $0x70] sm:$0xff]
                  %250 = vst [vmem:[%s234 + $0x38] sm:$0xff] %v249
                  %v251 = vld [vmem:[%s233 + $0x80] sm:$0xff]
                  %252 = vst [vmem:[%s234 + $0x40] sm:$0xff] %v251
                  %v253 = vld [vmem:[%s233 + $0x90] sm:$0xff]
                  %254 = vst [vmem:[%s234 + $0x48] sm:$0xff] %v253
                  %v255 = vld [vmem:[%s233 + $0xa0] sm:$0xff]
                  %256 = vst [vmem:[%s234 + $0x50] sm:$0xff] %v255
                  %v257 = vld [vmem:[%s233 + $0xb0] sm:$0xff]
                  %258 = vst [vmem:[%s234 + $0x58] sm:$0xff] %v257
                  %v259 = vld [vmem:[%s233 + $0xc0] sm:$0xff]
                  %260 = vst [vmem:[%s234 + $0x60] sm:$0xff] %v259
                  %v261 = vld [vmem:[%s233 + $0xd0] sm:$0xff]
                  %262 = vst [vmem:[%s234 + $0x68] sm:$0xff] %v261
                  %v263 = vld [vmem:[%s233 + $0xe0] sm:$0xff]
                  %264 = vst [vmem:[%s234 + $0x70] sm:$0xff] %v263
                  %v265 = vld [vmem:[%s233 + $0xf0] sm:$0xff]
                  %266 = vst [vmem:[%s234 + $0x78] sm:$0xff] %v265
                  %v267 = vld [vmem:[%s233 + $0x100] sm:$0xff]
                  %268 = vst [vmem:[%s234 + $0x80] sm:$0xff] %v267
                  %v269 = vld [vmem:[%s233 + $0x110] sm:$0xff]
                  %270 = vst [vmem:[%s234 + $0x88] sm:$0xff] %v269
                  %v271 = vld [vmem:[%s233 + $0x120] sm:$0xff]
                  %272 = vst [vmem:[%s234 + $0x90] sm:$0xff] %v271
                  %v273 = vld [vmem:[%s233 + $0x130] sm:$0xff]
                  %274 = vst [vmem:[%s234 + $0x98] sm:$0xff] %v273
                  %v275 = vld [vmem:[%s233 + $0x140] sm:$0xff]
                  %276 = vst [vmem:[%s234 + $0xa0] sm:$0xff] %v275
                  %v277 = vld [vmem:[%s233 + $0x150] sm:$0xff]
                  %278 = vst [vmem:[%s234 + $0xa8] sm:$0xff] %v277
                  %v279 = vld [vmem:[%s233 + $0x160] sm:$0xff]
                  %280 = vst [vmem:[%s234 + $0xb0] sm:$0xff] %v279
                  %v281 = vld [vmem:[%s233 + $0x170] sm:$0xff]
                  %282 = vst [vmem:[%s234 + $0xb8] sm:$0xff] %v281
                  %v283 = vld [vmem:[%s233 + $0x180] sm:$0xff]
                  %284 = vst [vmem:[%s234 + $0xc0] sm:$0xff] %v283
                  %v285 = vld [vmem:[%s233 + $0x190] sm:$0xff]
                  %286 = vst [vmem:[%s234 + $0xc8] sm:$0xff] %v285
                  %v287 = vld [vmem:[%s233 + $0x1a0] sm:$0xff]
                  %288 = vst [vmem:[%s234 + $0xd0] sm:$0xff] %v287
                  %v289 = vld [vmem:[%s233 + $0x1b0] sm:$0xff]
                  %290 = vst [vmem:[%s234 + $0xd8] sm:$0xff] %v289
                  %v291 = vld [vmem:[%s233 + $0x1c0] sm:$0xff]
                  %292 = vst [vmem:[%s234 + $0xe0] sm:$0xff] %v291
                  %v293 = vld [vmem:[%s233 + $0x1d0] sm:$0xff]
                  %294 = vst [vmem:[%s234 + $0xe8] sm:$0xff] %v293
                  %v295 = vld [vmem:[%s233 + $0x1e0] sm:$0xff]
                  %296 = vst [vmem:[%s234 + $0xf0] sm:$0xff] %v295
                  %v297 = vld [vmem:[%s233 + $0x1f0] sm:$0xff]
                  %298 = vst [vmem:[%s234 + $0xf8] sm:$0xff] %v297
                  %v299 = vld [vmem:[%s233 + $0x200] sm:$0xff]
                  %300 = vst [vmem:[%s234 + $0x100] sm:$0xff] %v299
                  %v301 = vld [vmem:[%s233 + $0x210] sm:$0xff]
                  %302 = vst [vmem:[%s234 + $0x108] sm:$0xff] %v301
                  %v303 = vld [vmem:[%s233 + $0x220] sm:$0xff]
                  %304 = vst [vmem:[%s234 + $0x110] sm:$0xff] %v303
                  %v305 = vld [vmem:[%s233 + $0x230] sm:$0xff]
                  %306 = vst [vmem:[%s234 + $0x118] sm:$0xff] %v305
                $region56: #{cbam_forward.6} parent=50 // loop_footer
                  %s232 = sadd.s32 1, %s228
                $region57: #{cbam_forward.6} parent=50 // loop_footer_branch
                  %227 = sbr.rel target = $region53
                $region58: #{cbam_forward.6} parent=50 // loop_exit
                  _
              $region51: #{cbam_forward.6} parent=35 // pred_fallthru
                _
              // Predicated region
              $region59: #{cbam_forward.6} parent=35 // pred_check
                _
              $region60: #{cbam_forward.6} parent=35 // pred_check_branch
                %308 = sbr.rel target = $region62
              $region61: #{cbam_forward.6} parent=35 // pred_region
                _
              $region62: #{cbam_forward.6} parent=35 // pred_fallthru
                _
            $region36: #{cbam_forward.6} parent=31 // pred_fallthru
              _
            // Predicated region
            $region37: #{cbam_forward.6} parent=31 // pred_check
              _
            $region38: #{cbam_forward.6} parent=31 // pred_check_branch
              %143 = sbr.rel target = $region40
            $region39: #{cbam_forward.6} parent=31 // pred_region
              loop: start=0, step=1, limit=1
              $region41: #{cbam_forward.6} parent=39 // loop_pre_header
                _
              $region42: #{cbam_forward.6} parent=39 // loop_header
                %s146 = sphi 0, %s150
                %p147 = scmp.ge.s32.totalorder %s146, 1
                %s151 = sphi %s137, %s137
                %s152 = sphi %s134, %s134
              $region43: #{cbam_forward.6} parent=39 // loop_header_branch
                %149 = sbr.rel (%p147) target = $region47
              $region44: #{cbam_forward.6} parent=39 // loop_body
                %v153 = vld [vmem:[%s151] sm:$0xff]
                %154 = vst [vmem:[%s152] sm:$0xff] %v153
                %v155 = vld [vmem:[%s151 + $0x10] sm:$0xff]
                %156 = vst [vmem:[%s152 + $0x8] sm:$0xff] %v155
                %v157 = vld [vmem:[%s151 + $0x20] sm:$0xff]
                %158 = vst [vmem:[%s152 + $0x10] sm:$0xff] %v157
                %v159 = vld [vmem:[%s151 + $0x30] sm:$0xff]
                %160 = vst [vmem:[%s152 + $0x18] sm:$0xff] %v159
                %v161 = vld [vmem:[%s151 + $0x40] sm:$0xff]
                %162 = vst [vmem:[%s152 + $0x20] sm:$0xff] %v161
                %v163 = vld [vmem:[%s151 + $0x50] sm:$0xff]
                %164 = vst [vmem:[%s152 + $0x28] sm:$0xff] %v163
                %v165 = vld [vmem:[%s151 + $0x60] sm:$0xff]
                %166 = vst [vmem:[%s152 + $0x30] sm:$0xff] %v165
                %v167 = vld [vmem:[%s151 + $0x70] sm:$0xff]
                %168 = vst [vmem:[%s152 + $0x38] sm:$0xff] %v167
                %v169 = vld [vmem:[%s151 + $0x80] sm:$0xff]
                %170 = vst [vmem:[%s152 + $0x40] sm:$0xff] %v169
                %v171 = vld [vmem:[%s151 + $0x90] sm:$0xff]
                %172 = vst [vmem:[%s152 + $0x48] sm:$0xff] %v171
                %v173 = vld [vmem:[%s151 + $0xa0] sm:$0xff]
                %174 = vst [vmem:[%s152 + $0x50] sm:$0xff] %v173
                %v175 = vld [vmem:[%s151 + $0xb0] sm:$0xff]
                %176 = vst [vmem:[%s152 + $0x58] sm:$0xff] %v175
                %v177 = vld [vmem:[%s151 + $0xc0] sm:$0xff]
                %178 = vst [vmem:[%s152 + $0x60] sm:$0xff] %v177
                %v179 = vld [vmem:[%s151 + $0xd0] sm:$0xff]
                %180 = vst [vmem:[%s152 + $0x68] sm:$0xff] %v179
                %v181 = vld [vmem:[%s151 + $0xe0] sm:$0xff]
                %182 = vst [vmem:[%s152 + $0x70] sm:$0xff] %v181
                %v183 = vld [vmem:[%s151 + $0xf0] sm:$0xff]
                %184 = vst [vmem:[%s152 + $0x78] sm:$0xff] %v183
                %v185 = vld [vmem:[%s151 + $0x100] sm:$0xff]
                %186 = vst [vmem:[%s152 + $0x80] sm:$0xff] %v185
                %v187 = vld [vmem:[%s151 + $0x110] sm:$0xff]
                %188 = vst [vmem:[%s152 + $0x88] sm:$0xff] %v187
                %v189 = vld [vmem:[%s151 + $0x120] sm:$0xff]
                %190 = vst [vmem:[%s152 + $0x90] sm:$0xff] %v189
                %v191 = vld [vmem:[%s151 + $0x130] sm:$0xff]
                %192 = vst [vmem:[%s152 + $0x98] sm:$0xff] %v191
                %v193 = vld [vmem:[%s151 + $0x140] sm:$0xff]
                %194 = vst [vmem:[%s152 + $0xa0] sm:$0xff] %v193
                %v195 = vld [vmem:[%s151 + $0x150] sm:$0xff]
                %196 = vst [vmem:[%s152 + $0xa8] sm:$0xff] %v195
                %v197 = vld [vmem:[%s151 + $0x160] sm:$0xff]
                %198 = vst [vmem:[%s152 + $0xb0] sm:$0xff] %v197
                %v199 = vld [vmem:[%s151 + $0x170] sm:$0xff]
                %200 = vst [vmem:[%s152 + $0xb8] sm:$0xff] %v199
                %v201 = vld [vmem:[%s151 + $0x180] sm:$0xff]
                %202 = vst [vmem:[%s152 + $0xc0] sm:$0xff] %v201
                %v203 = vld [vmem:[%s151 + $0x190] sm:$0xff]
                %204 = vst [vmem:[%s152 + $0xc8] sm:$0xff] %v203
                %v205 = vld [vmem:[%s151 + $0x1a0] sm:$0xff]
                %206 = vst [vmem:[%s152 + $0xd0] sm:$0xff] %v205
                %v207 = vld [vmem:[%s151 + $0x1b0] sm:$0xff]
                %208 = vst [vmem:[%s152 + $0xd8] sm:$0xff] %v207
                %v209 = vld [vmem:[%s151 + $0x1c0] sm:$0xff]
                %210 = vst [vmem:[%s152 + $0xe0] sm:$0xff] %v209
                %v211 = vld [vmem:[%s151 + $0x1d0] sm:$0xff]
                %212 = vst [vmem:[%s152 + $0xe8] sm:$0xff] %v211
                %v213 = vld [vmem:[%s151 + $0x1e0] sm:$0xff]
                %214 = vst [vmem:[%s152 + $0xf0] sm:$0xff] %v213
                %v215 = vld [vmem:[%s151 + $0x1f0] sm:$0xff]
                %216 = vst [vmem:[%s152 + $0xf8] sm:$0xff] %v215
                %v217 = vld [vmem:[%s151 + $0x200] sm:$0xff]
                %218 = vst [vmem:[%s152 + $0x100] sm:$0xff] %v217
                %v219 = vld [vmem:[%s151 + $0x210] sm:$0xff]
                %220 = vst [vmem:[%s152 + $0x108] sm:$0xff] %v219
                %v221 = vld [vmem:[%s151 + $0x220] sm:$0xff]
                %222 = vst [vmem:[%s152 + $0x110] sm:$0xff] %v221
                %v223 = vld [vmem:[%s151 + $0x230] sm:$0xff]
                %224 = vst [vmem:[%s152 + $0x118] sm:$0xff] %v223
              $region45: #{cbam_forward.6} parent=39 // loop_footer
                %s150 = sadd.s32 1, %s146
              $region46: #{cbam_forward.6} parent=39 // loop_footer_branch
                %145 = sbr.rel target = $region42
              $region47: #{cbam_forward.6} parent=39 // loop_exit
                _
            $region40: #{cbam_forward.6} parent=31 // pred_fallthru
              _
          $region32: #{cbam_forward.6} parent=27 // pred_fallthru
            _
          %309 = vnop
        $region28: #{cbam_forward.6} parent=23 // pred_fallthru
          _
      $region24: #{cbam_forward.6} parent=5 // pred_fallthru
        _
      %p310 = scmp.le.s32.totalorder 1, %s9
      %p311 = scmp.lt.s32.totalorder %s9, 3
      %p312 = pnand %p310, %p311
      %p313 = pneg %p312
      // Predicated region
      $region63: #{cbam_forward.6} parent=5 // pred_check
        _
      $region64: #{cbam_forward.6} parent=5 // pred_check_branch
        %315 = sbr.rel (%p312) target = $region66
      $region65: #{cbam_forward.6} parent=5 // pred_region
        %s316 = ssub.s32 %s9, 1
        %s317 = sand.u32 %s43, 1
        %s318 = sand.u32 %s43, 1
        %s319 = smul.addr %s318, 288
        %s320 = scalar_lea.vmem [#allocation2], %s319
        // Predicated region
        $region67: #{cbam_forward.6} parent=65 // pred_check
          %p321 = pneg %p56
        $region68: #{cbam_forward.6} parent=65 // pred_check_branch
          %323 = sbr.rel (%p321) target = $region70
        $region69: #{cbam_forward.6} parent=65 // pred_region
          _
        $region70: #{cbam_forward.6} parent=65 // pred_fallthru
          _
        %p324 = pneg %p30
        %p325 = pneg %p27
        %s326 = sand.u32 %s43, 1
        %s327 = sand.u32 %s43, 1
        %s328 = smul.addr %s327, 288
        %s329 = scalar_lea.vmem [#allocation2], %s328
        %p330 = pneg %p56
        %p331 = pneg %p53
        %p332 = pneg %p77
        %p333 = pneg %p74
        %p334 = pneg %p103
        %p335 = pneg %p100
        %s336 = sand.u32 %s90, 1
        %s337 = sand.u32 %s90, 1
        %s338 = smul.addr %s337, 48
        %s339 = scalar_lea.vmem [#allocation3], %s338
        %s340 = smul.u32 2, %s14
        %s341 = smul.u32 2, %s14
        %v343 = vld [vmem:[%s0] sm:$0xff]
        %v344 = vld [vmem:[%s0 + $0x8] sm:$0xf]
        %v345 = vld [vmem:[%s0 + $0xc] sm:$0xff]
        %v346 = vld [vmem:[%s0 + $0x14] sm:$0xf]
        %v347 = vld [vmem:[%s0 + $0x18] sm:$0x11]
        %v348 = vld [vmem:[%s0 + $0x20] sm:$0x1]
        %v349 = vld [vmem:[%s320] sm:$0xff]
        %v350 = vld [vmem:[%s320 + $0x8] sm:$0xff]
        %v351 = vld [vmem:[%s320 + $0x10] sm:$0xff]
        %v352 = vld [vmem:[%s320 + $0x18] sm:$0xff]
        %v353 = vld [vmem:[%s320 + $0x20] sm:$0xff]
        %v354 = vld [vmem:[%s320 + $0x28] sm:$0xff]
        %v355 = vld [vmem:[%s320 + $0x30] sm:$0xff]
        %v356 = vld [vmem:[%s320 + $0x38] sm:$0xff]
        %v357 = vld [vmem:[%s320 + $0x40] sm:$0xff]
        %v358 = vld [vmem:[%s320 + $0x48] sm:$0xff]
        %v359 = vld [vmem:[%s320 + $0x50] sm:$0xff]
        %v360 = vld [vmem:[%s320 + $0x58] sm:$0xff]
        %v361 = vld [vmem:[%s320 + $0x60] sm:$0xff]
        %v362 = vld [vmem:[%s320 + $0x68] sm:$0xff]
        %v363 = vld [vmem:[%s320 + $0x70] sm:$0xff]
        %v364 = vld [vmem:[%s320 + $0x78] sm:$0xff]
        %v365 = vld [vmem:[%s320 + $0x80] sm:$0xff]
        %v366 = vld [vmem:[%s320 + $0x88] sm:$0xff]
        %v367 = vld [vmem:[%s320 + $0x90] sm:$0xff]
        %v368 = vld [vmem:[%s320 + $0x98] sm:$0xff]
        %v369 = vld [vmem:[%s320 + $0xa0] sm:$0xff]
        %v370 = vld [vmem:[%s320 + $0xa8] sm:$0xff]
        %v371 = vld [vmem:[%s320 + $0xb0] sm:$0xff]
        %v372 = vld [vmem:[%s320 + $0xb8] sm:$0xff]
        %v373 = vld [vmem:[%s320 + $0xc0] sm:$0xff]
        %v374 = vld [vmem:[%s320 + $0xc8] sm:$0xff]
        %v375 = vld [vmem:[%s320 + $0xd0] sm:$0xff]
        %v376 = vld [vmem:[%s320 + $0xd8] sm:$0xff]
        %v377 = vld [vmem:[%s320 + $0xe0] sm:$0xff]
        %v378 = vld [vmem:[%s320 + $0xe8] sm:$0xff]
        %v379 = vld [vmem:[%s320 + $0xf0] sm:$0xff]
        %v380 = vld [vmem:[%s320 + $0xf8] sm:$0xff]
        %v381 = vld [vmem:[%s320 + $0x100] sm:$0xff]
        %v382 = vld [vmem:[%s320 + $0x108] sm:$0xff]
        %v383 = vld [vmem:[%s320 + $0x110] sm:$0xff]
        %v384 = vld [vmem:[%s320 + $0x118] sm:$0xff]
        %v385 = vld [vmem:[%s2] sm:$0xff]
        %v386 = vld [vmem:[%s2 + $0x8] sm:$0xff]
        %v387 = vld [vmem:[%s2 + $0x10] sm:$0x3]
        %389 = vset.pattern.permute.xlu0 0
        %390 = vperm.xlu0 %389, %v385
        %v391 = vpop.permute.xlu0 %390
        %394 = vset.pattern.permute.xlu0 0
        %395 = vperm.xlu0 %394, %v386
        %v396 = vpop.permute.xlu0 %395
        %399 = vset.pattern.permute.xlu0 0
        %400 = vperm.xlu0 %399, %v387
        %v401 = vpop.permute.xlu0 %400
        %v409 = vunpack.c.l.b16 %v343
        %v410 = vunpack.c.h.b16 %v343
        %v411 = vunpack.c.l.b16 %v344
        %v412 = vunpack.c.l.b16 %v345
        %v413 = vunpack.c.h.b16 %v345
        %v414 = vunpack.c.l.b16 %v346
        %v415 = vunpack.c.l.b16 %v347
        %v416 = vunpack.c.h.b16 %v347
        %v417 = vunpack.c.l.b16 %v348
        %v418 = vpack.c.b16 %v412, %v409
        %v419 = vpack.c.b16 %v413, %v410
        %v420 = vpack.c.b16 %v414, %v411
        %v421 = vpack.c.b16 %v415, %v415
        %v422 = vpack.c.b16 %v416, %v416
        %v423 = vpack.c.b16 %v417, %v417
        %v464 = vunpack.c.l.b16 %v349
        %v465 = vunpack.c.h.b16 %v349
        %v466 = vunpack.c.l.b16 %v350
        %v467 = vunpack.c.h.b16 %v350
        %v468 = vunpack.c.l.b16 %v351
        %v469 = vunpack.c.h.b16 %v351
        %v470 = vunpack.c.l.b16 %v352
        %v471 = vunpack.c.h.b16 %v352
        %v472 = vunpack.c.l.b16 %v353
        %v473 = vunpack.c.h.b16 %v353
        %v474 = vunpack.c.l.b16 %v354
        %v475 = vunpack.c.h.b16 %v354
        %v476 = vunpack.c.l.b16 %v355
        %v477 = vunpack.c.h.b16 %v355
        %v478 = vunpack.c.l.b16 %v356
        %v479 = vunpack.c.h.b16 %v356
        %v480 = vunpack.c.l.b16 %v357
        %v481 = vunpack.c.h.b16 %v357
        %v482 = vunpack.c.l.b16 %v358
        %v483 = vunpack.c.h.b16 %v358
        %v484 = vunpack.c.l.b16 %v359
        %v485 = vunpack.c.h.b16 %v359
        %v486 = vunpack.c.l.b16 %v360
        %v487 = vunpack.c.h.b16 %v360
        %v488 = vunpack.c.l.b16 %v361
        %v489 = vunpack.c.h.b16 %v361
        %v490 = vunpack.c.l.b16 %v362
        %v491 = vunpack.c.h.b16 %v362
        %v492 = vunpack.c.l.b16 %v363
        %v493 = vunpack.c.h.b16 %v363
        %v494 = vunpack.c.l.b16 %v364
        %v495 = vunpack.c.h.b16 %v364
        %v496 = vunpack.c.l.b16 %v365
        %v497 = vunpack.c.h.b16 %v365
        %v498 = vunpack.c.l.b16 %v366
        %v499 = vunpack.c.h.b16 %v366
        %v500 = vunpack.c.l.b16 %v367
        %v501 = vunpack.c.h.b16 %v367
        %v502 = vunpack.c.l.b16 %v368
        %v503 = vunpack.c.h.b16 %v368
        %v504 = vunpack.c.l.b16 %v369
        %v505 = vunpack.c.h.b16 %v369
        %v506 = vunpack.c.l.b16 %v370
        %v507 = vunpack.c.h.b16 %v370
        %v508 = vunpack.c.l.b16 %v371
        %v509 = vunpack.c.h.b16 %v371
        %v510 = vunpack.c.l.b16 %v372
        %v511 = vunpack.c.h.b16 %v372
        %v512 = vunpack.c.l.b16 %v373
        %v513 = vunpack.c.h.b16 %v373
        %v514 = vunpack.c.l.b16 %v374
        %v515 = vunpack.c.h.b16 %v374
        %v516 = vunpack.c.l.b16 %v375
        %v517 = vunpack.c.h.b16 %v375
        %v518 = vunpack.c.l.b16 %v376
        %v519 = vunpack.c.h.b16 %v376
        %v520 = vunpack.c.l.b16 %v377
        %v521 = vunpack.c.h.b16 %v377
        %v522 = vunpack.c.l.b16 %v378
        %v523 = vunpack.c.h.b16 %v378
        %v524 = vunpack.c.l.b16 %v379
        %v525 = vunpack.c.h.b16 %v379
        %v526 = vunpack.c.l.b16 %v380
        %v527 = vunpack.c.h.b16 %v380
        %v528 = vunpack.c.l.b16 %v381
        %v529 = vunpack.c.h.b16 %v381
        %v530 = vunpack.c.l.b16 %v382
        %v531 = vunpack.c.h.b16 %v382
        %v532 = vunpack.c.l.b16 %v383
        %v533 = vunpack.c.h.b16 %v383
        %v534 = vunpack.c.l.b16 %v384
        %v535 = vunpack.c.h.b16 %v384
        %v536 = vpack.c.b16 %v466, %v464
        %v537 = vpack.c.b16 %v467, %v465
        %v538 = vpack.c.b16 %v470, %v468
        %v539 = vpack.c.b16 %v471, %v469
        %v540 = vpack.c.b16 %v474, %v472
        %v541 = vpack.c.b16 %v475, %v473
        %v542 = vpack.c.b16 %v478, %v476
        %v543 = vpack.c.b16 %v479, %v477
        %v544 = vpack.c.b16 %v482, %v480
        %v545 = vpack.c.b16 %v483, %v481
        %v546 = vpack.c.b16 %v486, %v484
        %v547 = vpack.c.b16 %v487, %v485
        %v548 = vpack.c.b16 %v490, %v488
        %v549 = vpack.c.b16 %v491, %v489
        %v550 = vpack.c.b16 %v494, %v492
        %v551 = vpack.c.b16 %v495, %v493
        %v552 = vpack.c.b16 %v498, %v496
        %v553 = vpack.c.b16 %v499, %v497
        %v554 = vpack.c.b16 %v502, %v500
        %v555 = vpack.c.b16 %v503, %v501
        %v556 = vpack.c.b16 %v506, %v504
        %v557 = vpack.c.b16 %v507, %v505
        %v558 = vpack.c.b16 %v510, %v508
        %v559 = vpack.c.b16 %v511, %v509
        %v560 = vpack.c.b16 %v514, %v512
        %v561 = vpack.c.b16 %v515, %v513
        %v562 = vpack.c.b16 %v518, %v516
        %v563 = vpack.c.b16 %v519, %v517
        %v564 = vpack.c.b16 %v522, %v520
        %v565 = vpack.c.b16 %v523, %v521
        %v566 = vpack.c.b16 %v526, %v524
        %v567 = vpack.c.b16 %v527, %v525
        %v568 = vpack.c.b16 %v530, %v528
        %v569 = vpack.c.b16 %v531, %v529
        %v570 = vpack.c.b16 %v534, %v532
        %v571 = vpack.c.b16 %v535, %v533
        %vm608 = vcmask 261120
        %v610 = vsel %vm608, %v420, 0
        %v613 = vsel %vm608, %v423, 0
        %615 = vmatprep.subr.bf16.mxu0 %v537
        %616 = vmatpush1.bf16.msra.mxu0 %v536
        %617 = vmatprep.subr.bf16.mxu0 %v539
        %618 = vmatpush1.bf16.msra.mxu0 %v538
        %619 = vmatprep.subr.bf16.mxu0 %v541
        %620 = vmatpush1.bf16.msra.mxu0 %v540
        %621 = vmatprep.subr.bf16.mxu0 %v543
        %622 = vmatpush1.bf16.msra.mxu0 %v542
        %623 = vmatprep.subr.bf16.mxu0 %v545
        %624 = vmatpush1.bf16.msra.mxu0 %v544
        %625 = vmatprep.subr.bf16.mxu0 %v547
        %626 = vmatpush1.bf16.msra.mxu0 %v546
        %627 = vmatprep.subr.bf16.mxu0 %v549
        %628 = vmatpush1.bf16.msra.mxu0 %v548
        %629 = vmatprep.subr.bf16.mxu0 %v551
        %630 = vmatpush1.bf16.msra.mxu0 %v550
        %631 = vmatprep.subr.bf16.mxu0 %v553
        %632 = vmatpush1.bf16.msra.mxu0 %v552
        %633 = vmatprep.subr.bf16.mxu0 %v555
        %634 = vmatpush1.bf16.msra.mxu0 %v554
        %635 = vmatprep.subr.bf16.mxu0 %v557
        %636 = vmatpush1.bf16.msra.mxu0 %v556
        %637 = vmatprep.subr.bf16.mxu0 %v559
        %638 = vmatpush1.bf16.msra.mxu0 %v558
        %639 = vmatprep.subr.bf16.mxu0 %v561
        %640 = vmatpush1.bf16.msra.mxu0 %v560
        %641 = vmatprep.subr.bf16.mxu0 %v563
        %642 = vmatpush1.bf16.msra.mxu0 %v562
        %643 = vmatprep.subr.bf16.mxu0 %v565
        %644 = vmatpush1.bf16.msra.mxu0 %v564
        %645 = vmatprep.subr.bf16.mxu0 %v567
        %646 = vmatpush1.bf16.msra.mxu0 %v566
        %647 = vmatprep.mubr.bf16.mxu0 %v419
        %648 = vmatmul.mubr.bf16.gmra.mrb[0].mxu0 %v418
        %v649 = vpop.f32.mrb[0].mxu0
        %v650 = vadd.f32 %v391, %v649
        %v651 = vpop.f32.mrb[0].mxu0
        %v652 = vadd.f32 %v391, %v651
        %v653 = vpop.f32.mrb[0].mxu0
        %v654 = vadd.f32 %v396, %v653
        %v655 = vpop.f32.mrb[0].mxu0
        %v656 = vadd.f32 %v396, %v655
        %657 = vmatprep.mubr.bf16.mxu0 %v422
        %658 = vmatmul.mubr.bf16.gmra.mrb[0].mxu0 %v421
        %v659 = vpop.f32.mrb[0].mxu0
        %v660 = vadd.f32 %v401, %v659
        %v661 = vpop.f32.mrb[0].mxu0
        %v662 = vadd.f32 %v401, %v661
        %v663 = vpop.f32.mrb[0].mxu0
        %v664 = vpop.f32.mrb[0].mxu0
        %665 = vdwg.mxu0
        %666 = vmatprep.subr.bf16.mxu0 %v569
        %667 = vmatpush1.bf16.msra.mxu0 %v568
        %668 = vmatprep.subr.bf16.mxu0 %v571
        %669 = vmatpush1.bf16.msra.mxu0 %v570
        %670 = vmatprep.subr.bf16.mxu0 0
        %671 = vmatpush1.bf16.msra.mxu0 0
        %672 = vmatprep.subr.bf16.mxu0 0
        %673 = vmatpush1.bf16.msra.mxu0 0
        %674 = vmatprep.subr.bf16.mxu0 0
        %675 = vmatpush1.bf16.msra.mxu0 0
        %676 = vmatprep.subr.bf16.mxu0 0
        %677 = vmatpush1.bf16.msra.mxu0 0
        %678 = vmatprep.subr.bf16.mxu0 0
        %679 = vmatpush1.bf16.msra.mxu0 0
        %680 = vmatprep.subr.bf16.mxu0 0
        %681 = vmatpush1.bf16.msra.mxu0 0
        %682 = vmatprep.subr.bf16.mxu0 0
        %683 = vmatpush1.bf16.msra.mxu0 0
        %684 = vmatprep.subr.bf16.mxu0 0
        %685 = vmatpush1.bf16.msra.mxu0 0
        %686 = vmatprep.subr.bf16.mxu0 0
        %687 = vmatpush1.bf16.msra.mxu0 0
        %688 = vmatprep.subr.bf16.mxu0 0
        %689 = vmatpush1.bf16.msra.mxu0 0
        %690 = vmatprep.subr.bf16.mxu0 0
        %691 = vmatpush1.bf16.msra.mxu0 0
        %692 = vmatprep.subr.bf16.mxu0 0
        %693 = vmatpush1.bf16.msra.mxu0 0
        %694 = vmatprep.subr.bf16.mxu0 0
        %695 = vmatpush1.bf16.msra.mxu0 0
        %696 = vmatprep.subr.bf16.mxu0 0
        %697 = vmatpush1.bf16.msra.mxu0 0
        %698 = vmatprep.mubr.bf16.mxu0 0
        %699 = vmatmul.mubr.bf16.gmra.mrb[0].mxu0 %v610
        %v700 = vpop.f32.mrb[0].mxu0
        %v701 = vadd.f32 %v650, %v700
        %v702 = vpop.f32.mrb[0].mxu0
        %v703 = vadd.f32 %v652, %v702
        %v704 = vpop.f32.mrb[0].mxu0
        %v705 = vadd.f32 %v654, %v704
        %v706 = vpop.f32.mrb[0].mxu0
        %v707 = vadd.f32 %v656, %v706
        %708 = vmatprep.mubr.bf16.mxu0 0
        %709 = vmatmul.mubr.bf16.gmra.mrb[0].mxu0 %v613
        %v710 = vpop.f32.mrb[0].mxu0
        %v711 = vadd.f32 %v660, %v710
        %v712 = vpop.f32.mrb[0].mxu0
        %v713 = vadd.f32 %v662, %v712
        %v714 = vpop.f32.mrb[0].mxu0
        %v715 = vpop.f32.mrb[0].mxu0
        %716 = vdwg.mxu0
        %717 = vst [vmem:[%s339] sm:$0xff] %v701
        %718 = vst [vmem:[%s339 + $0x8] sm:$0xff] %v703
        %719 = vst [vmem:[%s339 + $0x10] sm:$0xff] %v705
        %720 = vst [vmem:[%s339 + $0x18] sm:$0xff] %v707
        %721 = vst [vmem:[%s339 + $0x20] sm:$0x3] %v711
        %722 = vst [vmem:[%s339 + $0x28] sm:$0x3] %v713
        %s723 = sand.u32 %s90, 1
        %s724 = sand.u32 %s90, 1
        %s725 = smul.addr %s724, 48
        %s726 = scalar_lea.vmem [#allocation3], %s725
        // Predicated region
        $region71: #{cbam_forward.6} parent=65 // pred_check
          %p727 = pneg %p100
        $region72: #{cbam_forward.6} parent=65 // pred_check_branch
          %729 = sbr.rel (%p727) target = $region74
        $region73: #{cbam_forward.6} parent=65 // pred_region
          %s730 = smul.u32 2, %s14
          %s731 = smul.addr %s730, 8
          %s732 = scalar_lea.vmem %s3, %s731
          // Predicated region
          $region75: #{cbam_forward.6} parent=73 // pred_check
            _
          $region76: #{cbam_forward.6} parent=73 // pred_check_branch
            %734 = sbr.rel (0) target = $region78
          $region77: #{cbam_forward.6} parent=73 // pred_region
            // Predicated region
            $region79: #{cbam_forward.6} parent=77 // pred_check
              _
            $region80: #{cbam_forward.6} parent=77 // pred_check_branch
              %736 = sbr.rel (0) target = $region82
            $region81: #{cbam_forward.6} parent=77 // pred_region
              loop: start=0, step=1, limit=1
              $region83: #{cbam_forward.6} parent=81 // loop_pre_header
                _
              $region84: #{cbam_forward.6} parent=81 // loop_header
                %s738 = sphi 0, %s742
                %p739 = scmp.ge.s32.totalorder %s738, 1
                %s743 = sphi %s726, %s726
                %s744 = sphi %s732, %s732
              $region85: #{cbam_forward.6} parent=81 // loop_header_branch
                %741 = sbr.rel (%p739) target = $region89
              $region86: #{cbam_forward.6} parent=81 // loop_body
                %v745 = vld [vmem:[%s743] sm:$0xff]
                %746 = vst [vmem:[%s744] sm:$0xff] %v745
                %v747 = vld [vmem:[%s743 + $0x8] sm:$0xff]
                %748 = vst [vmem:[%s744 + $0x8] sm:$0xff] %v747
                %v749 = vld [vmem:[%s743 + $0x10] sm:$0xff]
                %750 = vst [vmem:[%s744 + $0x20] sm:$0xff] %v749
                %v751 = vld [vmem:[%s743 + $0x18] sm:$0xff]
                %752 = vst [vmem:[%s744 + $0x28] sm:$0xff] %v751
                %v753 = vld [vmem:[%s743 + $0x20] sm:$0xff]
                %754 = vst [vmem:[%s744 + $0x40] sm:$0xff] %v753
                %v755 = vld [vmem:[%s743 + $0x28] sm:$0xff]
                %756 = vst [vmem:[%s744 + $0x48] sm:$0xff] %v755
              $region87: #{cbam_forward.6} parent=81 // loop_footer
                %s742 = sadd.s32 1, %s738
              $region88: #{cbam_forward.6} parent=81 // loop_footer_branch
                %737 = sbr.rel target = $region84
              $region89: #{cbam_forward.6} parent=81 // loop_exit
                _
            $region82: #{cbam_forward.6} parent=77 // pred_fallthru
              _
            // Predicated region
            $region90: #{cbam_forward.6} parent=77 // pred_check
              _
            $region91: #{cbam_forward.6} parent=77 // pred_check_branch
              %758 = sbr.rel target = $region93
            $region92: #{cbam_forward.6} parent=77 // pred_region
              _
            $region93: #{cbam_forward.6} parent=77 // pred_fallthru
              _
          $region78: #{cbam_forward.6} parent=73 // pred_fallthru
            _
          %759 = vnop
        $region74: #{cbam_forward.6} parent=65 // pred_fallthru
          _
      $region66: #{cbam_forward.6} parent=5 // pred_fallthru
        _
      %p760 = scmp.le.s32.totalorder 2, %s9
      // Predicated region
      $region94: #{cbam_forward.6} parent=5 // pred_check
        %p761 = pneg %p760
      $region95: #{cbam_forward.6} parent=5 // pred_check_branch
        %763 = sbr.rel (%p761) target = $region97
      $region96: #{cbam_forward.6} parent=5 // pred_region
        %s764 = ssub.s32 %s9, 2
        // Predicated region
        $region98: #{cbam_forward.6} parent=96 // pred_check
          %p765 = pneg %p106
        $region99: #{cbam_forward.6} parent=96 // pred_check_branch
          %767 = sbr.rel (%p765) target = $region101
        $region100: #{cbam_forward.6} parent=96 // pred_region
          %s768 = sand.u32 %s91, 1
          %s769 = sand.u32 %s91, 1
          %s770 = smul.addr %s769, 48
          %s771 = scalar_lea.vmem [#allocation3], %s770
        $region101: #{cbam_forward.6} parent=96 // pred_fallthru
          _
      $region97: #{cbam_forward.6} parent=5 // pred_fallthru
        _
    $region6: #{cbam_forward.6} parent=1 // loop_footer
      %s13 = sadd.s32 1, %s9
    $region7: #{cbam_forward.6} parent=1 // loop_footer_branch
      %8 = sbr.rel target = $region3
    $region8: #{cbam_forward.6} parent=1 // loop_exit
      _

// kernel: cbam_forward.7
$region0: #{cbam_forward.7}
  #allocation0 [shape = 'u32[]', space=smem, size = 0x4, offset = 0x4, fixed_abs, tag = 'smem constant byte address 0x4 - core index']
  #allocation1 [shape = 'u32[144,128]{1,0:T(1,128)}', space=vmem, size = 0x12000, scoped, tag = 'internal scratch']
  %s0 = inlined_call_operand.vmem [shape: bf16[32,288], index: 0, kind: input, shape index: {}]
  %s1 = inlined_call_operand.vmem [shape: bf16[288,512], index: 1, kind: input, shape index: {}]
  %s2 = inlined_call_operand.vmem [shape: f32[32,1], index: 2, kind: input, shape index: {}]
  %s3 = inlined_call_operand.vmem [shape: f32[32,512], index: 3, kind: output, shape index: {}]
  %s4 = sld [smem:[#allocation0]]
  $region102: #{cbam_forward.7} parent=0
    _
  %s6 = ssub.s32 1, %s4
  %s7 = scalar_select 0, %s6, %s4
  $region1: #{cbam_forward.7} parent=0
    #allocation2 [shape = 'u8[294912]{0}', space=vmem, size = 0x48000, scoped, tag = 'input window, operand 1']
    #allocation3 [shape = 'u8[65536]{0}', space=vmem, size = 0x10000, scoped, tag = 'output window, operand 0']
    loop: start=0, step=1, limit=4
    $region2: #{cbam_forward.7} parent=1 // loop_pre_header
      _
    $region3: #{cbam_forward.7} parent=1 // loop_header
      %s9 = sphi 0, %s13
      %p10 = scmp.ge.s32.totalorder %s9, 4
      %s17 = sphi 0, %s17
      %s19 = sphi 0, %s17
      %s20 = sphi 0, %s19
      %s34 = sphi 0, %s20
      %s40 = sphi 0, %s42
      %s43 = sphi 0, %s40
      %s44 = sphi 0, %s43
      %s60 = sphi 0, %s44
      %s64 = sphi 0, %s64
      %s66 = sphi 0, %s64
      %s67 = sphi 0, %s66
      %s81 = sphi 0, %s67
      %s87 = sphi 0, %s89
      %s90 = sphi 0, %s87
      %s91 = sphi 0, %s90
      %s107 = sphi 0, %s91
    $region4: #{cbam_forward.7} parent=1 // loop_header_branch
      %12 = sbr.rel (%p10) target = $region8
    $region5: #{cbam_forward.7} parent=1 // loop_body
      %s14 = ssub.s32 %s9, 1
      %s15 = ssub.s32 %s9, 2
      %s16 = sadd.s32 %s9, 1
      %s18 = sadd.s32 %s17, 1
      %p21 = scmp.eq.s32.totalorder %s9, 1
      %p22 = scmp.ne.s32.totalorder %s17, %s19
      %p23 = scmp.eq.s32.totalorder %s9, 0
      %p24 = por %p22, %p23
      %p25 = scmp.ne.s32.totalorder %s17, %s19
      %p26 = scmp.eq.s32.totalorder %s14, 1
      %p27 = por %p25, %p26
      %p28 = scmp.ne.s32.totalorder %s19, %s20
      %p29 = scmp.eq.s32.totalorder %s14, 0
      %p30 = por %p28, %p29
      %p31 = scmp.ne.s32.totalorder %s19, %s20
      %p32 = scmp.eq.s32.totalorder %s15, 1
      %p33 = por %p31, %p32
      %p35 = scmp.ne.s32.totalorder %s20, %s34
      %p36 = scmp.eq.s32.totalorder %s15, 0
      %p37 = por %p35, %p36
      %s38 = ssub.s32 %s9, %s16
      %p39 = scmp.eq.s32.totalorder %s38, 0
      %s41 = sadd.s32 %s40, 1
      %s42 = scalar_select %p39, %s40, %s41
      %p45 = pneg %p39
      %p46 = scmp.eq.s32.totalorder %s9, 1
      %p47 = por %p45, %p46
      %p48 = scmp.ne.s32.totalorder %s40, %s43
      %p49 = scmp.eq.s32.totalorder %s9, 0
      %p50 = por %p48, %p49
      %p51 = scmp.ne.s32.totalorder %s40, %s43
      %p52 = scmp.eq.s32.totalorder %s14, 1
      %p53 = por %p51, %p52
      %p54 = scmp.ne.s32.totalorder %s43, %s44
      %p55 = scmp.eq.s32.totalorder %s14, 0
      %p56 = por %p54, %p55
      %p57 = scmp.ne.s32.totalorder %s43, %s44
      %p58 = scmp.eq.s32.totalorder %s15, 1
      %p59 = por %p57, %p58
      %p61 = scmp.ne.s32.totalorder %s44, %s60
      %p62 = scmp.eq.s32.totalorder %s15, 0
      %p63 = por %p61, %p62
      %s65 = sadd.s32 %s64, 1
      %p68 = scmp.eq.s32.totalorder %s9, 1
      %p69 = scmp.ne.s32.totalorder %s64, %s66
      %p70 = scmp.eq.s32.totalorder %s9, 0
      %p71 = por %p69, %p70
      %p72 = scmp.ne.s32.totalorder %s64, %s66
      %p73 = scmp.eq.s32.totalorder %s14, 1
      %p74 = por %p72, %p73
      %p75 = scmp.ne.s32.totalorder %s66, %s67
      %p76 = scmp.eq.s32.totalorder %s14, 0
      %p77 = por %p75, %p76
      %p78 = scmp.ne.s32.totalorder %s66, %s67
      %p79 = scmp.eq.s32.totalorder %s15, 1
      %p80 = por %p78, %p79
      %p82 = scmp.ne.s32.totalorder %s67, %s81
      %p83 = scmp.eq.s32.totalorder %s15, 0
      %p84 = por %p82, %p83
      %s85 = ssub.s32 %s9, %s16
      %p86 = scmp.eq.s32.totalorder %s85, 0
      %s88 = sadd.s32 %s87, 1
      %s89 = scalar_select %p86, %s87, %s88
      %p92 = pneg %p86
      %p93 = scmp.eq.s32.totalorder %s9, 1
      %p94 = por %p92, %p93
      %p95 = scmp.ne.s32.totalorder %s87, %s90
      %p96 = scmp.eq.s32.totalorder %s9, 0
      %p97 = por %p95, %p96
      %p98 = scmp.ne.s32.totalorder %s87, %s90
      %p99 = scmp.eq.s32.totalorder %s14, 1
      %p100 = por %p98, %p99
      %p101 = scmp.ne.s32.totalorder %s90, %s91
      %p102 = scmp.eq.s32.totalorder %s14, 0
      %p103 = por %p101, %p102
      %p104 = scmp.ne.s32.totalorder %s90, %s91
      %p105 = scmp.eq.s32.totalorder %s15, 1
      %p106 = por %p104, %p105
      %p108 = scmp.ne.s32.totalorder %s91, %s107
      %p109 = scmp.eq.s32.totalorder %s15, 0
      %p110 = por %p108, %p109
      %p111 = scmp.le.s32.totalorder 1, %s9
      %p112 = scmp.lt.s32.totalorder %s9, 3
      %p113 = pnand %p111, %p112
      %p114 = pneg %p113
      // Predicated region
      $region9: #{cbam_forward.7} parent=5 // pred_check
        _
      $region10: #{cbam_forward.7} parent=5 // pred_check_branch
        %116 = sbr.rel (%p113) target = $region12
      $region11: #{cbam_forward.7} parent=5 // pred_region
        %s117 = ssub.s32 %s9, 1
        // Predicated region
        $region13: #{cbam_forward.7} parent=11 // pred_check
          %p118 = pneg %p30
        $region14: #{cbam_forward.7} parent=11 // pred_check_branch
          %120 = sbr.rel (%p118) target = $region16
        $region15: #{cbam_forward.7} parent=11 // pred_region
          _
        $region16: #{cbam_forward.7} parent=11 // pred_fallthru
          _
        // Predicated region
        $region17: #{cbam_forward.7} parent=11 // pred_check
          %p121 = pneg %p77
        $region18: #{cbam_forward.7} parent=11 // pred_check_branch
          %123 = sbr.rel (%p121) target = $region20
        $region19: #{cbam_forward.7} parent=11 // pred_region
          _
        $region20: #{cbam_forward.7} parent=11 // pred_fallthru
          _
      $region12: #{cbam_forward.7} parent=5 // pred_fallthru
        _
      %p124 = scmp.lt.s32.totalorder %s9, 2
      // Predicated region
      $region21: #{cbam_forward.7} parent=5 // pred_check
        %p125 = pneg %p124
      $region22: #{cbam_forward.7} parent=5 // pred_check_branch
        %127 = sbr.rel (%p125) target = $region24
      $region23: #{cbam_forward.7} parent=5 // pred_region
        // Predicated region
        $region25: #{cbam_forward.7} parent=23 // pred_check
          %p128 = pneg %p50
        $region26: #{cbam_forward.7} parent=23 // pred_check_branch
          %130 = sbr.rel (%p128) target = $region28
        $region27: #{cbam_forward.7} parent=23 // pred_region
          %s131 = sand.u32 %s40, 1
          %s132 = sand.u32 %s40, 1
          %s133 = smul.addr %s132, 288
          %s134 = scalar_lea.vmem [#allocation2], %s133
          %s135 = smul.u32 2, %s9
          %s136 = smul.addr %s135, 4
          %s137 = scalar_lea.vmem %s1, %s136
          // Predicated region
          $region29: #{cbam_forward.7} parent=27 // pred_check
            _
          $region30: #{cbam_forward.7} parent=27 // pred_check_branch
            %139 = sbr.rel (0) target = $region32
          $region31: #{cbam_forward.7} parent=27 // pred_region
            // Predicated region
            $region33: #{cbam_forward.7} parent=31 // pred_check
              _
            $region34: #{cbam_forward.7} parent=31 // pred_check_branch
              %141 = sbr.rel (0) target = $region36
            $region35: #{cbam_forward.7} parent=31 // pred_region
              // Predicated region
              $region48: #{cbam_forward.7} parent=35 // pred_check
                _
              $region49: #{cbam_forward.7} parent=35 // pred_check_branch
                %226 = sbr.rel (0) target = $region51
              $region50: #{cbam_forward.7} parent=35 // pred_region
                loop: start=0, step=1, limit=1
                $region52: #{cbam_forward.7} parent=50 // loop_pre_header
                  _
                $region53: #{cbam_forward.7} parent=50 // loop_header
                  %s228 = sphi 0, %s232
                  %p229 = scmp.ge.s32.totalorder %s228, 1
                  %s233 = sphi %s137, %s137
                  %s234 = sphi %s134, %s134
                $region54: #{cbam_forward.7} parent=50 // loop_header_branch
                  %231 = sbr.rel (%p229) target = $region58
                $region55: #{cbam_forward.7} parent=50 // loop_body
                  %v235 = vld [vmem:[%s233] sm:$0xff]
                  %236 = vst [vmem:[%s234] sm:$0xff] %v235
                  %v237 = vld [vmem:[%s233 + $0x10] sm:$0xff]
                  %238 = vst [vmem:[%s234 + $0x8] sm:$0xff] %v237
                  %v239 = vld [vmem:[%s233 + $0x20] sm:$0xff]
                  %240 = vst [vmem:[%s234 + $0x10] sm:$0xff] %v239
                  %v241 = vld [vmem:[%s233 + $0x30] sm:$0xff]
                  %242 = vst [vmem:[%s234 + $0x18] sm:$0xff] %v241
                  %v243 = vld [vmem:[%s233 + $0x40] sm:$0xff]
                  %244 = vst [vmem:[%s234 + $0x20] sm:$0xff] %v243
                  %v245 = vld [vmem:[%s233 + $0x50] sm:$0xff]
                  %246 = vst [vmem:[%s234 + $0x28] sm:$0xff] %v245
                  %v247 = vld [vmem:[%s233 + $0x60] sm:$0xff]
                  %248 = vst [vmem:[%s234 + $0x30] sm:$0xff] %v247
                  %v249 = vld [vmem:[%s233 + $0x70] sm:$0xff]
                  %250 = vst [vmem:[%s234 + $0x38] sm:$0xff] %v249
                  %v251 = vld [vmem:[%s233 + $0x80] sm:$0xff]
                  %252 = vst [vmem:[%s234 + $0x40] sm:$0xff] %v251
                  %v253 = vld [vmem:[%s233 + $0x90] sm:$0xff]
                  %254 = vst [vmem:[%s234 + $0x48] sm:$0xff] %v253
                  %v255 = vld [vmem:[%s233 + $0xa0] sm:$0xff]
                  %256 = vst [vmem:[%s234 + $0x50] sm:$0xff] %v255
                  %v257 = vld [vmem:[%s233 + $0xb0] sm:$0xff]
                  %258 = vst [vmem:[%s234 + $0x58] sm:$0xff] %v257
                  %v259 = vld [vmem:[%s233 + $0xc0] sm:$0xff]
                  %260 = vst [vmem:[%s234 + $0x60] sm:$0xff] %v259
                  %v261 = vld [vmem:[%s233 + $0xd0] sm:$0xff]
                  %262 = vst [vmem:[%s234 + $0x68] sm:$0xff] %v261
                  %v263 = vld [vmem:[%s233 + $0xe0] sm:$0xff]
                  %264 = vst [vmem:[%s234 + $0x70] sm:$0xff] %v263
                  %v265 = vld [vmem:[%s233 + $0xf0] sm:$0xff]
                  %266 = vst [vmem:[%s234 + $0x78] sm:$0xff] %v265
                  %v267 = vld [vmem:[%s233 + $0x100] sm:$0xff]
                  %268 = vst [vmem:[%s234 + $0x80] sm:$0xff] %v267
                  %v269 = vld [vmem:[%s233 + $0x110] sm:$0xff]
                  %270 = vst [vmem:[%s234 + $0x88] sm:$0xff] %v269
                  %v271 = vld [vmem:[%s233 + $0x120] sm:$0xff]
                  %272 = vst [vmem:[%s234 + $0x90] sm:$0xff] %v271
                  %v273 = vld [vmem:[%s233 + $0x130] sm:$0xff]
                  %274 = vst [vmem:[%s234 + $0x98] sm:$0xff] %v273
                  %v275 = vld [vmem:[%s233 + $0x140] sm:$0xff]
                  %276 = vst [vmem:[%s234 + $0xa0] sm:$0xff] %v275
                  %v277 = vld [vmem:[%s233 + $0x150] sm:$0xff]
                  %278 = vst [vmem:[%s234 + $0xa8] sm:$0xff] %v277
                  %v279 = vld [vmem:[%s233 + $0x160] sm:$0xff]
                  %280 = vst [vmem:[%s234 + $0xb0] sm:$0xff] %v279
                  %v281 = vld [vmem:[%s233 + $0x170] sm:$0xff]
                  %282 = vst [vmem:[%s234 + $0xb8] sm:$0xff] %v281
                  %v283 = vld [vmem:[%s233 + $0x180] sm:$0xff]
                  %284 = vst [vmem:[%s234 + $0xc0] sm:$0xff] %v283
                  %v285 = vld [vmem:[%s233 + $0x190] sm:$0xff]
                  %286 = vst [vmem:[%s234 + $0xc8] sm:$0xff] %v285
                  %v287 = vld [vmem:[%s233 + $0x1a0] sm:$0xff]
                  %288 = vst [vmem:[%s234 + $0xd0] sm:$0xff] %v287
                  %v289 = vld [vmem:[%s233 + $0x1b0] sm:$0xff]
                  %290 = vst [vmem:[%s234 + $0xd8] sm:$0xff] %v289
                  %v291 = vld [vmem:[%s233 + $0x1c0] sm:$0xff]
                  %292 = vst [vmem:[%s234 + $0xe0] sm:$0xff] %v291
                  %v293 = vld [vmem:[%s233 + $0x1d0] sm:$0xff]
                  %294 = vst [vmem:[%s234 + $0xe8] sm:$0xff] %v293
                  %v295 = vld [vmem:[%s233 + $0x1e0] sm:$0xff]
                  %296 = vst [vmem:[%s234 + $0xf0] sm:$0xff] %v295
                  %v297 = vld [vmem:[%s233 + $0x1f0] sm:$0xff]
                  %298 = vst [vmem:[%s234 + $0xf8] sm:$0xff] %v297
                  %v299 = vld [vmem:[%s233 + $0x200] sm:$0xff]
                  %300 = vst [vmem:[%s234 + $0x100] sm:$0xff] %v299
                  %v301 = vld [vmem:[%s233 + $0x210] sm:$0xff]
                  %302 = vst [vmem:[%s234 + $0x108] sm:$0xff] %v301
                  %v303 = vld [vmem:[%s233 + $0x220] sm:$0xff]
                  %304 = vst [vmem:[%s234 + $0x110] sm:$0xff] %v303
                  %v305 = vld [vmem:[%s233 + $0x230] sm:$0xff]
                  %306 = vst [vmem:[%s234 + $0x118] sm:$0xff] %v305
                $region56: #{cbam_forward.7} parent=50 // loop_footer
                  %s232 = sadd.s32 1, %s228
                $region57: #{cbam_forward.7} parent=50 // loop_footer_branch
                  %227 = sbr.rel target = $region53
                $region58: #{cbam_forward.7} parent=50 // loop_exit
                  _
              $region51: #{cbam_forward.7} parent=35 // pred_fallthru
                _
              // Predicated region
              $region59: #{cbam_forward.7} parent=35 // pred_check
                _
              $region60: #{cbam_forward.7} parent=35 // pred_check_branch
                %308 = sbr.rel target = $region62
              $region61: #{cbam_forward.7} parent=35 // pred_region
                _
              $region62: #{cbam_forward.7} parent=35 // pred_fallthru
                _
            $region36: #{cbam_forward.7} parent=31 // pred_fallthru
              _
            // Predicated region
            $region37: #{cbam_forward.7} parent=31 // pred_check
              _
            $region38: #{cbam_forward.7} parent=31 // pred_check_branch
              %143 = sbr.rel target = $region40
            $region39: #{cbam_forward.7} parent=31 // pred_region
              loop: start=0, step=1, limit=1
              $region41: #{cbam_forward.7} parent=39 // loop_pre_header
                _
              $region42: #{cbam_forward.7} parent=39 // loop_header
                %s146 = sphi 0, %s150
                %p147 = scmp.ge.s32.totalorder %s146, 1
                %s151 = sphi %s137, %s137
                %s152 = sphi %s134, %s134
              $region43: #{cbam_forward.7} parent=39 // loop_header_branch
                %149 = sbr.rel (%p147) target = $region47
              $region44: #{cbam_forward.7} parent=39 // loop_body
                %v153 = vld [vmem:[%s151] sm:$0xff]
                %154 = vst [vmem:[%s152] sm:$0xff] %v153
                %v155 = vld [vmem:[%s151 + $0x10] sm:$0xff]
                %156 = vst [vmem:[%s152 + $0x8] sm:$0xff] %v155
                %v157 = vld [vmem:[%s151 + $0x20] sm:$0xff]
                %158 = vst [vmem:[%s152 + $0x10] sm:$0xff] %v157
                %v159 = vld [vmem:[%s151 + $0x30] sm:$0xff]
                %160 = vst [vmem:[%s152 + $0x18] sm:$0xff] %v159
                %v161 = vld [vmem:[%s151 + $0x40] sm:$0xff]
                %162 = vst [vmem:[%s152 + $0x20] sm:$0xff] %v161
                %v163 = vld [vmem:[%s151 + $0x50] sm:$0xff]
                %164 = vst [vmem:[%s152 + $0x28] sm:$0xff] %v163
                %v165 = vld [vmem:[%s151 + $0x60] sm:$0xff]
                %166 = vst [vmem:[%s152 + $0x30] sm:$0xff] %v165
                %v167 = vld [vmem:[%s151 + $0x70] sm:$0xff]
                %168 = vst [vmem:[%s152 + $0x38] sm:$0xff] %v167
                %v169 = vld [vmem:[%s151 + $0x80] sm:$0xff]
                %170 = vst [vmem:[%s152 + $0x40] sm:$0xff] %v169
                %v171 = vld [vmem:[%s151 + $0x90] sm:$0xff]
                %172 = vst [vmem:[%s152 + $0x48] sm:$0xff] %v171
                %v173 = vld [vmem:[%s151 + $0xa0] sm:$0xff]
                %174 = vst [vmem:[%s152 + $0x50] sm:$0xff] %v173
                %v175 = vld [vmem:[%s151 + $0xb0] sm:$0xff]
                %176 = vst [vmem:[%s152 + $0x58] sm:$0xff] %v175
                %v177 = vld [vmem:[%s151 + $0xc0] sm:$0xff]
                %178 = vst [vmem:[%s152 + $0x60] sm:$0xff] %v177
                %v179 = vld [vmem:[%s151 + $0xd0] sm:$0xff]
                %180 = vst [vmem:[%s152 + $0x68] sm:$0xff] %v179
                %v181 = vld [vmem:[%s151 + $0xe0] sm:$0xff]
                %182 = vst [vmem:[%s152 + $0x70] sm:$0xff] %v181
                %v183 = vld [vmem:[%s151 + $0xf0] sm:$0xff]
                %184 = vst [vmem:[%s152 + $0x78] sm:$0xff] %v183
                %v185 = vld [vmem:[%s151 + $0x100] sm:$0xff]
                %186 = vst [vmem:[%s152 + $0x80] sm:$0xff] %v185
                %v187 = vld [vmem:[%s151 + $0x110] sm:$0xff]
                %188 = vst [vmem:[%s152 + $0x88] sm:$0xff] %v187
                %v189 = vld [vmem:[%s151 + $0x120] sm:$0xff]
                %190 = vst [vmem:[%s152 + $0x90] sm:$0xff] %v189
                %v191 = vld [vmem:[%s151 + $0x130] sm:$0xff]
                %192 = vst [vmem:[%s152 + $0x98] sm:$0xff] %v191
                %v193 = vld [vmem:[%s151 + $0x140] sm:$0xff]
                %194 = vst [vmem:[%s152 + $0xa0] sm:$0xff] %v193
                %v195 = vld [vmem:[%s151 + $0x150] sm:$0xff]
                %196 = vst [vmem:[%s152 + $0xa8] sm:$0xff] %v195
                %v197 = vld [vmem:[%s151 + $0x160] sm:$0xff]
                %198 = vst [vmem:[%s152 + $0xb0] sm:$0xff] %v197
                %v199 = vld [vmem:[%s151 + $0x170] sm:$0xff]
                %200 = vst [vmem:[%s152 + $0xb8] sm:$0xff] %v199
                %v201 = vld [vmem:[%s151 + $0x180] sm:$0xff]
                %202 = vst [vmem:[%s152 + $0xc0] sm:$0xff] %v201
                %v203 = vld [vmem:[%s151 + $0x190] sm:$0xff]
                %204 = vst [vmem:[%s152 + $0xc8] sm:$0xff] %v203
                %v205 = vld [vmem:[%s151 + $0x1a0] sm:$0xff]
                %206 = vst [vmem:[%s152 + $0xd0] sm:$0xff] %v205
                %v207 = vld [vmem:[%s151 + $0x1b0] sm:$0xff]
                %208 = vst [vmem:[%s152 + $0xd8] sm:$0xff] %v207
                %v209 = vld [vmem:[%s151 + $0x1c0] sm:$0xff]
                %210 = vst [vmem:[%s152 + $0xe0] sm:$0xff] %v209
                %v211 = vld [vmem:[%s151 + $0x1d0] sm:$0xff]
                %212 = vst [vmem:[%s152 + $0xe8] sm:$0xff] %v211
                %v213 = vld [vmem:[%s151 + $0x1e0] sm:$0xff]
                %214 = vst [vmem:[%s152 + $0xf0] sm:$0xff] %v213
                %v215 = vld [vmem:[%s151 + $0x1f0] sm:$0xff]
                %216 = vst [vmem:[%s152 + $0xf8] sm:$0xff] %v215
                %v217 = vld [vmem:[%s151 + $0x200] sm:$0xff]
                %218 = vst [vmem:[%s152 + $0x100] sm:$0xff] %v217
                %v219 = vld [vmem:[%s151 + $0x210] sm:$0xff]
                %220 = vst [vmem:[%s152 + $0x108] sm:$0xff] %v219
                %v221 = vld [vmem:[%s151 + $0x220] sm:$0xff]
                %222 = vst [vmem:[%s152 + $0x110] sm:$0xff] %v221
                %v223 = vld [vmem:[%s151 + $0x230] sm:$0xff]
                %224 = vst [vmem:[%s152 + $0x118] sm:$0xff] %v223
              $region45: #{cbam_forward.7} parent=39 // loop_footer
                %s150 = sadd.s32 1, %s146
              $region46: #{cbam_forward.7} parent=39 // loop_footer_branch
                %145 = sbr.rel target = $region42
              $region47: #{cbam_forward.7} parent=39 // loop_exit
                _
            $region40: #{cbam_forward.7} parent=31 // pred_fallthru
              _
          $region32: #{cbam_forward.7} parent=27 // pred_fallthru
            _
          %309 = vnop
        $region28: #{cbam_forward.7} parent=23 // pred_fallthru
          _
      $region24: #{cbam_forward.7} parent=5 // pred_fallthru
        _
      %p310 = scmp.le.s32.totalorder 1, %s9
      %p311 = scmp.lt.s32.totalorder %s9, 3
      %p312 = pnand %p310, %p311
      %p313 = pneg %p312
      // Predicated region
      $region63: #{cbam_forward.7} parent=5 // pred_check
        _
      $region64: #{cbam_forward.7} parent=5 // pred_check_branch
        %315 = sbr.rel (%p312) target = $region66
      $region65: #{cbam_forward.7} parent=5 // pred_region
        %s316 = ssub.s32 %s9, 1
        %s317 = sand.u32 %s43, 1
        %s318 = sand.u32 %s43, 1
        %s319 = smul.addr %s318, 288
        %s320 = scalar_lea.vmem [#allocation2], %s319
        // Predicated region
        $region67: #{cbam_forward.7} parent=65 // pred_check
          %p321 = pneg %p56
        $region68: #{cbam_forward.7} parent=65 // pred_check_branch
          %323 = sbr.rel (%p321) target = $region70
        $region69: #{cbam_forward.7} parent=65 // pred_region
          _
        $region70: #{cbam_forward.7} parent=65 // pred_fallthru
          _
        %p324 = pneg %p30
        %p325 = pneg %p27
        %s326 = sand.u32 %s43, 1
        %s327 = sand.u32 %s43, 1
        %s328 = smul.addr %s327, 288
        %s329 = scalar_lea.vmem [#allocation2], %s328
        %p330 = pneg %p56
        %p331 = pneg %p53
        %p332 = pneg %p77
        %p333 = pneg %p74
        %p334 = pneg %p103
        %p335 = pneg %p100
        %s336 = sand.u32 %s90, 1
        %s337 = sand.u32 %s90, 1
        %s338 = smul.addr %s337, 64
        %s339 = scalar_lea.vmem [#allocation3], %s338
        %s340 = smul.u32 2, %s14
        %s341 = smul.u32 2, %s14
        %v343 = vld [vmem:[%s0] sm:$0xff]
        %v344 = vld [vmem:[%s0 + $0x8] sm:$0xf]
        %v345 = vld [vmem:[%s0 + $0xc] sm:$0xff]
        %v346 = vld [vmem:[%s0 + $0x14] sm:$0xf]
        %v347 = vld [vmem:[%s0 + $0x18] sm:$0xff]
        %v348 = vld [vmem:[%s0 + $0x20] sm:$0xf]
        %v349 = vld [vmem:[%s0 + $0x24] sm:$0xff]
        %v350 = vld [vmem:[%s0 + $0x2c] sm:$0xf]
        %v351 = vld [vmem:[%s320] sm:$0xff]
        %v352 = vld [vmem:[%s320 + $0x8] sm:$0xff]
        %v353 = vld [vmem:[%s320 + $0x10] sm:$0xff]
        %v354 = vld [vmem:[%s320 + $0x18] sm:$0xff]
        %v355 = vld [vmem:[%s320 + $0x20] sm:$0xff]
        %v356 = vld [vmem:[%s320 + $0x28] sm:$0xff]
        %v357 = vld [vmem:[%s320 + $0x30] sm:$0xff]
        %v358 = vld [vmem:[%s320 + $0x38] sm:$0xff]
        %v359 = vld [vmem:[%s320 + $0x40] sm:$0xff]
        %v360 = vld [vmem:[%s320 + $0x48] sm:$0xff]
        %v361 = vld [vmem:[%s320 + $0x50] sm:$0xff]
        %v362 = vld [vmem:[%s320 + $0x58] sm:$0xff]
        %v363 = vld [vmem:[%s320 + $0x60] sm:$0xff]
        %v364 = vld [vmem:[%s320 + $0x68] sm:$0xff]
        %v365 = vld [vmem:[%s320 + $0x70] sm:$0xff]
        %v366 = vld [vmem:[%s320 + $0x78] sm:$0xff]
        %v367 = vld [vmem:[%s320 + $0x80] sm:$0xff]
        %v368 = vld [vmem:[%s320 + $0x88] sm:$0xff]
        %v369 = vld [vmem:[%s320 + $0x90] sm:$0xff]
        %v370 = vld [vmem:[%s320 + $0x98] sm:$0xff]
        %v371 = vld [vmem:[%s320 + $0xa0] sm:$0xff]
        %v372 = vld [vmem:[%s320 + $0xa8] sm:$0xff]
        %v373 = vld [vmem:[%s320 + $0xb0] sm:$0xff]
        %v374 = vld [vmem:[%s320 + $0xb8] sm:$0xff]
        %v375 = vld [vmem:[%s320 + $0xc0] sm:$0xff]
        %v376 = vld [vmem:[%s320 + $0xc8] sm:$0xff]
        %v377 = vld [vmem:[%s320 + $0xd0] sm:$0xff]
        %v378 = vld [vmem:[%s320 + $0xd8] sm:$0xff]
        %v379 = vld [vmem:[%s320 + $0xe0] sm:$0xff]
        %v380 = vld [vmem:[%s320 + $0xe8] sm:$0xff]
        %v381 = vld [vmem:[%s320 + $0xf0] sm:$0xff]
        %v382 = vld [vmem:[%s320 + $0xf8] sm:$0xff]
        %v383 = vld [vmem:[%s320 + $0x100] sm:$0xff]
        %v384 = vld [vmem:[%s320 + $0x108] sm:$0xff]
        %v385 = vld [vmem:[%s320 + $0x110] sm:$0xff]
        %v386 = vld [vmem:[%s320 + $0x118] sm:$0xff]
        %v387 = vld [vmem:[%s2] sm:$0xff]
        %v388 = vld [vmem:[%s2 + $0x8] sm:$0xff]
        %v389 = vld [vmem:[%s2 + $0x10] sm:$0xff]
        %v390 = vld [vmem:[%s2 + $0x18] sm:$0xff]
        %392 = vset.pattern.permute.xlu0 0
        %393 = vperm.xlu0 %392, %v387
        %v394 = vpop.permute.xlu0 %393
        %397 = vset.pattern.permute.xlu0 0
        %398 = vperm.xlu0 %397, %v388
        %v399 = vpop.permute.xlu0 %398
        %402 = vset.pattern.permute.xlu0 0
        %403 = vperm.xlu0 %402, %v389
        %v404 = vpop.permute.xlu0 %403
        %407 = vset.pattern.permute.xlu0 0
        %408 = vperm.xlu0 %407, %v390
        %v409 = vpop.permute.xlu0 %408
        %v419 = vunpack.c.l.b16 %v343
        %v420 = vunpack.c.h.b16 %v343
        %v421 = vunpack.c.l.b16 %v344
        %v422 = vunpack.c.l.b16 %v345
        %v423 = vunpack.c.h.b16 %v345
        %v424 = vunpack.c.l.b16 %v346
        %v425 = vunpack.c.l.b16 %v347
        %v426 = vunpack.c.h.b16 %v347
        %v427 = vunpack.c.l.b16 %v348
        %v428 = vunpack.c.l.b16 %v349
        %v429 = vunpack.c.h.b16 %v349
        %v430 = vunpack.c.l.b16 %v350
        %v431 = vpack.c.b16 %v422, %v419
        %v432 = vpack.c.b16 %v423, %v420
        %v433 = vpack.c.b16 %v424, %v421
        %v434 = vpack.c.b16 %v428, %v425
        %v435 = vpack.c.b16 %v429, %v426
        %v436 = vpack.c.b16 %v430, %v427
        %v477 = vunpack.c.l.b16 %v351
        %v478 = vunpack.c.h.b16 %v351
        %v479 = vunpack.c.l.b16 %v352
        %v480 = vunpack.c.h.b16 %v352
        %v481 = vunpack.c.l.b16 %v353
        %v482 = vunpack.c.h.b16 %v353
        %v483 = vunpack.c.l.b16 %v354
        %v484 = vunpack.c.h.b16 %v354
        %v485 = vunpack.c.l.b16 %v355
        %v486 = vunpack.c.h.b16 %v355
        %v487 = vunpack.c.l.b16 %v356
        %v488 = vunpack.c.h.b16 %v356
        %v489 = vunpack.c.l.b16 %v357
        %v490 = vunpack.c.h.b16 %v357
        %v491 = vunpack.c.l.b16 %v358
        %v492 = vunpack.c.h.b16 %v358
        %v493 = vunpack.c.l.b16 %v359
        %v494 = vunpack.c.h.b16 %v359
        %v495 = vunpack.c.l.b16 %v360
        %v496 = vunpack.c.h.b16 %v360
        %v497 = vunpack.c.l.b16 %v361
        %v498 = vunpack.c.h.b16 %v361
        %v499 = vunpack.c.l.b16 %v362
        %v500 = vunpack.c.h.b16 %v362
        %v501 = vunpack.c.l.b16 %v363
        %v502 = vunpack.c.h.b16 %v363
        %v503 = vunpack.c.l.b16 %v364
        %v504 = vunpack.c.h.b16 %v364
        %v505 = vunpack.c.l.b16 %v365
        %v506 = vunpack.c.h.b16 %v365
        %v507 = vunpack.c.l.b16 %v366
        %v508 = vunpack.c.h.b16 %v366
        %v509 = vunpack.c.l.b16 %v367
        %v510 = vunpack.c.h.b16 %v367
        %v511 = vunpack.c.l.b16 %v368
        %v512 = vunpack.c.h.b16 %v368
        %v513 = vunpack.c.l.b16 %v369
        %v514 = vunpack.c.h.b16 %v369
        %v515 = vunpack.c.l.b16 %v370
        %v516 = vunpack.c.h.b16 %v370
        %v517 = vunpack.c.l.b16 %v371
        %v518 = vunpack.c.h.b16 %v371
        %v519 = vunpack.c.l.b16 %v372
        %v520 = vunpack.c.h.b16 %v372
        %v521 = vunpack.c.l.b16 %v373
        %v522 = vunpack.c.h.b16 %v373
        %v523 = vunpack.c.l.b16 %v374
        %v524 = vunpack.c.h.b16 %v374
        %v525 = vunpack.c.l.b16 %v375
        %v526 = vunpack.c.h.b16 %v375
        %v527 = vunpack.c.l.b16 %v376
        %v528 = vunpack.c.h.b16 %v376
        %v529 = vunpack.c.l.b16 %v377
        %v530 = vunpack.c.h.b16 %v377
        %v531 = vunpack.c.l.b16 %v378
        %v532 = vunpack.c.h.b16 %v378
        %v533 = vunpack.c.l.b16 %v379
        %v534 = vunpack.c.h.b16 %v379
        %v535 = vunpack.c.l.b16 %v380
        %v536 = vunpack.c.h.b16 %v380
        %v537 = vunpack.c.l.b16 %v381
        %v538 = vunpack.c.h.b16 %v381
        %v539 = vunpack.c.l.b16 %v382
        %v540 = vunpack.c.h.b16 %v382
        %v541 = vunpack.c.l.b16 %v383
        %v542 = vunpack.c.h.b16 %v383
        %v543 = vunpack.c.l.b16 %v384
        %v544 = vunpack.c.h.b16 %v384
        %v545 = vunpack.c.l.b16 %v385
        %v546 = vunpack.c.h.b16 %v385
        %v547 = vunpack.c.l.b16 %v386
        %v548 = vunpack.c.h.b16 %v386
        %v549 = vpack.c.b16 %v479, %v477
        %v550 = vpack.c.b16 %v480, %v478
        %v551 = vpack.c.b16 %v483, %v481
        %v552 = vpack.c.b16 %v484, %v482
        %v553 = vpack.c.b16 %v487, %v485
        %v554 = vpack.c.b16 %v488, %v486
        %v555 = vpack.c.b16 %v491, %v489
        %v556 = vpack.c.b16 %v492, %v490
        %v557 = vpack.c.b16 %v495, %v493
        %v558 = vpack.c.b16 %v496, %v494
        %v559 = vpack.c.b16 %v499, %v497
        %v560 = vpack.c.b16 %v500, %v498
        %v561 = vpack.c.b16 %v503, %v501
        %v562 = vpack.c.b16 %v504, %v502
        %v563 = vpack.c.b16 %v507, %v505
        %v564 = vpack.c.b16 %v508, %v506
        %v565 = vpack.c.b16 %v511, %v509
        %v566 = vpack.c.b16 %v512, %v510
        %v567 = vpack.c.b16 %v515, %v513
        %v568 = vpack.c.b16 %v516, %v514
        %v569 = vpack.c.b16 %v519, %v517
        %v570 = vpack.c.b16 %v520, %v518
        %v571 = vpack.c.b16 %v523, %v521
        %v572 = vpack.c.b16 %v524, %v522
        %v573 = vpack.c.b16 %v527, %v525
        %v574 = vpack.c.b16 %v528, %v526
        %v575 = vpack.c.b16 %v531, %v529
        %v576 = vpack.c.b16 %v532, %v530
        %v577 = vpack.c.b16 %v535, %v533
        %v578 = vpack.c.b16 %v536, %v534
        %v579 = vpack.c.b16 %v539, %v537
        %v580 = vpack.c.b16 %v540, %v538
        %v581 = vpack.c.b16 %v543, %v541
        %v582 = vpack.c.b16 %v544, %v542
        %v583 = vpack.c.b16 %v547, %v545
        %v584 = vpack.c.b16 %v548, %v546
        %vm621 = vcmask 261120
        %v623 = vsel %vm621, %v433, 0
        %v626 = vsel %vm621, %v436, 0
        %628 = vmatprep.subr.bf16.mxu0 %v550
        %629 = vmatpush1.bf16.msra.mxu0 %v549
        %630 = vmatprep.subr.bf16.mxu0 %v552
        %631 = vmatpush1.bf16.msra.mxu0 %v551
        %632 = vmatprep.subr.bf16.mxu0 %v554
        %633 = vmatpush1.bf16.msra.mxu0 %v553
        %634 = vmatprep.subr.bf16.mxu0 %v556
        %635 = vmatpush1.bf16.msra.mxu0 %v555
        %636 = vmatprep.subr.bf16.mxu0 %v558
        %637 = vmatpush1.bf16.msra.mxu0 %v557
        %638 = vmatprep.subr.bf16.mxu0 %v560
        %639 = vmatpush1.bf16.msra.mxu0 %v559
        %640 = vmatprep.subr.bf16.mxu0 %v562
        %641 = vmatpush1.bf16.msra.mxu0 %v561
        %642 = vmatprep.subr.bf16.mxu0 %v564
        %643 = vmatpush1.bf16.msra.mxu0 %v563
        %644 = vmatprep.subr.bf16.mxu0 %v566
        %645 = vmatpush1.bf16.msra.mxu0 %v565
        %646 = vmatprep.subr.bf16.mxu0 %v568
        %647 = vmatpush1.bf16.msra.mxu0 %v567
        %648 = vmatprep.subr.bf16.mxu0 %v570
        %649 = vmatpush1.bf16.msra.mxu0 %v569
        %650 = vmatprep.subr.bf16.mxu0 %v572
        %651 = vmatpush1.bf16.msra.mxu0 %v571
        %652 = vmatprep.subr.bf16.mxu0 %v574
        %653 = vmatpush1.bf16.msra.mxu0 %v573
        %654 = vmatprep.subr.bf16.mxu0 %v576
        %655 = vmatpush1.bf16.msra.mxu0 %v575
        %656 = vmatprep.subr.bf16.mxu0 %v578
        %657 = vmatpush1.bf16.msra.mxu0 %v577
        %658 = vmatprep.subr.bf16.mxu0 %v580
        %659 = vmatpush1.bf16.msra.mxu0 %v579
        %660 = vmatprep.mubr.bf16.mxu0 %v432
        %661 = vmatmul.mubr.bf16.gmra.mrb[0].mxu0 %v431
        %v662 = vpop.f32.mrb[0].mxu0
        %v663 = vadd.f32 %v394, %v662
        %v664 = vpop.f32.mrb[0].mxu0
        %v665 = vadd.f32 %v394, %v664
        %v666 = vpop.f32.mrb[0].mxu0
        %v667 = vadd.f32 %v399, %v666
        %v668 = vpop.f32.mrb[0].mxu0
        %v669 = vadd.f32 %v399, %v668
        %670 = vmatprep.mubr.bf16.mxu0 %v435
        %671 = vmatmul.mubr.bf16.gmra.mrb[0].mxu0 %v434
        %v672 = vpop.f32.mrb[0].mxu0
        %v673 = vadd.f32 %v404, %v672
        %v674 = vpop.f32.mrb[0].mxu0
        %v675 = vadd.f32 %v404, %v674
        %v676 = vpop.f32.mrb[0].mxu0
        %v677 = vadd.f32 %v409, %v676
        %v678 = vpop.f32.mrb[0].mxu0
        %v679 = vadd.f32 %v409, %v678
        %680 = vdwg.mxu0
        %681 = vmatprep.subr.bf16.mxu0 %v582
        %682 = vmatpush1.bf16.msra.mxu0 %v581
        %683 = vmatprep.subr.bf16.mxu0 %v584
        %684 = vmatpush1.bf16.msra.mxu0 %v583
        %685 = vmatprep.subr.bf16.mxu0 0
        %686 = vmatpush1.bf16.msra.mxu0 0
        %687 = vmatprep.subr.bf16.mxu0 0
        %688 = vmatpush1.bf16.msra.mxu0 0
        %689 = vmatprep.subr.bf16.mxu0 0
        %690 = vmatpush1.bf16.msra.mxu0 0
        %691 = vmatprep.subr.bf16.mxu0 0
        %692 = vmatpush1.bf16.msra.mxu0 0
        %693 = vmatprep.subr.bf16.mxu0 0
        %694 = vmatpush1.bf16.msra.mxu0 0
        %695 = vmatprep.subr.bf16.mxu0 0
        %696 = vmatpush1.bf16.msra.mxu0 0
        %697 = vmatprep.subr.bf16.mxu0 0
        %698 = vmatpush1.bf16.msra.mxu0 0
        %699 = vmatprep.subr.bf16.mxu0 0
        %700 = vmatpush1.bf16.msra.mxu0 0
        %701 = vmatprep.subr.bf16.mxu0 0
        %702 = vmatpush1.bf16.msra.mxu0 0
        %703 = vmatprep.subr.bf16.mxu0 0
        %704 = vmatpush1.bf16.msra.mxu0 0
        %705 = vmatprep.subr.bf16.mxu0 0
        %706 = vmatpush1.bf16.msra.mxu0 0
        %707 = vmatprep.subr.bf16.mxu0 0
        %708 = vmatpush1.bf16.msra.mxu0 0
        %709 = vmatprep.subr.bf16.mxu0 0
        %710 = vmatpush1.bf16.msra.mxu0 0
        %711 = vmatprep.subr.bf16.mxu0 0
        %712 = vmatpush1.bf16.msra.mxu0 0
        %713 = vmatprep.mubr.bf16.mxu0 0
        %714 = vmatmul.mubr.bf16.gmra.mrb[0].mxu0 %v623
        %v715 = vpop.f32.mrb[0].mxu0
        %v716 = vadd.f32 %v663, %v715
        %v717 = vpop.f32.mrb[0].mxu0
        %v718 = vadd.f32 %v665, %v717
        %v719 = vpop.f32.mrb[0].mxu0
        %v720 = vadd.f32 %v667, %v719
        %v721 = vpop.f32.mrb[0].mxu0
        %v722 = vadd.f32 %v669, %v721
        %723 = vmatprep.mubr.bf16.mxu0 0
        %724 = vmatmul.mubr.bf16.gmra.mrb[0].mxu0 %v626
        %v725 = vpop.f32.mrb[0].mxu0
        %v726 = vadd.f32 %v673, %v725
        %v727 = vpop.f32.mrb[0].mxu0
        %v728 = vadd.f32 %v675, %v727
        %v729 = vpop.f32.mrb[0].mxu0
        %v730 = vadd.f32 %v677, %v729
        %v731 = vpop.f32.mrb[0].mxu0
        %v732 = vadd.f32 %v679, %v731
        %733 = vdwg.mxu0
        %734 = vst [vmem:[%s339] sm:$0xff] %v716
        %735 = vst [vmem:[%s339 + $0x8] sm:$0xff] %v718
        %736 = vst [vmem:[%s339 + $0x10] sm:$0xff] %v720
        %737 = vst [vmem:[%s339 + $0x18] sm:$0xff] %v722
        %738 = vst [vmem:[%s339 + $0x20] sm:$0xff] %v726
        %739 = vst [vmem:[%s339 + $0x28] sm:$0xff] %v728
        %740 = vst [vmem:[%s339 + $0x30] sm:$0xff] %v730
        %741 = vst [vmem:[%s339 + $0x38] sm:$0xff] %v732
        %s742 = sand.u32 %s90, 1
        %s743 = sand.u32 %s90, 1
        %s744 = smul.addr %s743, 64
        %s745 = scalar_lea.vmem [#allocation3], %s744
        // Predicated region
        $region71: #{cbam_forward.7} parent=65 // pred_check
          %p746 = pneg %p100
        $region72: #{cbam_forward.7} parent=65 // pred_check_branch
          %748 = sbr.rel (%p746) target = $region74
        $region73: #{cbam_forward.7} parent=65 // pred_region
          %s749 = smul.u32 2, %s14
          %s750 = smul.addr %s749, 8
          %s751 = scalar_lea.vmem %s3, %s750
          // Predicated region
          $region75: #{cbam_forward.7} parent=73 // pred_check
            _
          $region76: #{cbam_forward.7} parent=73 // pred_check_branch
            %753 = sbr.rel (0) target = $region78
          $region77: #{cbam_forward.7} parent=73 // pred_region
            // Predicated region
            $region79: #{cbam_forward.7} parent=77 // pred_check
              _
            $region80: #{cbam_forward.7} parent=77 // pred_check_branch
              %755 = sbr.rel (0) target = $region82
            $region81: #{cbam_forward.7} parent=77 // pred_region
              loop: start=0, step=1, limit=1
              $region83: #{cbam_forward.7} parent=81 // loop_pre_header
                _
              $region84: #{cbam_forward.7} parent=81 // loop_header
                %s757 = sphi 0, %s761
                %p758 = scmp.ge.s32.totalorder %s757, 1
                %s762 = sphi %s745, %s745
                %s763 = sphi %s751, %s751
              $region85: #{cbam_forward.7} parent=81 // loop_header_branch
                %760 = sbr.rel (%p758) target = $region89
              $region86: #{cbam_forward.7} parent=81 // loop_body
                %v764 = vld [vmem:[%s762] sm:$0xff]
                %765 = vst [vmem:[%s763] sm:$0xff] %v764
                %v766 = vld [vmem:[%s762 + $0x8] sm:$0xff]
                %767 = vst [vmem:[%s763 + $0x8] sm:$0xff] %v766
                %v768 = vld [vmem:[%s762 + $0x10] sm:$0xff]
                %769 = vst [vmem:[%s763 + $0x20] sm:$0xff] %v768
                %v770 = vld [vmem:[%s762 + $0x18] sm:$0xff]
                %771 = vst [vmem:[%s763 + $0x28] sm:$0xff] %v770
                %v772 = vld [vmem:[%s762 + $0x20] sm:$0xff]
                %773 = vst [vmem:[%s763 + $0x40] sm:$0xff] %v772
                %v774 = vld [vmem:[%s762 + $0x28] sm:$0xff]
                %775 = vst [vmem:[%s763 + $0x48] sm:$0xff] %v774
                %v776 = vld [vmem:[%s762 + $0x30] sm:$0xff]
                %777 = vst [vmem:[%s763 + $0x60] sm:$0xff] %v776
                %v778 = vld [vmem:[%s762 + $0x38] sm:$0xff]
                %779 = vst [vmem:[%s763 + $0x68] sm:$0xff] %v778
              $region87: #{cbam_forward.7} parent=81 // loop_footer
                %s761 = sadd.s32 1, %s757
              $region88: #{cbam_forward.7} parent=81 // loop_footer_branch
                %756 = sbr.rel target = $region84
              $region89: #{cbam_forward.7} parent=81 // loop_exit
                _
            $region82: #{cbam_forward.7} parent=77 // pred_fallthru
              _
            // Predicated region
            $region90: #{cbam_forward.7} parent=77 // pred_check
              _
            $region91: #{cbam_forward.7} parent=77 // pred_check_branch
              %781 = sbr.rel target = $region93
            $region92: #{cbam_forward.7} parent=77 // pred_region
              _
            $region93: #{cbam_forward.7} parent=77 // pred_fallthru
              _
          $region78: #{cbam_forward.7} parent=73 // pred_fallthru
            _
          %782 = vnop
        $region74: #{cbam_forward.7} parent=65 // pred_fallthru
          _
      $region66: #{cbam_forward.7} parent=5 // pred_fallthru
        _
      %p783 = scmp.le.s32.totalorder 2, %s9
      // Predicated region
      $region94: #{cbam_forward.7} parent=5 // pred_check
        %p784 = pneg %p783
      $region95: #{cbam_forward.7} parent=5 // pred_check_branch
        %786 = sbr.rel (%p784) target = $region97
      $region96: #{cbam_forward.7} parent=5 // pred_region
        %s787 = ssub.s32 %s9, 2
        // Predicated region
        $region98: #{cbam_forward.7} parent=96 // pred_check
          %p788 = pneg %p106
        $region99: #{cbam_forward.7} parent=96 // pred_check_branch
          %790 = sbr.rel (%p788) target = $region101
        $region100: #{cbam_forward.7} parent=96 // pred_region
          %s791 = sand.u32 %s91, 1
          %s792 = sand.u32 %s91, 1
          %s793 = smul.addr %s792, 64
          %s794 = scalar_lea.vmem [#allocation3], %s793
        $region101: #{cbam_forward.7} parent=96 // pred_fallthru
          _
      $region97: #{cbam_forward.7} parent=5 // pred_fallthru
        _
    $region6: #{cbam_forward.7} parent=1 // loop_footer
      %s13 = sadd.s32 1, %s9
    $region7: #{cbam_forward.7} parent=1 // loop_footer_branch
      %8 = sbr.rel target = $region3
    $region8: #{cbam_forward.7} parent=1 // loop_exit
      _

// kernel: cbam_forward.8
$region0: #{cbam_forward.8}
  #allocation0 [shape = 'u32[]', space=smem, size = 0x4, offset = 0x4, fixed_abs, tag = 'smem constant byte address 0x4 - core index']
  #allocation1 [shape = 'u32[144,128]{1,0:T(1,128)}', space=vmem, size = 0x12000, scoped, tag = 'internal scratch']
  %s0 = inlined_call_operand.vmem [shape: bf16[32,160], index: 0, kind: input, shape index: {}]
  %s1 = inlined_call_operand.vmem [shape: bf16[160,512], index: 1, kind: input, shape index: {}]
  %s2 = inlined_call_operand.vmem [shape: f32[32,1], index: 2, kind: input, shape index: {}]
  %s3 = inlined_call_operand.vmem [shape: f32[32,512], index: 3, kind: output, shape index: {}]
  %s4 = sld [smem:[#allocation0]]
  $region102: #{cbam_forward.8} parent=0
    _
  %s6 = ssub.s32 1, %s4
  %s7 = scalar_select 0, %s6, %s4
  $region1: #{cbam_forward.8} parent=0
    #allocation2 [shape = 'u8[163840]{0}', space=vmem, size = 0x28000, scoped, tag = 'input window, operand 1']
    #allocation3 [shape = 'u8[65536]{0}', space=vmem, size = 0x10000, scoped, tag = 'output window, operand 0']
    loop: start=0, step=1, limit=4
    $region2: #{cbam_forward.8} parent=1 // loop_pre_header
      _
    $region3: #{cbam_forward.8} parent=1 // loop_header
      %s9 = sphi 0, %s13
      %p10 = scmp.ge.s32.totalorder %s9, 4
      %s17 = sphi 0, %s17
      %s19 = sphi 0, %s17
      %s20 = sphi 0, %s19
      %s34 = sphi 0, %s20
      %s40 = sphi 0, %s42
      %s43 = sphi 0, %s40
      %s44 = sphi 0, %s43
      %s60 = sphi 0, %s44
      %s64 = sphi 0, %s64
      %s66 = sphi 0, %s64
      %s67 = sphi 0, %s66
      %s81 = sphi 0, %s67
      %s87 = sphi 0, %s89
      %s90 = sphi 0, %s87
      %s91 = sphi 0, %s90
      %s107 = sphi 0, %s91
    $region4: #{cbam_forward.8} parent=1 // loop_header_branch
      %12 = sbr.rel (%p10) target = $region8
    $region5: #{cbam_forward.8} parent=1 // loop_body
      %s14 = ssub.s32 %s9, 1
      %s15 = ssub.s32 %s9, 2
      %s16 = sadd.s32 %s9, 1
      %s18 = sadd.s32 %s17, 1
      %p21 = scmp.eq.s32.totalorder %s9, 1
      %p22 = scmp.ne.s32.totalorder %s17, %s19
      %p23 = scmp.eq.s32.totalorder %s9, 0
      %p24 = por %p22, %p23
      %p25 = scmp.ne.s32.totalorder %s17, %s19
      %p26 = scmp.eq.s32.totalorder %s14, 1
      %p27 = por %p25, %p26
      %p28 = scmp.ne.s32.totalorder %s19, %s20
      %p29 = scmp.eq.s32.totalorder %s14, 0
      %p30 = por %p28, %p29
      %p31 = scmp.ne.s32.totalorder %s19, %s20
      %p32 = scmp.eq.s32.totalorder %s15, 1
      %p33 = por %p31, %p32
      %p35 = scmp.ne.s32.totalorder %s20, %s34
      %p36 = scmp.eq.s32.totalorder %s15, 0
      %p37 = por %p35, %p36
      %s38 = ssub.s32 %s9, %s16
      %p39 = scmp.eq.s32.totalorder %s38, 0
      %s41 = sadd.s32 %s40, 1
      %s42 = scalar_select %p39, %s40, %s41
      %p45 = pneg %p39
      %p46 = scmp.eq.s32.totalorder %s9, 1
      %p47 = por %p45, %p46
      %p48 = scmp.ne.s32.totalorder %s40, %s43
      %p49 = scmp.eq.s32.totalorder %s9, 0
      %p50 = por %p48, %p49
      %p51 = scmp.ne.s32.totalorder %s40, %s43
      %p52 = scmp.eq.s32.totalorder %s14, 1
      %p53 = por %p51, %p52
      %p54 = scmp.ne.s32.totalorder %s43, %s44
      %p55 = scmp.eq.s32.totalorder %s14, 0
      %p56 = por %p54, %p55
      %p57 = scmp.ne.s32.totalorder %s43, %s44
      %p58 = scmp.eq.s32.totalorder %s15, 1
      %p59 = por %p57, %p58
      %p61 = scmp.ne.s32.totalorder %s44, %s60
      %p62 = scmp.eq.s32.totalorder %s15, 0
      %p63 = por %p61, %p62
      %s65 = sadd.s32 %s64, 1
      %p68 = scmp.eq.s32.totalorder %s9, 1
      %p69 = scmp.ne.s32.totalorder %s64, %s66
      %p70 = scmp.eq.s32.totalorder %s9, 0
      %p71 = por %p69, %p70
      %p72 = scmp.ne.s32.totalorder %s64, %s66
      %p73 = scmp.eq.s32.totalorder %s14, 1
      %p74 = por %p72, %p73
      %p75 = scmp.ne.s32.totalorder %s66, %s67
      %p76 = scmp.eq.s32.totalorder %s14, 0
      %p77 = por %p75, %p76
      %p78 = scmp.ne.s32.totalorder %s66, %s67
      %p79 = scmp.eq.s32.totalorder %s15, 1
      %p80 = por %p78, %p79
      %p82 = scmp.ne.s32.totalorder %s67, %s81
      %p83 = scmp.eq.s32.totalorder %s15, 0
      %p84 = por %p82, %p83
      %s85 = ssub.s32 %s9, %s16
      %p86 = scmp.eq.s32.totalorder %s85, 0
      %s88 = sadd.s32 %s87, 1
      %s89 = scalar_select %p86, %s87, %s88
      %p92 = pneg %p86
      %p93 = scmp.eq.s32.totalorder %s9, 1
      %p94 = por %p92, %p93
      %p95 = scmp.ne.s32.totalorder %s87, %s90
      %p96 = scmp.eq.s32.totalorder %s9, 0
      %p97 = por %p95, %p96
      %p98 = scmp.ne.s32.totalorder %s87, %s90
      %p99 = scmp.eq.s32.totalorder %s14, 1
      %p100 = por %p98, %p99
      %p101 = scmp.ne.s32.totalorder %s90, %s91
      %p102 = scmp.eq.s32.totalorder %s14, 0
      %p103 = por %p101, %p102
      %p104 = scmp.ne.s32.totalorder %s90, %s91
      %p105 = scmp.eq.s32.totalorder %s15, 1
      %p106 = por %p104, %p105
      %p108 = scmp.ne.s32.totalorder %s91, %s107
      %p109 = scmp.eq.s32.totalorder %s15, 0
      %p110 = por %p108, %p109
      %p111 = scmp.le.s32.totalorder 1, %s9
      %p112 = scmp.lt.s32.totalorder %s9, 3
      %p113 = pnand %p111, %p112
      %p114 = pneg %p113
      // Predicated region
      $region9: #{cbam_forward.8} parent=5 // pred_check
        _
      $region10: #{cbam_forward.8} parent=5 // pred_check_branch
        %116 = sbr.rel (%p113) target = $region12
      $region11: #{cbam_forward.8} parent=5 // pred_region
        %s117 = ssub.s32 %s9, 1
        // Predicated region
        $region13: #{cbam_forward.8} parent=11 // pred_check
          %p118 = pneg %p30
        $region14: #{cbam_forward.8} parent=11 // pred_check_branch
          %120 = sbr.rel (%p118) target = $region16
        $region15: #{cbam_forward.8} parent=11 // pred_region
          _
        $region16: #{cbam_forward.8} parent=11 // pred_fallthru
          _
        // Predicated region
        $region17: #{cbam_forward.8} parent=11 // pred_check
          %p121 = pneg %p77
        $region18: #{cbam_forward.8} parent=11 // pred_check_branch
          %123 = sbr.rel (%p121) target = $region20
        $region19: #{cbam_forward.8} parent=11 // pred_region
          _
        $region20: #{cbam_forward.8} parent=11 // pred_fallthru
          _
      $region12: #{cbam_forward.8} parent=5 // pred_fallthru
        _
      %p124 = scmp.lt.s32.totalorder %s9, 2
      // Predicated region
      $region21: #{cbam_forward.8} parent=5 // pred_check
        %p125 = pneg %p124
      $region22: #{cbam_forward.8} parent=5 // pred_check_branch
        %127 = sbr.rel (%p125) target = $region24
      $region23: #{cbam_forward.8} parent=5 // pred_region
        // Predicated region
        $region25: #{cbam_forward.8} parent=23 // pred_check
          %p128 = pneg %p50
        $region26: #{cbam_forward.8} parent=23 // pred_check_branch
          %130 = sbr.rel (%p128) target = $region28
        $region27: #{cbam_forward.8} parent=23 // pred_region
          %s131 = sand.u32 %s40, 1
          %s132 = sand.u32 %s40, 1
          %s133 = smul.addr %s132, 160
          %s134 = scalar_lea.vmem [#allocation2], %s133
          %s135 = smul.u32 2, %s9
          %s136 = smul.addr %s135, 4
          %s137 = scalar_lea.vmem %s1, %s136
          // Predicated region
          $region29: #{cbam_forward.8} parent=27 // pred_check
            _
          $region30: #{cbam_forward.8} parent=27 // pred_check_branch
            %139 = sbr.rel (0) target = $region32
          $region31: #{cbam_forward.8} parent=27 // pred_region
            // Predicated region
            $region33: #{cbam_forward.8} parent=31 // pred_check
              _
            $region34: #{cbam_forward.8} parent=31 // pred_check_branch
              %141 = sbr.rel (0) target = $region36
            $region35: #{cbam_forward.8} parent=31 // pred_region
              // Predicated region
              $region48: #{cbam_forward.8} parent=35 // pred_check
                _
              $region49: #{cbam_forward.8} parent=35 // pred_check_branch
                %194 = sbr.rel (0) target = $region51
              $region50: #{cbam_forward.8} parent=35 // pred_region
                loop: start=0, step=1, limit=1
                $region52: #{cbam_forward.8} parent=50 // loop_pre_header
                  _
                $region53: #{cbam_forward.8} parent=50 // loop_header
                  %s196 = sphi 0, %s200
                  %p197 = scmp.ge.s32.totalorder %s196, 1
                  %s201 = sphi %s137, %s137
                  %s202 = sphi %s134, %s134
                $region54: #{cbam_forward.8} parent=50 // loop_header_branch
                  %199 = sbr.rel (%p197) target = $region58
                $region55: #{cbam_forward.8} parent=50 // loop_body
                  %v203 = vld [vmem:[%s201] sm:$0xff]
                  %204 = vst [vmem:[%s202] sm:$0xff] %v203
                  %v205 = vld [vmem:[%s201 + $0x10] sm:$0xff]
                  %206 = vst [vmem:[%s202 + $0x8] sm:$0xff] %v205
                  %v207 = vld [vmem:[%s201 + $0x20] sm:$0xff]
                  %208 = vst [vmem:[%s202 + $0x10] sm:$0xff] %v207
                  %v209 = vld [vmem:[%s201 + $0x30] sm:$0xff]
                  %210 = vst [vmem:[%s202 + $0x18] sm:$0xff] %v209
                  %v211 = vld [vmem:[%s201 + $0x40] sm:$0xff]
                  %212 = vst [vmem:[%s202 + $0x20] sm:$0xff] %v211
                  %v213 = vld [vmem:[%s201 + $0x50] sm:$0xff]
                  %214 = vst [vmem:[%s202 + $0x28] sm:$0xff] %v213
                  %v215 = vld [vmem:[%s201 + $0x60] sm:$0xff]
                  %216 = vst [vmem:[%s202 + $0x30] sm:$0xff] %v215
                  %v217 = vld [vmem:[%s201 + $0x70] sm:$0xff]
                  %218 = vst [vmem:[%s202 + $0x38] sm:$0xff] %v217
                  %v219 = vld [vmem:[%s201 + $0x80] sm:$0xff]
                  %220 = vst [vmem:[%s202 + $0x40] sm:$0xff] %v219
                  %v221 = vld [vmem:[%s201 + $0x90] sm:$0xff]
                  %222 = vst [vmem:[%s202 + $0x48] sm:$0xff] %v221
                  %v223 = vld [vmem:[%s201 + $0xa0] sm:$0xff]
                  %224 = vst [vmem:[%s202 + $0x50] sm:$0xff] %v223
                  %v225 = vld [vmem:[%s201 + $0xb0] sm:$0xff]
                  %226 = vst [vmem:[%s202 + $0x58] sm:$0xff] %v225
                  %v227 = vld [vmem:[%s201 + $0xc0] sm:$0xff]
                  %228 = vst [vmem:[%s202 + $0x60] sm:$0xff] %v227
                  %v229 = vld [vmem:[%s201 + $0xd0] sm:$0xff]
                  %230 = vst [vmem:[%s202 + $0x68] sm:$0xff] %v229
                  %v231 = vld [vmem:[%s201 + $0xe0] sm:$0xff]
                  %232 = vst [vmem:[%s202 + $0x70] sm:$0xff] %v231
                  %v233 = vld [vmem:[%s201 + $0xf0] sm:$0xff]
                  %234 = vst [vmem:[%s202 + $0x78] sm:$0xff] %v233
                  %v235 = vld [vmem:[%s201 + $0x100] sm:$0xff]
                  %236 = vst [vmem:[%s202 + $0x80] sm:$0xff] %v235
                  %v237 = vld [vmem:[%s201 + $0x110] sm:$0xff]
                  %238 = vst [vmem:[%s202 + $0x88] sm:$0xff] %v237
                  %v239 = vld [vmem:[%s201 + $0x120] sm:$0xff]
                  %240 = vst [vmem:[%s202 + $0x90] sm:$0xff] %v239
                  %v241 = vld [vmem:[%s201 + $0x130] sm:$0xff]
                  %242 = vst [vmem:[%s202 + $0x98] sm:$0xff] %v241
                $region56: #{cbam_forward.8} parent=50 // loop_footer
                  %s200 = sadd.s32 1, %s196
                $region57: #{cbam_forward.8} parent=50 // loop_footer_branch
                  %195 = sbr.rel target = $region53
                $region58: #{cbam_forward.8} parent=50 // loop_exit
                  _
              $region51: #{cbam_forward.8} parent=35 // pred_fallthru
                _
              // Predicated region
              $region59: #{cbam_forward.8} parent=35 // pred_check
                _
              $region60: #{cbam_forward.8} parent=35 // pred_check_branch
                %244 = sbr.rel target = $region62
              $region61: #{cbam_forward.8} parent=35 // pred_region
                _
              $region62: #{cbam_forward.8} parent=35 // pred_fallthru
                _
            $region36: #{cbam_forward.8} parent=31 // pred_fallthru
              _
            // Predicated region
            $region37: #{cbam_forward.8} parent=31 // pred_check
              _
            $region38: #{cbam_forward.8} parent=31 // pred_check_branch
              %143 = sbr.rel target = $region40
            $region39: #{cbam_forward.8} parent=31 // pred_region
              loop: start=0, step=1, limit=1
              $region41: #{cbam_forward.8} parent=39 // loop_pre_header
                _
              $region42: #{cbam_forward.8} parent=39 // loop_header
                %s146 = sphi 0, %s150
                %p147 = scmp.ge.s32.totalorder %s146, 1
                %s151 = sphi %s137, %s137
                %s152 = sphi %s134, %s134
              $region43: #{cbam_forward.8} parent=39 // loop_header_branch
                %149 = sbr.rel (%p147) target = $region47
              $region44: #{cbam_forward.8} parent=39 // loop_body
                %v153 = vld [vmem:[%s151] sm:$0xff]
                %154 = vst [vmem:[%s152] sm:$0xff] %v153
                %v155 = vld [vmem:[%s151 + $0x10] sm:$0xff]
                %156 = vst [vmem:[%s152 + $0x8] sm:$0xff] %v155
                %v157 = vld [vmem:[%s151 + $0x20] sm:$0xff]
                %158 = vst [vmem:[%s152 + $0x10] sm:$0xff] %v157
                %v159 = vld [vmem:[%s151 + $0x30] sm:$0xff]
                %160 = vst [vmem:[%s152 + $0x18] sm:$0xff] %v159
                %v161 = vld [vmem:[%s151 + $0x40] sm:$0xff]
                %162 = vst [vmem:[%s152 + $0x20] sm:$0xff] %v161
                %v163 = vld [vmem:[%s151 + $0x50] sm:$0xff]
                %164 = vst [vmem:[%s152 + $0x28] sm:$0xff] %v163
                %v165 = vld [vmem:[%s151 + $0x60] sm:$0xff]
                %166 = vst [vmem:[%s152 + $0x30] sm:$0xff] %v165
                %v167 = vld [vmem:[%s151 + $0x70] sm:$0xff]
                %168 = vst [vmem:[%s152 + $0x38] sm:$0xff] %v167
                %v169 = vld [vmem:[%s151 + $0x80] sm:$0xff]
                %170 = vst [vmem:[%s152 + $0x40] sm:$0xff] %v169
                %v171 = vld [vmem:[%s151 + $0x90] sm:$0xff]
                %172 = vst [vmem:[%s152 + $0x48] sm:$0xff] %v171
                %v173 = vld [vmem:[%s151 + $0xa0] sm:$0xff]
                %174 = vst [vmem:[%s152 + $0x50] sm:$0xff] %v173
                %v175 = vld [vmem:[%s151 + $0xb0] sm:$0xff]
                %176 = vst [vmem:[%s152 + $0x58] sm:$0xff] %v175
                %v177 = vld [vmem:[%s151 + $0xc0] sm:$0xff]
                %178 = vst [vmem:[%s152 + $0x60] sm:$0xff] %v177
                %v179 = vld [vmem:[%s151 + $0xd0] sm:$0xff]
                %180 = vst [vmem:[%s152 + $0x68] sm:$0xff] %v179
                %v181 = vld [vmem:[%s151 + $0xe0] sm:$0xff]
                %182 = vst [vmem:[%s152 + $0x70] sm:$0xff] %v181
                %v183 = vld [vmem:[%s151 + $0xf0] sm:$0xff]
                %184 = vst [vmem:[%s152 + $0x78] sm:$0xff] %v183
                %v185 = vld [vmem:[%s151 + $0x100] sm:$0xff]
                %186 = vst [vmem:[%s152 + $0x80] sm:$0xff] %v185
                %v187 = vld [vmem:[%s151 + $0x110] sm:$0xff]
                %188 = vst [vmem:[%s152 + $0x88] sm:$0xff] %v187
                %v189 = vld [vmem:[%s151 + $0x120] sm:$0xff]
                %190 = vst [vmem:[%s152 + $0x90] sm:$0xff] %v189
                %v191 = vld [vmem:[%s151 + $0x130] sm:$0xff]
                %192 = vst [vmem:[%s152 + $0x98] sm:$0xff] %v191
              $region45: #{cbam_forward.8} parent=39 // loop_footer
                %s150 = sadd.s32 1, %s146
              $region46: #{cbam_forward.8} parent=39 // loop_footer_branch
                %145 = sbr.rel target = $region42
              $region47: #{cbam_forward.8} parent=39 // loop_exit
                _
            $region40: #{cbam_forward.8} parent=31 // pred_fallthru
              _
          $region32: #{cbam_forward.8} parent=27 // pred_fallthru
            _
          %245 = vnop
        $region28: #{cbam_forward.8} parent=23 // pred_fallthru
          _
      $region24: #{cbam_forward.8} parent=5 // pred_fallthru
        _
      %p246 = scmp.le.s32.totalorder 1, %s9
      %p247 = scmp.lt.s32.totalorder %s9, 3
      %p248 = pnand %p246, %p247
      %p249 = pneg %p248
      // Predicated region
      $region63: #{cbam_forward.8} parent=5 // pred_check
        _
      $region64: #{cbam_forward.8} parent=5 // pred_check_branch
        %251 = sbr.rel (%p248) target = $region66
      $region65: #{cbam_forward.8} parent=5 // pred_region
        %s252 = ssub.s32 %s9, 1
        %s253 = sand.u32 %s43, 1
        %s254 = sand.u32 %s43, 1
        %s255 = smul.addr %s254, 160
        %s256 = scalar_lea.vmem [#allocation2], %s255
        // Predicated region
        $region67: #{cbam_forward.8} parent=65 // pred_check
          %p257 = pneg %p56
        $region68: #{cbam_forward.8} parent=65 // pred_check_branch
          %259 = sbr.rel (%p257) target = $region70
        $region69: #{cbam_forward.8} parent=65 // pred_region
          _
        $region70: #{cbam_forward.8} parent=65 // pred_fallthru
          _
        %p260 = pneg %p30
        %p261 = pneg %p27
        %s262 = sand.u32 %s43, 1
        %s263 = sand.u32 %s43, 1
        %s264 = smul.addr %s263, 160
        %s265 = scalar_lea.vmem [#allocation2], %s264
        %p266 = pneg %p56
        %p267 = pneg %p53
        %p268 = pneg %p77
        %p269 = pneg %p74
        %p270 = pneg %p103
        %p271 = pneg %p100
        %s272 = sand.u32 %s90, 1
        %s273 = sand.u32 %s90, 1
        %s274 = smul.addr %s273, 64
        %s275 = scalar_lea.vmem [#allocation3], %s274
        %s276 = smul.u32 2, %s14
        %s277 = smul.u32 2, %s14
        %v279 = vld [vmem:[%s0] sm:$0xff]
        %v280 = vld [vmem:[%s0 + $0x8] sm:$0xff]
        %v281 = vld [vmem:[%s0 + $0x10] sm:$0xff]
        %v282 = vld [vmem:[%s0 + $0x18] sm:$0xff]
        %v283 = vld [vmem:[%s256] sm:$0xff]
        %v284 = vld [vmem:[%s256 + $0x8] sm:$0xff]
        %v285 = vld [vmem:[%s256 + $0x10] sm:$0xff]
        %v286 = vld [vmem:[%s256 + $0x18] sm:$0xff]
        %v287 = vld [vmem:[%s256 + $0x20] sm:$0xff]
        %v288 = vld [vmem:[%s256 + $0x28] sm:$0xff]
        %v289 = vld [vmem:[%s256 + $0x30] sm:$0xff]
        %v290 = vld [vmem:[%s256 + $0x38] sm:$0xff]
        %v291 = vld [vmem:[%s256 + $0x40] sm:$0xff]
        %v292 = vld [vmem:[%s256 + $0x48] sm:$0xff]
        %v293 = vld [vmem:[%s256 + $0x50] sm:$0xff]
        %v294 = vld [vmem:[%s256 + $0x58] sm:$0xff]
        %v295 = vld [vmem:[%s256 + $0x60] sm:$0xff]
        %v296 = vld [vmem:[%s256 + $0x68] sm:$0xff]
        %v297 = vld [vmem:[%s256 + $0x70] sm:$0xff]
        %v298 = vld [vmem:[%s256 + $0x78] sm:$0xff]
        %v299 = vld [vmem:[%s256 + $0x80] sm:$0xff]
        %v300 = vld [vmem:[%s256 + $0x88] sm:$0xff]
        %v301 = vld [vmem:[%s256 + $0x90] sm:$0xff]
        %v302 = vld [vmem:[%s256 + $0x98] sm:$0xff]
        %v303 = vld [vmem:[%s2] sm:$0xff]
        %v304 = vld [vmem:[%s2 + $0x8] sm:$0xff]
        %v305 = vld [vmem:[%s2 + $0x10] sm:$0xff]
        %v306 = vld [vmem:[%s2 + $0x18] sm:$0xff]
        %308 = vset.pattern.permute.xlu0 0
        %309 = vperm.xlu0 %308, %v303
        %v310 = vpop.permute.xlu0 %309
        %313 = vset.pattern.permute.xlu0 0
        %314 = vperm.xlu0 %313, %v304
        %v315 = vpop.permute.xlu0 %314
        %318 = vset.pattern.permute.xlu0 0
        %319 = vperm.xlu0 %318, %v305
        %v320 = vpop.permute.xlu0 %319
        %323 = vset.pattern.permute.xlu0 0
        %324 = vperm.xlu0 %323, %v306
        %v325 = vpop.permute.xlu0 %324
        %v331 = vunpack.c.l.b16 %v279
        %v332 = vunpack.c.h.b16 %v279
        %v333 = vunpack.c.l.b16 %v280
        %v334 = vunpack.c.h.b16 %v280
        %v335 = vunpack.c.l.b16 %v281
        %v336 = vunpack.c.h.b16 %v281
        %v337 = vunpack.c.l.b16 %v282
        %v338 = vunpack.c.h.b16 %v282
        %v339 = vpack.c.b16 %v333, %v331
        %v340 = vpack.c.b16 %v334, %v332
        %v341 = vpack.c.b16 %v337, %v335
        %v342 = vpack.c.b16 %v338, %v336
        %v365 = vunpack.c.l.b16 %v283
        %v366 = vunpack.c.h.b16 %v283
        %v367 = vunpack.c.l.b16 %v284
        %v368 = vunpack.c.h.b16 %v284
        %v369 = vunpack.c.l.b16 %v285
        %v370 = vunpack.c.h.b16 %v285
        %v371 = vunpack.c.l.b16 %v286
        %v372 = vunpack.c.h.b16 %v286
        %v373 = vunpack.c.l.b16 %v287
        %v374 = vunpack.c.h.b16 %v287
        %v375 = vunpack.c.l.b16 %v288
        %v376 = vunpack.c.h.b16 %v288
        %v377 = vunpack.c.l.b16 %v289
        %v378 = vunpack.c.h.b16 %v289
        %v379 = vunpack.c.l.b16 %v290
        %v380 = vunpack.c.h.b16 %v290
        %v381 = vunpack.c.l.b16 %v291
        %v382 = vunpack.c.h.b16 %v291
        %v383 = vunpack.c.l.b16 %v292
        %v384 = vunpack.c.h.b16 %v292
        %v385 = vunpack.c.l.b16 %v293
        %v386 = vunpack.c.h.b16 %v293
        %v387 = vunpack.c.l.b16 %v294
        %v388 = vunpack.c.h.b16 %v294
        %v389 = vunpack.c.l.b16 %v295
        %v390 = vunpack.c.h.b16 %v295
        %v391 = vunpack.c.l.b16 %v296
        %v392 = vunpack.c.h.b16 %v296
        %v393 = vunpack.c.l.b16 %v297
        %v394 = vunpack.c.h.b16 %v297
        %v395 = vunpack.c.l.b16 %v298
        %v396 = vunpack.c.h.b16 %v298
        %v397 = vunpack.c.l.b16 %v299
        %v398 = vunpack.c.h.b16 %v299
        %v399 = vunpack.c.l.b16 %v300
        %v400 = vunpack.c.h.b16 %v300
        %v401 = vunpack.c.l.b16 %v301
        %v402 = vunpack.c.h.b16 %v301
        %v403 = vunpack.c.l.b16 %v302
        %v404 = vunpack.c.h.b16 %v302
        %v405 = vpack.c.b16 %v367, %v365
        %v406 = vpack.c.b16 %v368, %v366
        %v407 = vpack.c.b16 %v371, %v369
        %v408 = vpack.c.b16 %v372, %v370
        %v409 = vpack.c.b16 %v375, %v373
        %v410 = vpack.c.b16 %v376, %v374
        %v411 = vpack.c.b16 %v379, %v377
        %v412 = vpack.c.b16 %v380, %v378
        %v413 = vpack.c.b16 %v383, %v381
        %v414 = vpack.c.b16 %v384, %v382
        %v415 = vpack.c.b16 %v387, %v385
        %v416 = vpack.c.b16 %v388, %v386
        %v417 = vpack.c.b16 %v391, %v389
        %v418 = vpack.c.b16 %v392, %v390
        %v419 = vpack.c.b16 %v395, %v393
        %v420 = vpack.c.b16 %v396, %v394
        %v421 = vpack.c.b16 %v399, %v397
        %v422 = vpack.c.b16 %v400, %v398
        %v423 = vpack.c.b16 %v403, %v401
        %v424 = vpack.c.b16 %v404, %v402
        %vm445 = vcmask 261120
        %v447 = vsel %vm445, %v340, 0
        %v450 = vsel %vm445, %v342, 0
        %452 = vmatprep.subr.bf16.mxu0 %v406
        %453 = vmatpush1.bf16.msra.mxu0 %v405
        %454 = vmatprep.subr.bf16.mxu0 %v408
        %455 = vmatpush1.bf16.msra.mxu0 %v407
        %456 = vmatprep.subr.bf16.mxu0 %v410
        %457 = vmatpush1.bf16.msra.mxu0 %v409
        %458 = vmatprep.subr.bf16.mxu0 %v412
        %459 = vmatpush1.bf16.msra.mxu0 %v411
        %460 = vmatprep.subr.bf16.mxu0 %v414
        %461 = vmatpush1.bf16.msra.mxu0 %v413
        %462 = vmatprep.subr.bf16.mxu0 %v416
        %463 = vmatpush1.bf16.msra.mxu0 %v415
        %464 = vmatprep.subr.bf16.mxu0 %v418
        %465 = vmatpush1.bf16.msra.mxu0 %v417
        %466 = vmatprep.subr.bf16.mxu0 %v420
        %467 = vmatpush1.bf16.msra.mxu0 %v419
        %468 = vmatprep.subr.bf16.mxu0 %v422
        %469 = vmatpush1.bf16.msra.mxu0 %v421
        %470 = vmatprep.subr.bf16.mxu0 %v424
        %471 = vmatpush1.bf16.msra.mxu0 %v423
        %472 = vmatprep.subr.bf16.mxu0 0
        %473 = vmatpush1.bf16.msra.mxu0 0
        %474 = vmatprep.subr.bf16.mxu0 0
        %475 = vmatpush1.bf16.msra.mxu0 0
        %476 = vmatprep.subr.bf16.mxu0 0
        %477 = vmatpush1.bf16.msra.mxu0 0
        %478 = vmatprep.subr.bf16.mxu0 0
        %479 = vmatpush1.bf16.msra.mxu0 0
        %480 = vmatprep.subr.bf16.mxu0 0
        %481 = vmatpush1.bf16.msra.mxu0 0
        %482 = vmatprep.subr.bf16.mxu0 0
        %483 = vmatpush1.bf16.msra.mxu0 0
        %484 = vmatprep.mubr.bf16.mxu0 %v447
        %485 = vmatmul.mubr.bf16.gmra.mrb[0].mxu0 %v339
        %v486 = vpop.f32.mrb[0].mxu0
        %v487 = vadd.f32 %v310, %v486
        %v488 = vpop.f32.mrb[0].mxu0
        %v489 = vadd.f32 %v310, %v488
        %v490 = vpop.f32.mrb[0].mxu0
        %v491 = vadd.f32 %v315, %v490
        %v492 = vpop.f32.mrb[0].mxu0
        %v493 = vadd.f32 %v315, %v492
        %494 = vmatprep.mubr.bf16.mxu0 %v450
        %495 = vmatmul.mubr.bf16.gmra.mrb[0].mxu0 %v341
        %v496 = vpop.f32.mrb[0].mxu0
        %v497 = vadd.f32 %v320, %v496
        %v498 = vpop.f32.mrb[0].mxu0
        %v499 = vadd.f32 %v320, %v498
        %v500 = vpop.f32.mrb[0].mxu0
        %v501 = vadd.f32 %v325, %v500
        %v502 = vpop.f32.mrb[0].mxu0
        %v503 = vadd.f32 %v325, %v502
        %504 = vdwg.mxu0
        %505 = vst [vmem:[%s275] sm:$0xff] %v487
        %506 = vst [vmem:[%s275 + $0x8] sm:$0xff] %v489
        %507 = vst [vmem:[%s275 + $0x10] sm:$0xff] %v491
        %508 = vst [vmem:[%s275 + $0x18] sm:$0xff] %v493
        %509 = vst [vmem:[%s275 + $0x20] sm:$0xff] %v497
        %510 = vst [vmem:[%s275 + $0x28] sm:$0xff] %v499
        %511 = vst [vmem:[%s275 + $0x30] sm:$0xff] %v501
        %512 = vst [vmem:[%s275 + $0x38] sm:$0xff] %v503
        %s513 = sand.u32 %s90, 1
        %s514 = sand.u32 %s90, 1
        %s515 = smul.addr %s514, 64
        %s516 = scalar_lea.vmem [#allocation3], %s515
        // Predicated region
        $region71: #{cbam_forward.8} parent=65 // pred_check
          %p517 = pneg %p100
        $region72: #{cbam_forward.8} parent=65 // pred_check_branch
          %519 = sbr.rel (%p517) target = $region74
        $region73: #{cbam_forward.8} parent=65 // pred_region
          %s520 = smul.u32 2, %s14
          %s521 = smul.addr %s520, 8
          %s522 = scalar_lea.vmem %s3, %s521
          // Predicated region
          $region75: #{cbam_forward.8} parent=73 // pred_check
            _
          $region76: #{cbam_forward.8} parent=73 // pred_check_branch
            %524 = sbr.rel (0) target = $region78
          $region77: #{cbam_forward.8} parent=73 // pred_region
            // Predicated region
            $region79: #{cbam_forward.8} parent=77 // pred_check
              _
            $region80: #{cbam_forward.8} parent=77 // pred_check_branch
              %526 = sbr.rel (0) target = $region82
            $region81: #{cbam_forward.8} parent=77 // pred_region
              loop: start=0, step=1, limit=1
              $region83: #{cbam_forward.8} parent=81 // loop_pre_header
                _
              $region84: #{cbam_forward.8} parent=81 // loop_header
                %s528 = sphi 0, %s532
                %p529 = scmp.ge.s32.totalorder %s528, 1
                %s533 = sphi %s516, %s516
                %s534 = sphi %s522, %s522
              $region85: #{cbam_forward.8} parent=81 // loop_header_branch
                %531 = sbr.rel (%p529) target = $region89
              $region86: #{cbam_forward.8} parent=81 // loop_body
                %v535 = vld [vmem:[%s533] sm:$0xff]
                %536 = vst [vmem:[%s534] sm:$0xff] %v535
                %v537 = vld [vmem:[%s533 + $0x8] sm:$0xff]
                %538 = vst [vmem:[%s534 + $0x8] sm:$0xff] %v537
                %v539 = vld [vmem:[%s533 + $0x10] sm:$0xff]
                %540 = vst [vmem:[%s534 + $0x20] sm:$0xff] %v539
                %v541 = vld [vmem:[%s533 + $0x18] sm:$0xff]
                %542 = vst [vmem:[%s534 + $0x28] sm:$0xff] %v541
                %v543 = vld [vmem:[%s533 + $0x20] sm:$0xff]
                %544 = vst [vmem:[%s534 + $0x40] sm:$0xff] %v543
                %v545 = vld [vmem:[%s533 + $0x28] sm:$0xff]
                %546 = vst [vmem:[%s534 + $0x48] sm:$0xff] %v545
                %v547 = vld [vmem:[%s533 + $0x30] sm:$0xff]
                %548 = vst [vmem:[%s534 + $0x60] sm:$0xff] %v547
                %v549 = vld [vmem:[%s533 + $0x38] sm:$0xff]
                %550 = vst [vmem:[%s534 + $0x68] sm:$0xff] %v549
              $region87: #{cbam_forward.8} parent=81 // loop_footer
                %s532 = sadd.s32 1, %s528
              $region88: #{cbam_forward.8} parent=81 // loop_footer_branch
                %527 = sbr.rel target = $region84
              $region89: #{cbam_forward.8} parent=81 // loop_exit
                _
            $region82: #{cbam_forward.8} parent=77 // pred_fallthru
              _
            // Predicated region
            $region90: #{cbam_forward.8} parent=77 // pred_check
              _
            $region91: #{cbam_forward.8} parent=77 // pred_check_branch
              %552 = sbr.rel target = $region93
            $region92: #{cbam_forward.8} parent=77 // pred_region
              _
            $region93: #{cbam_forward.8} parent=77 // pred_fallthru
              _
          $region78: #{cbam_forward.8} parent=73 // pred_fallthru
            _
          %553 = vnop
        $region74: #{cbam_forward.8} parent=65 // pred_fallthru
          _
      $region66: #{cbam_forward.8} parent=5 // pred_fallthru
        _
      %p554 = scmp.le.s32.totalorder 2, %s9
      // Predicated region
      $region94: #{cbam_forward.8} parent=5 // pred_check
        %p555 = pneg %p554
      $region95: #{cbam_forward.8} parent=5 // pred_check_branch
        %557 = sbr.rel (%p555) target = $region97
      $region96: #{cbam_forward.8} parent=5 // pred_region
        %s558 = ssub.s32 %s9, 2
        // Predicated region
        $region98: #{cbam_forward.8} parent=96 // pred_check
          %p559 = pneg %p106
        $region99: #{cbam_forward.8} parent=96 // pred_check_branch
          %561 = sbr.rel (%p559) target = $region101
        $region100: #{cbam_forward.8} parent=96 // pred_region
          %s562 = sand.u32 %s91, 1
          %s563 = sand.u32 %s91, 1
          %s564 = smul.addr %s563, 64
          %s565 = scalar_lea.vmem [#allocation3], %s564
        $region101: #{cbam_forward.8} parent=96 // pred_fallthru
          _
      $region97: #{cbam_forward.8} parent=5 // pred_fallthru
        _
    $region6: #{cbam_forward.8} parent=1 // loop_footer
      %s13 = sadd.s32 1, %s9
    $region7: #{cbam_forward.8} parent=1 // loop_footer_branch
      %8 = sbr.rel target = $region3
    $region8: #{cbam_forward.8} parent=1 // loop_exit
      _

// kernel: cbam_forward.9
$region0: #{cbam_forward.9}
  #allocation0 [shape = 'u32[]', space=smem, size = 0x4, offset = 0x4, fixed_abs, tag = 'smem constant byte address 0x4 - core index']
  #allocation1 [shape = 'u32[144,128]{1,0:T(1,128)}', space=vmem, size = 0x12000, scoped, tag = 'internal scratch']
  %s0 = inlined_call_operand.vmem [shape: bf16[32,160], index: 0, kind: input, shape index: {}]
  %s1 = inlined_call_operand.vmem [shape: bf16[160,512], index: 1, kind: input, shape index: {}]
  %s2 = inlined_call_operand.vmem [shape: f32[32,1], index: 2, kind: input, shape index: {}]
  %s3 = inlined_call_operand.vmem [shape: f32[32,512], index: 3, kind: input, shape index: {}]
  %s4 = inlined_call_operand.vmem [shape: f32[32,512], index: 4, kind: input, shape index: {}]
  %s5 = inlined_call_operand.vmem [shape: f32[32,512], index: 5, kind: output, shape index: {}]
  %s6 = sld [smem:[#allocation0]]
  $region156: #{cbam_forward.9} parent=0
    _
  %s8 = ssub.s32 1, %s6
  %s9 = scalar_select 0, %s8, %s6
  $region1: #{cbam_forward.9} parent=0
    #allocation2 [shape = 'u8[163840]{0}', space=vmem, size = 0x28000, scoped, tag = 'input window, operand 1']
    #allocation3 [shape = 'u8[65536]{0}', space=vmem, size = 0x10000, scoped, tag = 'input window, operand 3']
    #allocation4 [shape = 'u8[65536]{0}', space=vmem, size = 0x10000, scoped, tag = 'input window, operand 4']
    #allocation5 [shape = 'u8[65536]{0}', space=vmem, size = 0x10000, scoped, tag = 'output window, operand 0']
    loop: start=0, step=1, limit=4
    $region2: #{cbam_forward.9} parent=1 // loop_pre_header
      _
    $region3: #{cbam_forward.9} parent=1 // loop_header
      %s11 = sphi 0, %s15
      %p12 = scmp.ge.s32.totalorder %s11, 4
      %s19 = sphi 0, %s19
      %s21 = sphi 0, %s19
      %s22 = sphi 0, %s21
      %s36 = sphi 0, %s22
      %s42 = sphi 0, %s44
      %s45 = sphi 0, %s42
      %s46 = sphi 0, %s45
      %s62 = sphi 0, %s46
      %s66 = sphi 0, %s66
      %s68 = sphi 0, %s66
      %s69 = sphi 0, %s68
      %s83 = sphi 0, %s69
      %s89 = sphi 0, %s91
      %s92 = sphi 0, %s89
      %s93 = sphi 0, %s92
      %s109 = sphi 0, %s93
      %s115 = sphi 0, %s117
      %s118 = sphi 0, %s115
      %s119 = sphi 0, %s118
      %s135 = sphi 0, %s119
      %s141 = sphi 0, %s143
      %s144 = sphi 0, %s141
      %s145 = sphi 0, %s144
      %s161 = sphi 0, %s145
    $region4: #{cbam_forward.9} parent=1 // loop_header_branch
      %14 = sbr.rel (%p12) target = $region8
    $region5: #{cbam_forward.9} parent=1 // loop_body
      %s16 = ssub.s32 %s11, 1
      %s17 = ssub.s32 %s11, 2
      %s18 = sadd.s32 %s11, 1
      %s20 = sadd.s32 %s19, 1
      %p23 = scmp.eq.s32.totalorder %s11, 1
      %p24 = scmp.ne.s32.totalorder %s19, %s21
      %p25 = scmp.eq.s32.totalorder %s11, 0
      %p26 = por %p24, %p25
      %p27 = scmp.ne.s32.totalorder %s19, %s21
      %p28 = scmp.eq.s32.totalorder %s16, 1
      %p29 = por %p27, %p28
      %p30 = scmp.ne.s32.totalorder %s21, %s22
      %p31 = scmp.eq.s32.totalorder %s16, 0
      %p32 = por %p30, %p31
      %p33 = scmp.ne.s32.totalorder %s21, %s22
      %p34 = scmp.eq.s32.totalorder %s17, 1
      %p35 = por %p33, %p34
      %p37 = scmp.ne.s32.totalorder %s22, %s36
      %p38 = scmp.eq.s32.totalorder %s17, 0
      %p39 = por %p37, %p38
      %s40 = ssub.s32 %s11, %s18
      %p41 = scmp.eq.s32.totalorder %s40, 0
      %s43 = sadd.s32 %s42, 1
      %s44 = scalar_select %p41, %s42, %s43
      %p47 = pneg %p41
      %p48 = scmp.eq.s32.totalorder %s11, 1
      %p49 = por %p47, %p48
      %p50 = scmp.ne.s32.totalorder %s42, %s45
      %p51 = scmp.eq.s32.totalorder %s11, 0
      %p52 = por %p50, %p51
      %p53 = scmp.ne.s32.totalorder %s42, %s45
      %p54 = scmp.eq.s32.totalorder %s16, 1
      %p55 = por %p53, %p54
      %p56 = scmp.ne.s32.totalorder %s45, %s46
      %p57 = scmp.eq.s32.totalorder %s16, 0
      %p58 = por %p56, %p57
      %p59 = scmp.ne.s32.totalorder %s45, %s46
      %p60 = scmp.eq.s32.totalorder %s17, 1
      %p61 = por %p59, %p60
      %p63 = scmp.ne.s32.totalorder %s46, %s62
      %p64 = scmp.eq.s32.totalorder %s17, 0
      %p65 = por %p63, %p64
      %s67 = sadd.s32 %s66, 1
      %p70 = scmp.eq.s32.totalorder %s11, 1
      %p71 = scmp.ne.s32.totalorder %s66, %s68
      %p72 = scmp.eq.s32.totalorder %s11, 0
      %p73 = por %p71, %p72
      %p74 = scmp.ne.s32.totalorder %s66, %s68
      %p75 = scmp.eq.s32.totalorder %s16, 1
      %p76 = por %p74, %p75
      %p77 = scmp.ne.s32.totalorder %s68, %s69
      %p78 = scmp.eq.s32.totalorder %s16, 0
      %p79 = por %p77, %p78
      %p80 = scmp.ne.s32.totalorder %s68, %s69
      %p81 = scmp.eq.s32.totalorder %s17, 1
      %p82 = por %p80, %p81
      %p84 = scmp.ne.s32.totalorder %s69, %s83
      %p85 = scmp.eq.s32.totalorder %s17, 0
      %p86 = por %p84, %p85
      %s87 = ssub.s32 %s11, %s18
      %p88 = scmp.eq.s32.totalorder %s87, 0
      %s90 = sadd.s32 %s89, 1
      %s91 = scalar_select %p88, %s89, %s90
      %p94 = pneg %p88
      %p95 = scmp.eq.s32.totalorder %s11, 1
      %p96 = por %p94, %p95
      %p97 = scmp.ne.s32.totalorder %s89, %s92
      %p98 = scmp.eq.s32.totalorder %s11, 0
      %p99 = por %p97, %p98
      %p100 = scmp.ne.s32.totalorder %s89, %s92
      %p101 = scmp.eq.s32.totalorder %s16, 1
      %p102 = por %p100, %p101
      %p103 = scmp.ne.s32.totalorder %s92, %s93
      %p104 = scmp.eq.s32.totalorder %s16, 0
      %p105 = por %p103, %p104
      %p106 = scmp.ne.s32.totalorder %s92, %s93
      %p107 = scmp.eq.s32.totalorder %s17, 1
      %p108 = por %p106, %p107
      %p110 = scmp.ne.s32.totalorder %s93, %s109
      %p111 = scmp.eq.s32.totalorder %s17, 0
      %p112 = por %p110, %p111
      %s113 = ssub.s32 %s11, %s18
      %p114 = scmp.eq.s32.totalorder %s113, 0
      %s116 = sadd.s32 %s115, 1
      %s117 = scalar_select %p114, %s115, %s116
      %p120 = pneg %p114
      %p121 = scmp.eq.s32.totalorder %s11, 1
      %p122 = por %p120, %p121
      %p123 = scmp.ne.s32.totalorder %s115, %s118
      %p124 = scmp.eq.s32.totalorder %s11, 0
      %p125 = por %p123, %p124
      %p126 = scmp.ne.s32.totalorder %s115, %s118
      %p127 = scmp.eq.s32.totalorder %s16, 1
      %p128 = por %p126, %p127
      %p129 = scmp.ne.s32.totalorder %s118, %s119
      %p130 = scmp.eq.s32.totalorder %s16, 0
      %p131 = por %p129, %p130
      %p132 = scmp.ne.s32.totalorder %s118, %s119
      %p133 = scmp.eq.s32.totalorder %s17, 1
      %p134 = por %p132, %p133
      %p136 = scmp.ne.s32.totalorder %s119, %s135
      %p137 = scmp.eq.s32.totalorder %s17, 0
      %p138 = por %p136, %p137
      %s139 = ssub.s32 %s11, %s18
      %p140 = scmp.eq.s32.totalorder %s139, 0
      %s142 = sadd.s32 %s141, 1
      %s143 = scalar_select %p140, %s141, %s142
      %p146 = pneg %p140
      %p147 = scmp.eq.s32.totalorder %s11, 1
      %p148 = por %p146, %p147
      %p149 = scmp.ne.s32.totalorder %s141, %s144
      %p150 = scmp.eq.s32.totalorder %s11, 0
      %p151 = por %p149, %p150
      %p152 = scmp.ne.s32.totalorder %s141, %s144
      %p153 = scmp.eq.s32.totalorder %s16, 1
      %p154 = por %p152, %p153
      %p155 = scmp.ne.s32.totalorder %s144, %s145
      %p156 = scmp.eq.s32.totalorder %s16, 0
      %p157 = por %p155, %p156
      %p158 = scmp.ne.s32.totalorder %s144, %s145
      %p159 = scmp.eq.s32.totalorder %s17, 1
      %p160 = por %p158, %p159
      %p162 = scmp.ne.s32.totalorder %s145, %s161
      %p163 = scmp.eq.s32.totalorder %s17, 0
      %p164 = por %p162, %p163
      %p165 = scmp.le.s32.totalorder 1, %s11
      %p166 = scmp.lt.s32.totalorder %s11, 3
      %p167 = pnand %p165, %p166
      %p168 = pneg %p167
      // Predicated region
      $region9: #{cbam_forward.9} parent=5 // pred_check
        _
      $region10: #{cbam_forward.9} parent=5 // pred_check_branch
        %170 = sbr.rel (%p167) target = $region12
      $region11: #{cbam_forward.9} parent=5 // pred_region
        %s171 = ssub.s32 %s11, 1
        // Predicated region
        $region13: #{cbam_forward.9} parent=11 // pred_check
          %p172 = pneg %p32
        $region14: #{cbam_forward.9} parent=11 // pred_check_branch
          %174 = sbr.rel (%p172) target = $region16
        $region15: #{cbam_forward.9} parent=11 // pred_region
          _
        $region16: #{cbam_forward.9} parent=11 // pred_fallthru
          _
        // Predicated region
        $region17: #{cbam_forward.9} parent=11 // pred_check
          %p175 = pneg %p79
        $region18: #{cbam_forward.9} parent=11 // pred_check_branch
          %177 = sbr.rel (%p175) target = $region20
        $region19: #{cbam_forward.9} parent=11 // pred_region
          _
        $region20: #{cbam_forward.9} parent=11 // pred_fallthru
          _
      $region12: #{cbam_forward.9} parent=5 // pred_fallthru
        _
      %p178 = scmp.lt.s32.totalorder %s11, 2
      // Predicated region
      $region21: #{cbam_forward.9} parent=5 // pred_check
        %p179 = pneg %p178
      $region22: #{cbam_forward.9} parent=5 // pred_check_branch
        %181 = sbr.rel (%p179) target = $region24
      $region23: #{cbam_forward.9} parent=5 // pred_region
        // Predicated region
        $region25: #{cbam_forward.9} parent=23 // pred_check
          %p182 = pneg %p52
        $region26: #{cbam_forward.9} parent=23 // pred_check_branch
          %184 = sbr.rel (%p182) target = $region28
        $region27: #{cbam_forward.9} parent=23 // pred_region
          %s185 = sand.u32 %s42, 1
          %s186 = sand.u32 %s42, 1
          %s187 = smul.addr %s186, 160
          %s188 = scalar_lea.vmem [#allocation2], %s187
          %s189 = smul.u32 2, %s11
          %s190 = smul.addr %s189, 4
          %s191 = scalar_lea.vmem %s1, %s190
          // Predicated region
          $region29: #{cbam_forward.9} parent=27 // pred_check
            _
          $region30: #{cbam_forward.9} parent=27 // pred_check_branch
            %193 = sbr.rel (0) target = $region32
          $region31: #{cbam_forward.9} parent=27 // pred_region
            // Predicated region
            $region33: #{cbam_forward.9} parent=31 // pred_check
              _
            $region34: #{cbam_forward.9} parent=31 // pred_check_branch
              %195 = sbr.rel (0) target = $region36
            $region35: #{cbam_forward.9} parent=31 // pred_region
              // Predicated region
              $region48: #{cbam_forward.9} parent=35 // pred_check
                _
              $region49: #{cbam_forward.9} parent=35 // pred_check_branch
                %248 = sbr.rel (0) target = $region51
              $region50: #{cbam_forward.9} parent=35 // pred_region
                loop: start=0, step=1, limit=1
                $region52: #{cbam_forward.9} parent=50 // loop_pre_header
                  _
                $region53: #{cbam_forward.9} parent=50 // loop_header
                  %s250 = sphi 0, %s254
                  %p251 = scmp.ge.s32.totalorder %s250, 1
                  %s255 = sphi %s191, %s191
                  %s256 = sphi %s188, %s188
                $region54: #{cbam_forward.9} parent=50 // loop_header_branch
                  %253 = sbr.rel (%p251) target = $region58
                $region55: #{cbam_forward.9} parent=50 // loop_body
                  %v257 = vld [vmem:[%s255] sm:$0xff]
                  %258 = vst [vmem:[%s256] sm:$0xff] %v257
                  %v259 = vld [vmem:[%s255 + $0x10] sm:$0xff]
                  %260 = vst [vmem:[%s256 + $0x8] sm:$0xff] %v259
                  %v261 = vld [vmem:[%s255 + $0x20] sm:$0xff]
                  %262 = vst [vmem:[%s256 + $0x10] sm:$0xff] %v261
                  %v263 = vld [vmem:[%s255 + $0x30] sm:$0xff]
                  %264 = vst [vmem:[%s256 + $0x18] sm:$0xff] %v263
                  %v265 = vld [vmem:[%s255 + $0x40] sm:$0xff]
                  %266 = vst [vmem:[%s256 + $0x20] sm:$0xff] %v265
                  %v267 = vld [vmem:[%s255 + $0x50] sm:$0xff]
                  %268 = vst [vmem:[%s256 + $0x28] sm:$0xff] %v267
                  %v269 = vld [vmem:[%s255 + $0x60] sm:$0xff]
                  %270 = vst [vmem:[%s256 + $0x30] sm:$0xff] %v269
                  %v271 = vld [vmem:[%s255 + $0x70] sm:$0xff]
                  %272 = vst [vmem:[%s256 + $0x38] sm:$0xff] %v271
                  %v273 = vld [vmem:[%s255 + $0x80] sm:$0xff]
                  %274 = vst [vmem:[%s256 + $0x40] sm:$0xff] %v273
                  %v275 = vld [vmem:[%s255 + $0x90] sm:$0xff]
                  %276 = vst [vmem:[%s256 + $0x48] sm:$0xff] %v275
                  %v277 = vld [vmem:[%s255 + $0xa0] sm:$0xff]
                  %278 = vst [vmem:[%s256 + $0x50] sm:$0xff] %v277
                  %v279 = vld [vmem:[%s255 + $0xb0] sm:$0xff]
                  %280 = vst [vmem:[%s256 + $0x58] sm:$0xff] %v279
                  %v281 = vld [vmem:[%s255 + $0xc0] sm:$0xff]
                  %282 = vst [vmem:[%s256 + $0x60] sm:$0xff] %v281
                  %v283 = vld [vmem:[%s255 + $0xd0] sm:$0xff]
                  %284 = vst [vmem:[%s256 + $0x68] sm:$0xff] %v283
                  %v285 = vld [vmem:[%s255 + $0xe0] sm:$0xff]
                  %286 = vst [vmem:[%s256 + $0x70] sm:$0xff] %v285
                  %v287 = vld [vmem:[%s255 + $0xf0] sm:$0xff]
                  %288 = vst [vmem:[%s256 + $0x78] sm:$0xff] %v287
                  %v289 = vld [vmem:[%s255 + $0x100] sm:$0xff]
                  %290 = vst [vmem:[%s256 + $0x80] sm:$0xff] %v289
                  %v291 = vld [vmem:[%s255 + $0x110] sm:$0xff]
                  %292 = vst [vmem:[%s256 + $0x88] sm:$0xff] %v291
                  %v293 = vld [vmem:[%s255 + $0x120] sm:$0xff]
                  %294 = vst [vmem:[%s256 + $0x90] sm:$0xff] %v293
                  %v295 = vld [vmem:[%s255 + $0x130] sm:$0xff]
                  %296 = vst [vmem:[%s256 + $0x98] sm:$0xff] %v295
                $region56: #{cbam_forward.9} parent=50 // loop_footer
                  %s254 = sadd.s32 1, %s250
                $region57: #{cbam_forward.9} parent=50 // loop_footer_branch
                  %249 = sbr.rel target = $region53
                $region58: #{cbam_forward.9} parent=50 // loop_exit
                  _
              $region51: #{cbam_forward.9} parent=35 // pred_fallthru
                _
              // Predicated region
              $region59: #{cbam_forward.9} parent=35 // pred_check
                _
              $region60: #{cbam_forward.9} parent=35 // pred_check_branch
                %298 = sbr.rel target = $region62
              $region61: #{cbam_forward.9} parent=35 // pred_region
                _
              $region62: #{cbam_forward.9} parent=35 // pred_fallthru
                _
            $region36: #{cbam_forward.9} parent=31 // pred_fallthru
              _
            // Predicated region
            $region37: #{cbam_forward.9} parent=31 // pred_check
              _
            $region38: #{cbam_forward.9} parent=31 // pred_check_branch
              %197 = sbr.rel target = $region40
            $region39: #{cbam_forward.9} parent=31 // pred_region
              loop: start=0, step=1, limit=1
              $region41: #{cbam_forward.9} parent=39 // loop_pre_header
                _
              $region42: #{cbam_forward.9} parent=39 // loop_header
                %s200 = sphi 0, %s204
                %p201 = scmp.ge.s32.totalorder %s200, 1
                %s205 = sphi %s191, %s191
                %s206 = sphi %s188, %s188
              $region43: #{cbam_forward.9} parent=39 // loop_header_branch
                %203 = sbr.rel (%p201) target = $region47
              $region44: #{cbam_forward.9} parent=39 // loop_body
                %v207 = vld [vmem:[%s205] sm:$0xff]
                %208 = vst [vmem:[%s206] sm:$0xff] %v207
                %v209 = vld [vmem:[%s205 + $0x10] sm:$0xff]
                %210 = vst [vmem:[%s206 + $0x8] sm:$0xff] %v209
                %v211 = vld [vmem:[%s205 + $0x20] sm:$0xff]
                %212 = vst [vmem:[%s206 + $0x10] sm:$0xff] %v211
                %v213 = vld [vmem:[%s205 + $0x30] sm:$0xff]
                %214 = vst [vmem:[%s206 + $0x18] sm:$0xff] %v213
                %v215 = vld [vmem:[%s205 + $0x40] sm:$0xff]
                %216 = vst [vmem:[%s206 + $0x20] sm:$0xff] %v215
                %v217 = vld [vmem:[%s205 + $0x50] sm:$0xff]
                %218 = vst [vmem:[%s206 + $0x28] sm:$0xff] %v217
                %v219 = vld [vmem:[%s205 + $0x60] sm:$0xff]
                %220 = vst [vmem:[%s206 + $0x30] sm:$0xff] %v219
                %v221 = vld [vmem:[%s205 + $0x70] sm:$0xff]
                %222 = vst [vmem:[%s206 + $0x38] sm:$0xff] %v221
                %v223 = vld [vmem:[%s205 + $0x80] sm:$0xff]
                %224 = vst [vmem:[%s206 + $0x40] sm:$0xff] %v223
                %v225 = vld [vmem:[%s205 + $0x90] sm:$0xff]
                %226 = vst [vmem:[%s206 + $0x48] sm:$0xff] %v225
                %v227 = vld [vmem:[%s205 + $0xa0] sm:$0xff]
                %228 = vst [vmem:[%s206 + $0x50] sm:$0xff] %v227
                %v229 = vld [vmem:[%s205 + $0xb0] sm:$0xff]
                %230 = vst [vmem:[%s206 + $0x58] sm:$0xff] %v229
                %v231 = vld [vmem:[%s205 + $0xc0] sm:$0xff]
                %232 = vst [vmem:[%s206 + $0x60] sm:$0xff] %v231
                %v233 = vld [vmem:[%s205 + $0xd0] sm:$0xff]
                %234 = vst [vmem:[%s206 + $0x68] sm:$0xff] %v233
                %v235 = vld [vmem:[%s205 + $0xe0] sm:$0xff]
                %236 = vst [vmem:[%s206 + $0x70] sm:$0xff] %v235
                %v237 = vld [vmem:[%s205 + $0xf0] sm:$0xff]
                %238 = vst [vmem:[%s206 + $0x78] sm:$0xff] %v237
                %v239 = vld [vmem:[%s205 + $0x100] sm:$0xff]
                %240 = vst [vmem:[%s206 + $0x80] sm:$0xff] %v239
                %v241 = vld [vmem:[%s205 + $0x110] sm:$0xff]
                %242 = vst [vmem:[%s206 + $0x88] sm:$0xff] %v241
                %v243 = vld [vmem:[%s205 + $0x120] sm:$0xff]
                %244 = vst [vmem:[%s206 + $0x90] sm:$0xff] %v243
                %v245 = vld [vmem:[%s205 + $0x130] sm:$0xff]
                %246 = vst [vmem:[%s206 + $0x98] sm:$0xff] %v245
              $region45: #{cbam_forward.9} parent=39 // loop_footer
                %s204 = sadd.s32 1, %s200
              $region46: #{cbam_forward.9} parent=39 // loop_footer_branch
                %199 = sbr.rel target = $region42
              $region47: #{cbam_forward.9} parent=39 // loop_exit
                _
            $region40: #{cbam_forward.9} parent=31 // pred_fallthru
              _
          $region32: #{cbam_forward.9} parent=27 // pred_fallthru
            _
          %299 = vnop
        $region28: #{cbam_forward.9} parent=23 // pred_fallthru
          _
        // Predicated region
        $region63: #{cbam_forward.9} parent=23 // pred_check
          %p300 = pneg %p99
        $region64: #{cbam_forward.9} parent=23 // pred_check_branch
          %302 = sbr.rel (%p300) target = $region66
        $region65: #{cbam_forward.9} parent=23 // pred_region
          %s303 = sand.u32 %s89, 1
          %s304 = sand.u32 %s89, 1
          %s305 = smul.addr %s304, 64
          %s306 = scalar_lea.vmem [#allocation3], %s305
          %s307 = smul.u32 2, %s11
          %s308 = smul.addr %s307, 8
          %s309 = scalar_lea.vmem %s3, %s308
          // Predicated region
          $region67: #{cbam_forward.9} parent=65 // pred_check
            _
          $region68: #{cbam_forward.9} parent=65 // pred_check_branch
            %311 = sbr.rel (0) target = $region70
          $region69: #{cbam_forward.9} parent=65 // pred_region
            // Predicated region
            $region71: #{cbam_forward.9} parent=69 // pred_check
              _
            $region72: #{cbam_forward.9} parent=69 // pred_check_branch
              %313 = sbr.rel (0) target = $region74
            $region73: #{cbam_forward.9} parent=69 // pred_region
              loop: start=0, step=1, limit=1
              $region75: #{cbam_forward.9} parent=73 // loop_pre_header
                _
              $region76: #{cbam_forward.9} parent=73 // loop_header
                %s315 = sphi 0, %s319
                %p316 = scmp.ge.s32.totalorder %s315, 1
                %s320 = sphi %s309, %s309
                %s321 = sphi %s306, %s306
              $region77: #{cbam_forward.9} parent=73 // loop_header_branch
                %318 = sbr.rel (%p316) target = $region81
              $region78: #{cbam_forward.9} parent=73 // loop_body
                %v322 = vld [vmem:[%s320] sm:$0xff]
                %323 = vst [vmem:[%s321] sm:$0xff] %v322
                %v324 = vld [vmem:[%s320 + $0x8] sm:$0xff]
                %325 = vst [vmem:[%s321 + $0x8] sm:$0xff] %v324
                %v326 = vld [vmem:[%s320 + $0x20] sm:$0xff]
                %327 = vst [vmem:[%s321 + $0x10] sm:$0xff] %v326
                %v328 = vld [vmem:[%s320 + $0x28] sm:$0xff]
                %329 = vst [vmem:[%s321 + $0x18] sm:$0xff] %v328
                %v330 = vld [vmem:[%s320 + $0x40] sm:$0xff]
                %331 = vst [vmem:[%s321 + $0x20] sm:$0xff] %v330
                %v332 = vld [vmem:[%s320 + $0x48] sm:$0xff]
                %333 = vst [vmem:[%s321 + $0x28] sm:$0xff] %v332
                %v334 = vld [vmem:[%s320 + $0x60] sm:$0xff]
                %335 = vst [vmem:[%s321 + $0x30] sm:$0xff] %v334
                %v336 = vld [vmem:[%s320 + $0x68] sm:$0xff]
                %337 = vst [vmem:[%s321 + $0x38] sm:$0xff] %v336
              $region79: #{cbam_forward.9} parent=73 // loop_footer
                %s319 = sadd.s32 1, %s315
              $region80: #{cbam_forward.9} parent=73 // loop_footer_branch
                %314 = sbr.rel target = $region76
              $region81: #{cbam_forward.9} parent=73 // loop_exit
                _
            $region74: #{cbam_forward.9} parent=69 // pred_fallthru
              _
            // Predicated region
            $region82: #{cbam_forward.9} parent=69 // pred_check
              _
            $region83: #{cbam_forward.9} parent=69 // pred_check_branch
              %339 = sbr.rel target = $region85
            $region84: #{cbam_forward.9} parent=69 // pred_region
              _
            $region85: #{cbam_forward.9} parent=69 // pred_fallthru
              _
          $region70: #{cbam_forward.9} parent=65 // pred_fallthru
            _
          %340 = vnop
        $region66: #{cbam_forward.9} parent=23 // pred_fallthru
          _
        // Predicated region
        $region86: #{cbam_forward.9} parent=23 // pred_check
          %p341 = pneg %p125
        $region87: #{cbam_forward.9} parent=23 // pred_check_branch
          %343 = sbr.rel (%p341) target = $region89
        $region88: #{cbam_forward.9} parent=23 // pred_region
          %s344 = sand.u32 %s115, 1
          %s345 = sand.u32 %s115, 1
          %s346 = smul.addr %s345, 64
          %s347 = scalar_lea.vmem [#allocation4], %s346
          %s348 = smul.u32 2, %s11
          %s349 = smul.addr %s348, 8
          %s350 = scalar_lea.vmem %s4, %s349
          // Predicated region
          $region90: #{cbam_forward.9} parent=88 // pred_check
            _
          $region91: #{cbam_forward.9} parent=88 // pred_check_branch
            %352 = sbr.rel (0) target = $region93
          $region92: #{cbam_forward.9} parent=88 // pred_region
            // Predicated region
            $region94: #{cbam_forward.9} parent=92 // pred_check
              _
            $region95: #{cbam_forward.9} parent=92 // pred_check_branch
              %354 = sbr.rel (0) target = $region97
            $region96: #{cbam_forward.9} parent=92 // pred_region
              loop: start=0, step=1, limit=1
              $region98: #{cbam_forward.9} parent=96 // loop_pre_header
                _
              $region99: #{cbam_forward.9} parent=96 // loop_header
                %s356 = sphi 0, %s360
                %p357 = scmp.ge.s32.totalorder %s356, 1
                %s361 = sphi %s350, %s350
                %s362 = sphi %s347, %s347
              $region100: #{cbam_forward.9} parent=96 // loop_header_branch
                %359 = sbr.rel (%p357) target = $region104
              $region101: #{cbam_forward.9} parent=96 // loop_body
                %v363 = vld [vmem:[%s361] sm:$0xff]
                %364 = vst [vmem:[%s362] sm:$0xff] %v363
                %v365 = vld [vmem:[%s361 + $0x8] sm:$0xff]
                %366 = vst [vmem:[%s362 + $0x8] sm:$0xff] %v365
                %v367 = vld [vmem:[%s361 + $0x20] sm:$0xff]
                %368 = vst [vmem:[%s362 + $0x10] sm:$0xff] %v367
                %v369 = vld [vmem:[%s361 + $0x28] sm:$0xff]
                %370 = vst [vmem:[%s362 + $0x18] sm:$0xff] %v369
                %v371 = vld [vmem:[%s361 + $0x40] sm:$0xff]
                %372 = vst [vmem:[%s362 + $0x20] sm:$0xff] %v371
                %v373 = vld [vmem:[%s361 + $0x48] sm:$0xff]
                %374 = vst [vmem:[%s362 + $0x28] sm:$0xff] %v373
                %v375 = vld [vmem:[%s361 + $0x60] sm:$0xff]
                %376 = vst [vmem:[%s362 + $0x30] sm:$0xff] %v375
                %v377 = vld [vmem:[%s361 + $0x68] sm:$0xff]
                %378 = vst [vmem:[%s362 + $0x38] sm:$0xff] %v377
              $region102: #{cbam_forward.9} parent=96 // loop_footer
                %s360 = sadd.s32 1, %s356
              $region103: #{cbam_forward.9} parent=96 // loop_footer_branch
                %355 = sbr.rel target = $region99
              $region104: #{cbam_forward.9} parent=96 // loop_exit
                _
            $region97: #{cbam_forward.9} parent=92 // pred_fallthru
              _
            // Predicated region
            $region105: #{cbam_forward.9} parent=92 // pred_check
              _
            $region106: #{cbam_forward.9} parent=92 // pred_check_branch
              %380 = sbr.rel target = $region108
            $region107: #{cbam_forward.9} parent=92 // pred_region
              _
            $region108: #{cbam_forward.9} parent=92 // pred_fallthru
              _
          $region93: #{cbam_forward.9} parent=88 // pred_fallthru
            _
          %381 = vnop
        $region89: #{cbam_forward.9} parent=23 // pred_fallthru
          _
      $region24: #{cbam_forward.9} parent=5 // pred_fallthru
        _
      %p382 = scmp.le.s32.totalorder 1, %s11
      %p383 = scmp.lt.s32.totalorder %s11, 3
      %p384 = pnand %p382, %p383
      %p385 = pneg %p384
      // Predicated region
      $region109: #{cbam_forward.9} parent=5 // pred_check
        _
      $region110: #{cbam_forward.9} parent=5 // pred_check_branch
        %387 = sbr.rel (%p384) target = $region112
      $region111: #{cbam_forward.9} parent=5 // pred_region
        %s388 = ssub.s32 %s11, 1
        %s389 = sand.u32 %s45, 1
        %s390 = sand.u32 %s45, 1
        %s391 = smul.addr %s390, 160
        %s392 = scalar_lea.vmem [#allocation2], %s391
        // Predicated region
        $region113: #{cbam_forward.9} parent=111 // pred_check
          %p393 = pneg %p58
        $region114: #{cbam_forward.9} parent=111 // pred_check_branch
          %395 = sbr.rel (%p393) target = $region116
        $region115: #{cbam_forward.9} parent=111 // pred_region
          _
        $region116: #{cbam_forward.9} parent=111 // pred_fallthru
          _
        %s396 = sand.u32 %s92, 1
        %s397 = sand.u32 %s92, 1
        %s398 = smul.addr %s397, 64
        %s399 = scalar_lea.vmem [#allocation3], %s398
        // Predicated region
        $region117: #{cbam_forward.9} parent=111 // pred_check
          %p400 = pneg %p105
        $region118: #{cbam_forward.9} parent=111 // pred_check_branch
          %402 = sbr.rel (%p400) target = $region120
        $region119: #{cbam_forward.9} parent=111 // pred_region
          _
        $region120: #{cbam_forward.9} parent=111 // pred_fallthru
          _
        %s403 = sand.u32 %s118, 1
        %s404 = sand.u32 %s118, 1
        %s405 = smul.addr %s404, 64
        %s406 = scalar_lea.vmem [#allocation4], %s405
        // Predicated region
        $region121: #{cbam_forward.9} parent=111 // pred_check
          %p407 = pneg %p131
        $region122: #{cbam_forward.9} parent=111 // pred_check_branch
          %409 = sbr.rel (%p407) target = $region124
        $region123: #{cbam_forward.9} parent=111 // pred_region
          _
        $region124: #{cbam_forward.9} parent=111 // pred_fallthru
          _
        %p410 = pneg %p32
        %p411 = pneg %p29
        %s412 = sand.u32 %s45, 1
        %s413 = sand.u32 %s45, 1
        %s414 = smul.addr %s413, 160
        %s415 = scalar_lea.vmem [#allocation2], %s414
        %p416 = pneg %p58
        %p417 = pneg %p55
        %p418 = pneg %p79
        %p419 = pneg %p76
        %s420 = sand.u32 %s92, 1
        %s421 = sand.u32 %s92, 1
        %s422 = smul.addr %s421, 64
        %s423 = scalar_lea.vmem [#allocation3], %s422
        %p424 = pneg %p105
        %p425 = pneg %p102
        %s426 = sand.u32 %s118, 1
        %s427 = sand.u32 %s118, 1
        %s428 = smul.addr %s427, 64
        %s429 = scalar_lea.vmem [#allocation4], %s428
        %p430 = pneg %p131
        %p431 = pneg %p128
        %p432 = pneg %p157
        %p433 = pneg %p154
        %s434 = sand.u32 %s144, 1
        %s435 = sand.u32 %s144, 1
        %s436 = smul.addr %s435, 64
        %s437 = scalar_lea.vmem [#allocation5], %s436
        %s438 = smul.u32 2, %s16
        %s439 = smul.u32 2, %s16
        %s440 = smul.u32 2, %s16
        %s441 = smul.u32 2, %s16
        %v443 = vld [vmem:[%s0] sm:$0xff]
        %v444 = vld [vmem:[%s0 + $0x8] sm:$0xff]
        %v445 = vld [vmem:[%s0 + $0x10] sm:$0xff]
        %v446 = vld [vmem:[%s0 + $0x18] sm:$0xff]
        %v447 = vld [vmem:[%s392] sm:$0xff]
        %v448 = vld [vmem:[%s392 + $0x8] sm:$0xff]
        %v449 = vld [vmem:[%s392 + $0x10] sm:$0xff]
        %v450 = vld [vmem:[%s392 + $0x18] sm:$0xff]
        %v451 = vld [vmem:[%s392 + $0x20] sm:$0xff]
        %v452 = vld [vmem:[%s392 + $0x28] sm:$0xff]
        %v453 = vld [vmem:[%s392 + $0x30] sm:$0xff]
        %v454 = vld [vmem:[%s392 + $0x38] sm:$0xff]
        %v455 = vld [vmem:[%s392 + $0x40] sm:$0xff]
        %v456 = vld [vmem:[%s392 + $0x48] sm:$0xff]
        %v457 = vld [vmem:[%s392 + $0x50] sm:$0xff]
        %v458 = vld [vmem:[%s392 + $0x58] sm:$0xff]
        %v459 = vld [vmem:[%s392 + $0x60] sm:$0xff]
        %v460 = vld [vmem:[%s392 + $0x68] sm:$0xff]
        %v461 = vld [vmem:[%s392 + $0x70] sm:$0xff]
        %v462 = vld [vmem:[%s392 + $0x78] sm:$0xff]
        %v463 = vld [vmem:[%s392 + $0x80] sm:$0xff]
        %v464 = vld [vmem:[%s392 + $0x88] sm:$0xff]
        %v465 = vld [vmem:[%s392 + $0x90] sm:$0xff]
        %v466 = vld [vmem:[%s392 + $0x98] sm:$0xff]
        %v467 = vld [vmem:[%s2] sm:$0xff]
        %v468 = vld [vmem:[%s2 + $0x8] sm:$0xff]
        %v469 = vld [vmem:[%s2 + $0x10] sm:$0xff]
        %v470 = vld [vmem:[%s2 + $0x18] sm:$0xff]
        %472 = vset.pattern.permute.xlu0 0
        %473 = vperm.xlu0 %472, %v467
        %v474 = vpop.permute.xlu0 %473
        %477 = vset.pattern.permute.xlu0 0
        %478 = vperm.xlu0 %477, %v468
        %v479 = vpop.permute.xlu0 %478
        %482 = vset.pattern.permute.xlu0 0
        %483 = vperm.xlu0 %482, %v469
        %v484 = vpop.permute.xlu0 %483
        %487 = vset.pattern.permute.xlu0 0
        %488 = vperm.xlu0 %487, %v470
        %v489 = vpop.permute.xlu0 %488
        %v495 = vunpack.c.l.b16 %v443
        %v496 = vunpack.c.h.b16 %v443
        %v497 = vunpack.c.l.b16 %v444
        %v498 = vunpack.c.h.b16 %v444
        %v499 = vunpack.c.l.b16 %v445
        %v500 = vunpack.c.h.b16 %v445
        %v501 = vunpack.c.l.b16 %v446
        %v502 = vunpack.c.h.b16 %v446
        %v503 = vpack.c.b16 %v497, %v495
        %v504 = vpack.c.b16 %v498, %v496
        %v505 = vpack.c.b16 %v501, %v499
        %v506 = vpack.c.b16 %v502, %v500
        %v529 = vunpack.c.l.b16 %v447
        %v530 = vunpack.c.h.b16 %v447
        %v531 = vunpack.c.l.b16 %v448
        %v532 = vunpack.c.h.b16 %v448
        %v533 = vunpack.c.l.b16 %v449
        %v534 = vunpack.c.h.b16 %v449
        %v535 = vunpack.c.l.b16 %v450
        %v536 = vunpack.c.h.b16 %v450
        %v537 = vunpack.c.l.b16 %v451
        %v538 = vunpack.c.h.b16 %v451
        %v539 = vunpack.c.l.b16 %v452
        %v540 = vunpack.c.h.b16 %v452
        %v541 = vunpack.c.l.b16 %v453
        %v542 = vunpack.c.h.b16 %v453
        %v543 = vunpack.c.l.b16 %v454
        %v544 = vunpack.c.h.b16 %v454
        %v545 = vunpack.c.l.b16 %v455
        %v546 = vunpack.c.h.b16 %v455
        %v547 = vunpack.c.l.b16 %v456
        %v548 = vunpack.c.h.b16 %v456
        %v549 = vunpack.c.l.b16 %v457
        %v550 = vunpack.c.h.b16 %v457
        %v551 = vunpack.c.l.b16 %v458
        %v552 = vunpack.c.h.b16 %v458
        %v553 = vunpack.c.l.b16 %v459
        %v554 = vunpack.c.h.b16 %v459
        %v555 = vunpack.c.l.b16 %v460
        %v556 = vunpack.c.h.b16 %v460
        %v557 = vunpack.c.l.b16 %v461
        %v558 = vunpack.c.h.b16 %v461
        %v559 = vunpack.c.l.b16 %v462
        %v560 = vunpack.c.h.b16 %v462
        %v561 = vunpack.c.l.b16 %v463
        %v562 = vunpack.c.h.b16 %v463
        %v563 = vunpack.c.l.b16 %v464
        %v564 = vunpack.c.h.b16 %v464
        %v565 = vunpack.c.l.b16 %v465
        %v566 = vunpack.c.h.b16 %v465
        %v567 = vunpack.c.l.b16 %v466
        %v568 = vunpack.c.h.b16 %v466
        %v569 = vpack.c.b16 %v531, %v529
        %v570 = vpack.c.b16 %v532, %v530
        %v571 = vpack.c.b16 %v535, %v533
        %v572 = vpack.c.b16 %v536, %v534
        %v573 = vpack.c.b16 %v539, %v537
        %v574 = vpack.c.b16 %v540, %v538
        %v575 = vpack.c.b16 %v543, %v541
        %v576 = vpack.c.b16 %v544, %v542
        %v577 = vpack.c.b16 %v547, %v545
        %v578 = vpack.c.b16 %v548, %v546
        %v579 = vpack.c.b16 %v551, %v549
        %v580 = vpack.c.b16 %v552, %v550
        %v581 = vpack.c.b16 %v555, %v553
        %v582 = vpack.c.b16 %v556, %v554
        %v583 = vpack.c.b16 %v559, %v557
        %v584 = vpack.c.b16 %v560, %v558
        %v585 = vpack.c.b16 %v563, %v561
        %v586 = vpack.c.b16 %v564, %v562
        %v587 = vpack.c.b16 %v567, %v565
        %v588 = vpack.c.b16 %v568, %v566
        %vm609 = vcmask 261120
        %v611 = vsel %vm609, %v504, 0
        %v614 = vsel %vm609, %v506, 0
        %616 = vmatprep.subr.bf16.mxu0 %v570
        %617 = vmatpush1.bf16.msra.mxu0 %v569
        %618 = vmatprep.subr.bf16.mxu0 %v572
        %619 = vmatpush1.bf16.msra.mxu0 %v571
        %620 = vmatprep.subr.bf16.mxu0 %v574
        %621 = vmatpush1.bf16.msra.mxu0 %v573
        %622 = vmatprep.subr.bf16.mxu0 %v576
        %623 = vmatpush1.bf16.msra.mxu0 %v575
        %624 = vmatprep.subr.bf16.mxu0 %v578
        %625 = vmatpush1.bf16.msra.mxu0 %v577
        %626 = vmatprep.subr.bf16.mxu0 %v580
        %627 = vmatpush1.bf16.msra.mxu0 %v579
        %628 = vmatprep.subr.bf16.mxu0 %v582
        %629 = vmatpush1.bf16.msra.mxu0 %v581
        %630 = vmatprep.subr.bf16.mxu0 %v584
        %631 = vmatpush1.bf16.msra.mxu0 %v583
        %632 = vmatprep.subr.bf16.mxu0 %v586
        %633 = vmatpush1.bf16.msra.mxu0 %v585
        %634 = vmatprep.subr.bf16.mxu0 %v588
        %635 = vmatpush1.bf16.msra.mxu0 %v587
        %636 = vmatprep.subr.bf16.mxu0 0
        %637 = vmatpush1.bf16.msra.mxu0 0
        %638 = vmatprep.subr.bf16.mxu0 0
        %639 = vmatpush1.bf16.msra.mxu0 0
        %640 = vmatprep.subr.bf16.mxu0 0
        %641 = vmatpush1.bf16.msra.mxu0 0
        %642 = vmatprep.subr.bf16.mxu0 0
        %643 = vmatpush1.bf16.msra.mxu0 0
        %644 = vmatprep.subr.bf16.mxu0 0
        %645 = vmatpush1.bf16.msra.mxu0 0
        %646 = vmatprep.subr.bf16.mxu0 0
        %647 = vmatpush1.bf16.msra.mxu0 0
        %648 = vmatprep.mubr.bf16.mxu0 %v611
        %649 = vmatmul.mubr.bf16.gmra.mrb[0].mxu0 %v503
        %v650 = vpop.f32.mrb[0].mxu0
        %v651 = vadd.f32 %v474, %v650
        %v652 = vpop.f32.mrb[0].mxu0
        %v653 = vadd.f32 %v474, %v652
        %v654 = vpop.f32.mrb[0].mxu0
        %v655 = vadd.f32 %v479, %v654
        %v656 = vpop.f32.mrb[0].mxu0
        %v657 = vadd.f32 %v479, %v656
        %658 = vmatprep.mubr.bf16.mxu0 %v614
        %659 = vmatmul.mubr.bf16.gmra.mrb[0].mxu0 %v505
        %v660 = vpop.f32.mrb[0].mxu0
        %v661 = vadd.f32 %v484, %v660
        %v662 = vpop.f32.mrb[0].mxu0
        %v663 = vadd.f32 %v484, %v662
        %v664 = vpop.f32.mrb[0].mxu0
        %v665 = vadd.f32 %v489, %v664
        %v666 = vpop.f32.mrb[0].mxu0
        %v667 = vadd.f32 %v489, %v666
        %668 = vdwg.mxu0
        %v669 = vld [vmem:[%s399] sm:$0xff]
        %v670 = vld [vmem:[%s399 + $0x8] sm:$0xff]
        %v671 = vld [vmem:[%s399 + $0x10] sm:$0xff]
        %v672 = vld [vmem:[%s399 + $0x18] sm:$0xff]
        %v673 = vld [vmem:[%s399 + $0x20] sm:$0xff]
        %v674 = vld [vmem:[%s399 + $0x28] sm:$0xff]
        %v675 = vld [vmem:[%s399 + $0x30] sm:$0xff]
        %v676 = vld [vmem:[%s399 + $0x38] sm:$0xff]
        %v677 = vmul.f32 %v651, %v669
        %v678 = vmul.f32 %v653, %v670
        %v679 = vmul.f32 %v655, %v671
        %v680 = vmul.f32 %v657, %v672
        %v681 = vmul.f32 %v661, %v673
        %v682 = vmul.f32 %v663, %v674
        %v683 = vmul.f32 %v665, %v675
        %v684 = vmul.f32 %v667, %v676
        %v685 = vld [vmem:[%s406] sm:$0xff]
        %v686 = vld [vmem:[%s406 + $0x8] sm:$0xff]
        %v687 = vld [vmem:[%s406 + $0x10] sm:$0xff]
        %v688 = vld [vmem:[%s406 + $0x18] sm:$0xff]
        %v689 = vld [vmem:[%s406 + $0x20] sm:$0xff]
        %v690 = vld [vmem:[%s406 + $0x28] sm:$0xff]
        %v691 = vld [vmem:[%s406 + $0x30] sm:$0xff]
        %v692 = vld [vmem:[%s406 + $0x38] sm:$0xff]
        %v693 = vmul.f32 %v677, %v685
        %v694 = vmul.f32 %v678, %v686
        %v695 = vmul.f32 %v679, %v687
        %v696 = vmul.f32 %v680, %v688
        %v697 = vmul.f32 %v681, %v689
        %v698 = vmul.f32 %v682, %v690
        %v699 = vmul.f32 %v683, %v691
        %v700 = vmul.f32 %v684, %v692
        %701 = vst [vmem:[%s437] sm:$0xff] %v693
        %702 = vst [vmem:[%s437 + $0x8] sm:$0xff] %v694
        %703 = vst [vmem:[%s437 + $0x10] sm:$0xff] %v695
        %704 = vst [vmem:[%s437 + $0x18] sm:$0xff] %v696
        %705 = vst [vmem:[%s437 + $0x20] sm:$0xff] %v697
        %706 = vst [vmem:[%s437 + $0x28] sm:$0xff] %v698
        %707 = vst [vmem:[%s437 + $0x30] sm:$0xff] %v699
        %708 = vst [vmem:[%s437 + $0x38] sm:$0xff] %v700
        %s709 = sand.u32 %s144, 1
        %s710 = sand.u32 %s144, 1
        %s711 = smul.addr %s710, 64
        %s712 = scalar_lea.vmem [#allocation5], %s711
        // Predicated region
        $region125: #{cbam_forward.9} parent=111 // pred_check
          %p713 = pneg %p154
        $region126: #{cbam_forward.9} parent=111 // pred_check_branch
          %715 = sbr.rel (%p713) target = $region128
        $region127: #{cbam_forward.9} parent=111 // pred_region
          %s716 = smul.u32 2, %s16
          %s717 = smul.addr %s716, 8
          %s718 = scalar_lea.vmem %s5, %s717
          // Predicated region
          $region129: #{cbam_forward.9} parent=127 // pred_check
            _
          $region130: #{cbam_forward.9} parent=127 // pred_check_branch
            %720 = sbr.rel (0) target = $region132
          $region131: #{cbam_forward.9} parent=127 // pred_region
            // Predicated region
            $region133: #{cbam_forward.9} parent=131 // pred_check
              _
            $region134: #{cbam_forward.9} parent=131 // pred_check_branch
              %722 = sbr.rel (0) target = $region136
            $region135: #{cbam_forward.9} parent=131 // pred_region
              loop: start=0, step=1, limit=1
              $region137: #{cbam_forward.9} parent=135 // loop_pre_header
                _
              $region138: #{cbam_forward.9} parent=135 // loop_header
                %s724 = sphi 0, %s728
                %p725 = scmp.ge.s32.totalorder %s724, 1
                %s729 = sphi %s712, %s712
                %s730 = sphi %s718, %s718
              $region139: #{cbam_forward.9} parent=135 // loop_header_branch
                %727 = sbr.rel (%p725) target = $region143
              $region140: #{cbam_forward.9} parent=135 // loop_body
                %v731 = vld [vmem:[%s729] sm:$0xff]
                %732 = vst [vmem:[%s730] sm:$0xff] %v731
                %v733 = vld [vmem:[%s729 + $0x8] sm:$0xff]
                %734 = vst [vmem:[%s730 + $0x8] sm:$0xff] %v733
                %v735 = vld [vmem:[%s729 + $0x10] sm:$0xff]
                %736 = vst [vmem:[%s730 + $0x20] sm:$0xff] %v735
                %v737 = vld [vmem:[%s729 + $0x18] sm:$0xff]
                %738 = vst [vmem:[%s730 + $0x28] sm:$0xff] %v737
                %v739 = vld [vmem:[%s729 + $0x20] sm:$0xff]
                %740 = vst [vmem:[%s730 + $0x40] sm:$0xff] %v739
                %v741 = vld [vmem:[%s729 + $0x28] sm:$0xff]
                %742 = vst [vmem:[%s730 + $0x48] sm:$0xff] %v741
                %v743 = vld [vmem:[%s729 + $0x30] sm:$0xff]
                %744 = vst [vmem:[%s730 + $0x60] sm:$0xff] %v743
                %v745 = vld [vmem:[%s729 + $0x38] sm:$0xff]
                %746 = vst [vmem:[%s730 + $0x68] sm:$0xff] %v745
              $region141: #{cbam_forward.9} parent=135 // loop_footer
                %s728 = sadd.s32 1, %s724
              $region142: #{cbam_forward.9} parent=135 // loop_footer_branch
                %723 = sbr.rel target = $region138
              $region143: #{cbam_forward.9} parent=135 // loop_exit
                _
            $region136: #{cbam_forward.9} parent=131 // pred_fallthru
              _
            // Predicated region
            $region144: #{cbam_forward.9} parent=131 // pred_check
              _
            $region145: #{cbam_forward.9} parent=131 // pred_check_branch
              %748 = sbr.rel target = $region147
            $region146: #{cbam_forward.9} parent=131 // pred_region
              _
            $region147: #{cbam_forward.9} parent=131 // pred_fallthru
              _
          $region132: #{cbam_forward.9} parent=127 // pred_fallthru
            _
          %749 = vnop
        $region128: #{cbam_forward.9} parent=111 // pred_fallthru
          _
      $region112: #{cbam_forward.9} parent=5 // pred_fallthru
        _
      %p750 = scmp.le.s32.totalorder 2, %s11
      // Predicated region
      $region148: #{cbam_forward.9} parent=5 // pred_check
        %p751 = pneg %p750
      $region149: #{cbam_forward.9} parent=5 // pred_check_branch
        %753 = sbr.rel (%p751) target = $region151
      $region150: #{cbam_forward.9} parent=5 // pred_region
        %s754 = ssub.s32 %s11, 2
        // Predicated region
        $region152: #{cbam_forward.9} parent=150 // pred_check
          %p755 = pneg %p160
        $region153: #{cbam_forward.9} parent=150 // pred_check_branch
          %757 = sbr.rel (%p755) target = $region155
        $region154: #{cbam_forward.9} parent=150 // pred_region
          %s758 = sand.u32 %s145, 1
          %s759 = sand.u32 %s145, 1
          %s760 = smul.addr %s759, 64
          %s761 = scalar_lea.vmem [#allocation5], %s760
        $region155: #{cbam_forward.9} parent=150 // pred_fallthru
          _
      $region151: #{cbam_forward.9} parent=5 // pred_fallthru
        _
    $region6: #{cbam_forward.9} parent=1 // loop_footer
      %s15 = sadd.s32 1, %s11
    $region7: #{cbam_forward.9} parent=1 // loop_footer_branch
      %10 = sbr.rel target = $region3
    $region8: #{cbam_forward.9} parent=1 // loop_exit
      _

</llo_original>
